<compile_context>
chip_gen: v7x
topology: tpu7x:2x2x1
jax: 0.10.0
libtpu: 0.0.40
codegen_flags: <defaults>
</compile_context>

<pallas_src>
import functools

import jax
import jax.numpy as jnp
from jax import lax
from jax.experimental import pallas as pl
from jax.experimental.pallas import tpu as pltpu


def _fused_lstm_kernel(x_ref, *args, num_layers, seq_len, batch):
    """Fused multi-layer LSTM over the whole sequence.

    x_ref:  [T*B, D]          time-major input, flattened over (T, B)
    args:   for each layer l: wih_l [Din, 4H], whh_l [H, 4H], b_l [1, 4H]
            then out_ref [B, H], then scratch: seq_ref [T*B, H], gx_ref [T*B, 4H]
    Gate order matches PyTorch: i, f, g, o.
    """
    w_refs = args[: 3 * num_layers]
    out_ref = args[3 * num_layers]
    seq_ref, gx_ref = args[3 * num_layers + 1:]

    T, B = seq_len, batch
    H = out_ref.shape[1]
    G = 4 * H

    # Per-lane mask selecting the 'g' (cell-candidate) gate lanes -> tanh,
    # everything else -> sigmoid.  Hoisted out of all loops.
    lane = lax.broadcasted_iota(jnp.int32, (B, G), 1)
    g_mask = (lane >= 2 * H) & (lane < 3 * H)

    h_last = None
    for layer in range(num_layers):
        wih = w_refs[3 * layer][...]      # [Din, 4H]
        whh = w_refs[3 * layer + 1][...]  # [H, 4H]
        b = w_refs[3 * layer + 2][...]    # [1, 4H]

        # ---- hoisted input projection: all timesteps at once, off the serial chain.
        x_flat = x_ref[...] if layer == 0 else seq_ref[...]   # [T*B, Din]
        gx_ref[...] = (
            jnp.dot(x_flat, wih, preferred_element_type=jnp.float32) + b
        )                                                      # [T*B, 4H], lane-dense store

        last_layer = layer == num_layers - 1

        # ---- recurrence: fully unrolled, static indices.
        h = jnp.zeros((B, H), jnp.float32)
        c = jnp.zeros((B, H), jnp.float32)
        for t in range(T):
            row = t * B
            gates = gx_ref[row:row + B, :] + jnp.dot(
                h, whh, preferred_element_type=jnp.float32)    # [B, 4H]
            # Full-width nonlinearity + per-lane select (1 sigmoid, 1 tanh, 1 where).
            act = jnp.where(g_mask, jnp.tanh(gates), jax.nn.sigmoid(gates))
            i_g = act[:, 0:H]
            f_g = act[:, H:2 * H]
            g_g = act[:, 2 * H:3 * H]
            o_g = act[:, 3 * H:4 * H]
            c = f_g * c + i_g * g_g
            h = o_g * jnp.tanh(c)
            if not last_layer:
                # Next layer's input; the last layer only needs its final h.
                seq_ref[row:row + B, :] = h
        h_last = h

    out_ref[...] = h_last


def pure_lstm_forward(x, params):
    """Equivalent of PureLSTM.forward.

    x: [B, C, T, in_dim]; returns [B, hidden] (last layer's hidden state at the
    last timestep).  One fused pallas_call for all layers.
    """
    B, _, T, D = x.shape
    H = params[0]["w_hh"].shape[1]
    num_layers = len(params)

    seq = x[:, 0, :, :]                                   # [B, T, D]  (x[:, 0, :, :])
    x_tm = jnp.transpose(seq, (1, 0, 2))                  # [T, B, D]  time-major
    x_flat = jnp.asarray(x_tm.reshape(T * B, D), jnp.float32)

    weight_args = []
    for p in params:
        weight_args.append(jnp.asarray(p["w_ih"].T, jnp.float32))            # [Din, 4H]
        weight_args.append(jnp.asarray(p["w_hh"].T, jnp.float32))            # [H, 4H]
        weight_args.append(
            jnp.asarray((p["b_ih"] + p["b_hh"]).reshape(1, 4 * H), jnp.float32))

    kernel = functools.partial(
        _fused_lstm_kernel, num_layers=num_layers, seq_len=T, batch=B)

    n_inputs = 1 + 3 * num_layers
    return pl.pallas_call(
        kernel,
        out_shape=jax.ShapeDtypeStruct((B, H), jnp.float32),
        in_specs=[pl.BlockSpec(memory_space=pltpu.MemorySpace.VMEM)
                  for _ in range(n_inputs)],
        out_specs=pl.BlockSpec(memory_space=pltpu.MemorySpace.VMEM),
        scratch_shapes=[
            pltpu.VMEM((T * B, H), jnp.float32),       # inter-layer hidden sequence
            pltpu.VMEM((T * B, 4 * H), jnp.float32),   # hoisted input-projection gates
        ],
    )(x_flat, *weight_args)


def init_params(key, in_dim, hidden, num_layers):
    """Deterministic PyTorch-style init: U(-1/sqrt(H), 1/sqrt(H))."""
    k = 1.0 / jnp.sqrt(jnp.float32(hidden))
    params = []
    for layer in range(num_layers):
        d = in_dim if layer == 0 else hidden
        key, k1, k2, k3, k4 = jax.random.split(key, 5)
        params.append(dict(
            w_ih=jax.random.uniform(k1, (4 * hidden, d), jnp.float32, -k, k),
            w_hh=jax.random.uniform(k2, (4 * hidden, hidden), jnp.float32, -k, k),
            b_ih=jax.random.uniform(k3, (4 * hidden,), jnp.float32, -k, k),
            b_hh=jax.random.uniform(k4, (4 * hidden,), jnp.float32, -k, k),
        ))
    return params


def _lstm_layer_ref(x_tm, w_ih, w_hh, b_ih, b_hh):
    """Pure-JAX reference for one layer (sanity check)."""
    H = w_hh.shape[1]

    def step(carry, x_t):
        h, c = carry
        gates = x_t @ w_ih.T + h @ w_hh.T + b_ih + b_hh
        i_g = jax.nn.sigmoid(gates[:, 0:H])
        f_g = jax.nn.sigmoid(gates[:, H:2 * H])
        g_g = jnp.tanh(gates[:, 2 * H:3 * H])
        o_g = jax.nn.sigmoid(gates[:, 3 * H:4 * H])
        c_new = f_g * c + i_g * g_g
        h_new = o_g * jnp.tanh(c_new)
        return (h_new, c_new), h_new

    B = x_tm.shape[1]
    init = (jnp.zeros((B, H), jnp.float32), jnp.zeros((B, H), jnp.float32))
    _, hs = lax.scan(step, init, x_tm)
    return hs


def pure_lstm_ref(x, params):
    h = jnp.transpose(x[:, 0, :, :], (1, 0, 2))
    for p in params:
        h = _lstm_layer_ref(h, p["w_ih"], p["w_hh"], p["b_ih"], p["b_hh"])
    return h[-1]


if __name__ == "__main__":
    B, C, T, IN_DIM, HIDDEN, NUM_LAYERS = 2, 4, 16, 16, 32, 2

    key = jax.random.PRNGKey(0)
    key, xk = jax.random.split(key)
    x = jax.random.normal(xk, (B, C, T, IN_DIM), jnp.float32)
    params = init_params(key, IN_DIM, HIDDEN, NUM_LAYERS)

    out = pure_lstm_forward(x, params)
    out = jax.block_until_ready(out)
    assert out.shape == (B, HIDDEN), out.shape

    ref = jax.block_until_ready(pure_lstm_ref(x, params))
    assert jnp.allclose(out, ref, atol=2e-5, rtol=2e-5), float(
        jnp.max(jnp.abs(out - ref)))

    print("KERNEL_OK")
</pallas_src>

<mosaic_0001>
module attributes {stable_mosaic.version = 11 : i64} {
  func.func @_fused_lstm_kernel(%arg0: memref<32x16xf32, #tpu.memory_space<vmem>>, %arg1: memref<16x128xf32, #tpu.memory_space<vmem>>, %arg2: memref<32x128xf32, #tpu.memory_space<vmem>>, %arg3: memref<1x128xf32, #tpu.memory_space<vmem>>, %arg4: memref<32x128xf32, #tpu.memory_space<vmem>>, %arg5: memref<32x128xf32, #tpu.memory_space<vmem>>, %arg6: memref<1x128xf32, #tpu.memory_space<vmem>>, %arg7: memref<2x32xf32, #tpu.memory_space<vmem>>, %arg8: memref<32x32xf32, #tpu.memory_space<vmem>>, %arg9: memref<32x128xf32, #tpu.memory_space<vmem>>) attributes {dimension_semantics = [], scalar_prefetch = 0 : i64, scratch_operands = 2 : i64, tpu.core_type = #tpu.core_type<tc>} {
    %0 = tpu.iota {dimensions = array<i32: 1>} : vector<2x128xi32>
    %c64_i32 = arith.constant 64 : i32
    %1 = vector.broadcast %c64_i32 : i32 to vector<2x128xi32>
    %2 = arith.cmpi sge, %0, %1 : vector<2x128xi32>
    %c96_i32 = arith.constant 96 : i32
    %3 = vector.broadcast %c96_i32 : i32 to vector<2x128xi32>
    %4 = arith.cmpi slt, %0, %3 : vector<2x128xi32>
    %5 = arith.andi %2, %4 : vector<2x128xi1>
    %c0 = arith.constant 0 : index
    %c0_0 = arith.constant 0 : index
    %6 = vector.load %arg1[%c0, %c0_0] : memref<16x128xf32, #tpu.memory_space<vmem>>, vector<16x128xf32>
    %c0_1 = arith.constant 0 : index
    %c0_2 = arith.constant 0 : index
    %7 = vector.load %arg2[%c0_1, %c0_2] : memref<32x128xf32, #tpu.memory_space<vmem>>, vector<32x128xf32>
    %c0_3 = arith.constant 0 : index
    %c0_4 = arith.constant 0 : index
    %8 = vector.load %arg3[%c0_3, %c0_4] : memref<1x128xf32, #tpu.memory_space<vmem>>, vector<1x128xf32>
    %c0_5 = arith.constant 0 : index
    %c0_6 = arith.constant 0 : index
    %9 = vector.load %arg0[%c0_5, %c0_6] : memref<32x16xf32, #tpu.memory_space<vmem>>, vector<32x16xf32>
    %cst = arith.constant dense<0.000000e+00> : vector<32x128xf32>
    %10 = tpu.matmul %9, %6, %cst {dimension_numbers = #tpu.dot_dimension_numbers<[1], [0], [0], [1], [0, 0, 1, 1], [], []>} : vector<32x16xf32>, vector<16x128xf32>, vector<32x128xf32> -> vector<32x128xf32>
    %11 = vector.broadcast %8 : vector<1x128xf32> to vector<32x128xf32>
    %12 = arith.addf %10, %11 : vector<32x128xf32>
    %c0_7 = arith.constant 0 : index
    %c0_8 = arith.constant 0 : index
    %13 = vector.load %arg9[%c0_7, %c0_8] : memref<32x128xf32, #tpu.memory_space<vmem>>, vector<32x128xf32>
    tpu.vector_store %arg9[%c0_7, %c0_8], %12 {strides = array<i32>} : memref<32x128xf32, #tpu.memory_space<vmem>>, vector<32x128xf32>,
    %cst_9 = arith.constant 0.000000e+00 : f32
    %14 = vector.broadcast %cst_9 : f32 to vector<2x32xf32>
    %cst_10 = arith.constant 0.000000e+00 : f32
    %15 = vector.broadcast %cst_10 : f32 to vector<2x32xf32>
    %c0_11 = arith.constant 0 : index
    %c0_12 = arith.constant 0 : index
    %16 = vector.load %arg9[%c0_11, %c0_12] : memref<32x128xf32, #tpu.memory_space<vmem>>, vector<2x128xf32>
    %cst_13 = arith.constant dense<0.000000e+00> : vector<2x128xf32>
    %17 = tpu.matmul %14, %7, %cst_13 {dimension_numbers = #tpu.dot_dimension_numbers<[1], [0], [0], [1], [0, 0, 1, 1], [], []>} : vector<2x32xf32>, vector<32x128xf32>, vector<2x128xf32> -> vector<2x128xf32>
    %18 = arith.addf %16, %17 : vector<2x128xf32>
    %19 = math.tanh %18 : vector<2x128xf32>
    %20 = arith.negf %18 : vector<2x128xf32>
    %21 = math.exp %20 : vector<2x128xf32>
    %cst_14 = arith.constant 1.000000e+00 : f32
    %22 = vector.broadcast %cst_14 : f32 to vector<2x128xf32>
    %23 = arith.addf %22, %21 : vector<2x128xf32>
    %24 = arith.divf %22, %23 : vector<2x128xf32>
    %25 = arith.select %5, %19, %24 : vector<2x128xi1>, vector<2x128xf32>
    %26 = vector.extract_strided_slice %25 {offsets = [0, 0], sizes = [2, 32], strides = [1, 1]} : vector<2x128xf32> to vector<2x32xf32>
    %27 = vector.extract_strided_slice %25 {offsets = [0, 32], sizes = [2, 32], strides = [1, 1]} : vector<2x128xf32> to vector<2x32xf32>
    %28 = vector.extract_strided_slice %25 {offsets = [0, 64], sizes = [2, 32], strides = [1, 1]} : vector<2x128xf32> to vector<2x32xf32>
    %29 = vector.extract_strided_slice %25 {offsets = [0, 96], sizes = [2, 32], strides = [1, 1]} : vector<2x128xf32> to vector<2x32xf32>
    %30 = arith.mulf %27, %15 : vector<2x32xf32>
    %31 = arith.mulf %26, %28 : vector<2x32xf32>
    %32 = arith.addf %30, %31 : vector<2x32xf32>
    %33 = math.tanh %32 : vector<2x32xf32>
    %34 = arith.mulf %29, %33 : vector<2x32xf32>
    %c0_15 = arith.constant 0 : index
    %c0_16 = arith.constant 0 : index
    %35 = vector.load %arg8[%c0_15, %c0_16] : memref<32x32xf32, #tpu.memory_space<vmem>>, vector<2x32xf32>
    tpu.vector_store %arg8[%c0_15, %c0_16], %34 {strides = array<i32>} : memref<32x32xf32, #tpu.memory_space<vmem>>, vector<2x32xf32>,
    %c2 = arith.constant 2 : index
    %c0_17 = arith.constant 0 : index
    %36 = vector.load %arg9[%c2, %c0_17] : memref<32x128xf32, #tpu.memory_space<vmem>>, vector<2x128xf32>
    %cst_18 = arith.constant dense<0.000000e+00> : vector<2x128xf32>
    %37 = tpu.matmul %34, %7, %cst_18 {dimension_numbers = #tpu.dot_dimension_numbers<[1], [0], [0], [1], [0, 0, 1, 1], [], []>} : vector<2x32xf32>, vector<32x128xf32>, vector<2x128xf32> -> vector<2x128xf32>
    %38 = arith.addf %36, %37 : vector<2x128xf32>
    %39 = math.tanh %38 : vector<2x128xf32>
    %40 = arith.negf %38 : vector<2x128xf32>
    %41 = math.exp %40 : vector<2x128xf32>
    %cst_19 = arith.constant 1.000000e+00 : f32
    %42 = vector.broadcast %cst_19 : f32 to vector<2x128xf32>
    %43 = arith.addf %42, %41 : vector<2x128xf32>
    %44 = arith.divf %42, %43 : vector<2x128xf32>
    %45 = arith.select %5, %39, %44 : vector<2x128xi1>, vector<2x128xf32>
    %46 = vector.extract_strided_slice %45 {offsets = [0, 0], sizes = [2, 32], strides = [1, 1]} : vector<2x128xf32> to vector<2x32xf32>
    %47 = vector.extract_strided_slice %45 {offsets = [0, 32], sizes = [2, 32], strides = [1, 1]} : vector<2x128xf32> to vector<2x32xf32>
    %48 = vector.extract_strided_slice %45 {offsets = [0, 64], sizes = [2, 32], strides = [1, 1]} : vector<2x128xf32> to vector<2x32xf32>
    %49 = vector.extract_strided_slice %45 {offsets = [0, 96], sizes = [2, 32], strides = [1, 1]} : vector<2x128xf32> to vector<2x32xf32>
    %50 = arith.mulf %47, %32 : vector<2x32xf32>
    %51 = arith.mulf %46, %48 : vector<2x32xf32>
    %52 = arith.addf %50, %51 : vector<2x32xf32>
    %53 = math.tanh %52 : vector<2x32xf32>
    %54 = arith.mulf %49, %53 : vector<2x32xf32>
    %c2_20 = arith.constant 2 : index
    %c0_21 = arith.constant 0 : index
    %55 = vector.load %arg8[%c2_20, %c0_21] : memref<32x32xf32, #tpu.memory_space<vmem>>, vector<2x32xf32>
    tpu.vector_store %arg8[%c2_20, %c0_21], %54 {strides = array<i32>} : memref<32x32xf32, #tpu.memory_space<vmem>>, vector<2x32xf32>,
    %c4 = arith.constant 4 : index
    %c0_22 = arith.constant 0 : index
    %56 = vector.load %arg9[%c4, %c0_22] : memref<32x128xf32, #tpu.memory_space<vmem>>, vector<2x128xf32>
    %cst_23 = arith.constant dense<0.000000e+00> : vector<2x128xf32>
    %57 = tpu.matmul %54, %7, %cst_23 {dimension_numbers = #tpu.dot_dimension_numbers<[1], [0], [0], [1], [0, 0, 1, 1], [], []>} : vector<2x32xf32>, vector<32x128xf32>, vector<2x128xf32> -> vector<2x128xf32>
    %58 = arith.addf %56, %57 : vector<2x128xf32>
    %59 = math.tanh %58 : vector<2x128xf32>
    %60 = arith.negf %58 : vector<2x128xf32>
    %61 = math.exp %60 : vector<2x128xf32>
    %cst_24 = arith.constant 1.000000e+00 : f32
    %62 = vector.broadcast %cst_24 : f32 to vector<2x128xf32>
    %63 = arith.addf %62, %61 : vector<2x128xf32>
    %64 = arith.divf %62, %63 : vector<2x128xf32>
    %65 = arith.select %5, %59, %64 : vector<2x128xi1>, vector<2x128xf32>
    %66 = vector.extract_strided_slice %65 {offsets = [0, 0], sizes = [2, 32], strides = [1, 1]} : vector<2x128xf32> to vector<2x32xf32>
    %67 = vector.extract_strided_slice %65 {offsets = [0, 32], sizes = [2, 32], strides = [1, 1]} : vector<2x128xf32> to vector<2x32xf32>
    %68 = vector.extract_strided_slice %65 {offsets = [0, 64], sizes = [2, 32], strides = [1, 1]} : vector<2x128xf32> to vector<2x32xf32>
    %69 = vector.extract_strided_slice %65 {offsets = [0, 96], sizes = [2, 32], strides = [1, 1]} : vector<2x128xf32> to vector<2x32xf32>
    %70 = arith.mulf %67, %52 : vector<2x32xf32>
    %71 = arith.mulf %66, %68 : vector<2x32xf32>
    %72 = arith.addf %70, %71 : vector<2x32xf32>
    %73 = math.tanh %72 : vector<2x32xf32>
    %74 = arith.mulf %69, %73 : vector<2x32xf32>
    %c4_25 = arith.constant 4 : index
    %c0_26 = arith.constant 0 : index
    %75 = vector.load %arg8[%c4_25, %c0_26] : memref<32x32xf32, #tpu.memory_space<vmem>>, vector<2x32xf32>
    tpu.vector_store %arg8[%c4_25, %c0_26], %74 {strides = array<i32>} : memref<32x32xf32, #tpu.memory_space<vmem>>, vector<2x32xf32>,
    %c6 = arith.constant 6 : index
    %c0_27 = arith.constant 0 : index
    %76 = vector.load %arg9[%c6, %c0_27] : memref<32x128xf32, #tpu.memory_space<vmem>>, vector<2x128xf32>
    %cst_28 = arith.constant dense<0.000000e+00> : vector<2x128xf32>
    %77 = tpu.matmul %74, %7, %cst_28 {dimension_numbers = #tpu.dot_dimension_numbers<[1], [0], [0], [1], [0, 0, 1, 1], [], []>} : vector<2x32xf32>, vector<32x128xf32>, vector<2x128xf32> -> vector<2x128xf32>
    %78 = arith.addf %76, %77 : vector<2x128xf32>
    %79 = math.tanh %78 : vector<2x128xf32>
    %80 = arith.negf %78 : vector<2x128xf32>
    %81 = math.exp %80 : vector<2x128xf32>
    %cst_29 = arith.constant 1.000000e+00 : f32
    %82 = vector.broadcast %cst_29 : f32 to vector<2x128xf32>
    %83 = arith.addf %82, %81 : vector<2x128xf32>
    %84 = arith.divf %82, %83 : vector<2x128xf32>
    %85 = arith.select %5, %79, %84 : vector<2x128xi1>, vector<2x128xf32>
    %86 = vector.extract_strided_slice %85 {offsets = [0, 0], sizes = [2, 32], strides = [1, 1]} : vector<2x128xf32> to vector<2x32xf32>
    %87 = vector.extract_strided_slice %85 {offsets = [0, 32], sizes = [2, 32], strides = [1, 1]} : vector<2x128xf32> to vector<2x32xf32>
    %88 = vector.extract_strided_slice %85 {offsets = [0, 64], sizes = [2, 32], strides = [1, 1]} : vector<2x128xf32> to vector<2x32xf32>
    %89 = vector.extract_strided_slice %85 {offsets = [0, 96], sizes = [2, 32], strides = [1, 1]} : vector<2x128xf32> to vector<2x32xf32>
    %90 = arith.mulf %87, %72 : vector<2x32xf32>
    %91 = arith.mulf %86, %88 : vector<2x32xf32>
    %92 = arith.addf %90, %91 : vector<2x32xf32>
    %93 = math.tanh %92 : vector<2x32xf32>
    %94 = arith.mulf %89, %93 : vector<2x32xf32>
    %c6_30 = arith.constant 6 : index
    %c0_31 = arith.constant 0 : index
    %95 = vector.load %arg8[%c6_30, %c0_31] : memref<32x32xf32, #tpu.memory_space<vmem>>, vector<2x32xf32>
    tpu.vector_store %arg8[%c6_30, %c0_31], %94 {strides = array<i32>} : memref<32x32xf32, #tpu.memory_space<vmem>>, vector<2x32xf32>,
    %c8 = arith.constant 8 : index
    %c0_32 = arith.constant 0 : index
    %96 = vector.load %arg9[%c8, %c0_32] : memref<32x128xf32, #tpu.memory_space<vmem>>, vector<2x128xf32>
    %cst_33 = arith.constant dense<0.000000e+00> : vector<2x128xf32>
    %97 = tpu.matmul %94, %7, %cst_33 {dimension_numbers = #tpu.dot_dimension_numbers<[1], [0], [0], [1], [0, 0, 1, 1], [], []>} : vector<2x32xf32>, vector<32x128xf32>, vector<2x128xf32> -> vector<2x128xf32>
    %98 = arith.addf %96, %97 : vector<2x128xf32>
    %99 = math.tanh %98 : vector<2x128xf32>
    %100 = arith.negf %98 : vector<2x128xf32>
    %101 = math.exp %100 : vector<2x128xf32>
    %cst_34 = arith.constant 1.000000e+00 : f32
    %102 = vector.broadcast %cst_34 : f32 to vector<2x128xf32>
    %103 = arith.addf %102, %101 : vector<2x128xf32>
    %104 = arith.divf %102, %103 : vector<2x128xf32>
    %105 = arith.select %5, %99, %104 : vector<2x128xi1>, vector<2x128xf32>
    %106 = vector.extract_strided_slice %105 {offsets = [0, 0], sizes = [2, 32], strides = [1, 1]} : vector<2x128xf32> to vector<2x32xf32>
    %107 = vector.extract_strided_slice %105 {offsets = [0, 32], sizes = [2, 32], strides = [1, 1]} : vector<2x128xf32> to vector<2x32xf32>
    %108 = vector.extract_strided_slice %105 {offsets = [0, 64], sizes = [2, 32], strides = [1, 1]} : vector<2x128xf32> to vector<2x32xf32>
    %109 = vector.extract_strided_slice %105 {offsets = [0, 96], sizes = [2, 32], strides = [1, 1]} : vector<2x128xf32> to vector<2x32xf32>
    %110 = arith.mulf %107, %92 : vector<2x32xf32>
    %111 = arith.mulf %106, %108 : vector<2x32xf32>
    %112 = arith.addf %110, %111 : vector<2x32xf32>
    %113 = math.tanh %112 : vector<2x32xf32>
    %114 = arith.mulf %109, %113 : vector<2x32xf32>
    %c8_35 = arith.constant 8 : index
    %c0_36 = arith.constant 0 : index
    %115 = vector.load %arg8[%c8_35, %c0_36] : memref<32x32xf32, #tpu.memory_space<vmem>>, vector<2x32xf32>
    tpu.vector_store %arg8[%c8_35, %c0_36], %114 {strides = array<i32>} : memref<32x32xf32, #tpu.memory_space<vmem>>, vector<2x32xf32>,
    %c10 = arith.constant 10 : index
    %c0_37 = arith.constant 0 : index
    %116 = vector.load %arg9[%c10, %c0_37] : memref<32x128xf32, #tpu.memory_space<vmem>>, vector<2x128xf32>
    %cst_38 = arith.constant dense<0.000000e+00> : vector<2x128xf32>
    %117 = tpu.matmul %114, %7, %cst_38 {dimension_numbers = #tpu.dot_dimension_numbers<[1], [0], [0], [1], [0, 0, 1, 1], [], []>} : vector<2x32xf32>, vector<32x128xf32>, vector<2x128xf32> -> vector<2x128xf32>
    %118 = arith.addf %116, %117 : vector<2x128xf32>
    %119 = math.tanh %118 : vector<2x128xf32>
    %120 = arith.negf %118 : vector<2x128xf32>
    %121 = math.exp %120 : vector<2x128xf32>
    %cst_39 = arith.constant 1.000000e+00 : f32
    %122 = vector.broadcast %cst_39 : f32 to vector<2x128xf32>
    %123 = arith.addf %122, %121 : vector<2x128xf32>
    %124 = arith.divf %122, %123 : vector<2x128xf32>
    %125 = arith.select %5, %119, %124 : vector<2x128xi1>, vector<2x128xf32>
    %126 = vector.extract_strided_slice %125 {offsets = [0, 0], sizes = [2, 32], strides = [1, 1]} : vector<2x128xf32> to vector<2x32xf32>
    %127 = vector.extract_strided_slice %125 {offsets = [0, 32], sizes = [2, 32], strides = [1, 1]} : vector<2x128xf32> to vector<2x32xf32>
    %128 = vector.extract_strided_slice %125 {offsets = [0, 64], sizes = [2, 32], strides = [1, 1]} : vector<2x128xf32> to vector<2x32xf32>
    %129 = vector.extract_strided_slice %125 {offsets = [0, 96], sizes = [2, 32], strides = [1, 1]} : vector<2x128xf32> to vector<2x32xf32>
    %130 = arith.mulf %127, %112 : vector<2x32xf32>
    %131 = arith.mulf %126, %128 : vector<2x32xf32>
    %132 = arith.addf %130, %131 : vector<2x32xf32>
    %133 = math.tanh %132 : vector<2x32xf32>
    %134 = arith.mulf %129, %133 : vector<2x32xf32>
    %c10_40 = arith.constant 10 : index
    %c0_41 = arith.constant 0 : index
    %135 = vector.load %arg8[%c10_40, %c0_41] : memref<32x32xf32, #tpu.memory_space<vmem>>, vector<2x32xf32>
    tpu.vector_store %arg8[%c10_40, %c0_41], %134 {strides = array<i32>} : memref<32x32xf32, #tpu.memory_space<vmem>>, vector<2x32xf32>,
    %c12 = arith.constant 12 : index
    %c0_42 = arith.constant 0 : index
    %136 = vector.load %arg9[%c12, %c0_42] : memref<32x128xf32, #tpu.memory_space<vmem>>, vector<2x128xf32>
    %cst_43 = arith.constant dense<0.000000e+00> : vector<2x128xf32>
    %137 = tpu.matmul %134, %7, %cst_43 {dimension_numbers = #tpu.dot_dimension_numbers<[1], [0], [0], [1], [0, 0, 1, 1], [], []>} : vector<2x32xf32>, vector<32x128xf32>, vector<2x128xf32> -> vector<2x128xf32>
    %138 = arith.addf %136, %137 : vector<2x128xf32>
    %139 = math.tanh %138 : vector<2x128xf32>
    %140 = arith.negf %138 : vector<2x128xf32>
    %141 = math.exp %140 : vector<2x128xf32>
    %cst_44 = arith.constant 1.000000e+00 : f32
    %142 = vector.broadcast %cst_44 : f32 to vector<2x128xf32>
    %143 = arith.addf %142, %141 : vector<2x128xf32>
    %144 = arith.divf %142, %143 : vector<2x128xf32>
    %145 = arith.select %5, %139, %144 : vector<2x128xi1>, vector<2x128xf32>
    %146 = vector.extract_strided_slice %145 {offsets = [0, 0], sizes = [2, 32], strides = [1, 1]} : vector<2x128xf32> to vector<2x32xf32>
    %147 = vector.extract_strided_slice %145 {offsets = [0, 32], sizes = [2, 32], strides = [1, 1]} : vector<2x128xf32> to vector<2x32xf32>
    %148 = vector.extract_strided_slice %145 {offsets = [0, 64], sizes = [2, 32], strides = [1, 1]} : vector<2x128xf32> to vector<2x32xf32>
    %149 = vector.extract_strided_slice %145 {offsets = [0, 96], sizes = [2, 32], strides = [1, 1]} : vector<2x128xf32> to vector<2x32xf32>
    %150 = arith.mulf %147, %132 : vector<2x32xf32>
    %151 = arith.mulf %146, %148 : vector<2x32xf32>
    %152 = arith.addf %150, %151 : vector<2x32xf32>
    %153 = math.tanh %152 : vector<2x32xf32>
    %154 = arith.mulf %149, %153 : vector<2x32xf32>
    %c12_45 = arith.constant 12 : index
    %c0_46 = arith.constant 0 : index
    %155 = vector.load %arg8[%c12_45, %c0_46] : memref<32x32xf32, #tpu.memory_space<vmem>>, vector<2x32xf32>
    tpu.vector_store %arg8[%c12_45, %c0_46], %154 {strides = array<i32>} : memref<32x32xf32, #tpu.memory_space<vmem>>, vector<2x32xf32>,
    %c14 = arith.constant 14 : index
    %c0_47 = arith.constant 0 : index
    %156 = vector.load %arg9[%c14, %c0_47] : memref<32x128xf32, #tpu.memory_space<vmem>>, vector<2x128xf32>
    %cst_48 = arith.constant dense<0.000000e+00> : vector<2x128xf32>
    %157 = tpu.matmul %154, %7, %cst_48 {dimension_numbers = #tpu.dot_dimension_numbers<[1], [0], [0], [1], [0, 0, 1, 1], [], []>} : vector<2x32xf32>, vector<32x128xf32>, vector<2x128xf32> -> vector<2x128xf32>
    %158 = arith.addf %156, %157 : vector<2x128xf32>
    %159 = math.tanh %158 : vector<2x128xf32>
    %160 = arith.negf %158 : vector<2x128xf32>
    %161 = math.exp %160 : vector<2x128xf32>
    %cst_49 = arith.constant 1.000000e+00 : f32
    %162 = vector.broadcast %cst_49 : f32 to vector<2x128xf32>
    %163 = arith.addf %162, %161 : vector<2x128xf32>
    %164 = arith.divf %162, %163 : vector<2x128xf32>
    %165 = arith.select %5, %159, %164 : vector<2x128xi1>, vector<2x128xf32>
    %166 = vector.extract_strided_slice %165 {offsets = [0, 0], sizes = [2, 32], strides = [1, 1]} : vector<2x128xf32> to vector<2x32xf32>
    %167 = vector.extract_strided_slice %165 {offsets = [0, 32], sizes = [2, 32], strides = [1, 1]} : vector<2x128xf32> to vector<2x32xf32>
    %168 = vector.extract_strided_slice %165 {offsets = [0, 64], sizes = [2, 32], strides = [1, 1]} : vector<2x128xf32> to vector<2x32xf32>
    %169 = vector.extract_strided_slice %165 {offsets = [0, 96], sizes = [2, 32], strides = [1, 1]} : vector<2x128xf32> to vector<2x32xf32>
    %170 = arith.mulf %167, %152 : vector<2x32xf32>
    %171 = arith.mulf %166, %168 : vector<2x32xf32>
    %172 = arith.addf %170, %171 : vector<2x32xf32>
    %173 = math.tanh %172 : vector<2x32xf32>
    %174 = arith.mulf %169, %173 : vector<2x32xf32>
    %c14_50 = arith.constant 14 : index
    %c0_51 = arith.constant 0 : index
    %175 = vector.load %arg8[%c14_50, %c0_51] : memref<32x32xf32, #tpu.memory_space<vmem>>, vector<2x32xf32>
    tpu.vector_store %arg8[%c14_50, %c0_51], %174 {strides = array<i32>} : memref<32x32xf32, #tpu.memory_space<vmem>>, vector<2x32xf32>,
    %c16 = arith.constant 16 : index
    %c0_52 = arith.constant 0 : index
    %176 = vector.load %arg9[%c16, %c0_52] : memref<32x128xf32, #tpu.memory_space<vmem>>, vector<2x128xf32>
    %cst_53 = arith.constant dense<0.000000e+00> : vector<2x128xf32>
    %177 = tpu.matmul %174, %7, %cst_53 {dimension_numbers = #tpu.dot_dimension_numbers<[1], [0], [0], [1], [0, 0, 1, 1], [], []>} : vector<2x32xf32>, vector<32x128xf32>, vector<2x128xf32> -> vector<2x128xf32>
    %178 = arith.addf %176, %177 : vector<2x128xf32>
    %179 = math.tanh %178 : vector<2x128xf32>
    %180 = arith.negf %178 : vector<2x128xf32>
    %181 = math.exp %180 : vector<2x128xf32>
    %cst_54 = arith.constant 1.000000e+00 : f32
    %182 = vector.broadcast %cst_54 : f32 to vector<2x128xf32>
    %183 = arith.addf %182, %181 : vector<2x128xf32>
    %184 = arith.divf %182, %183 : vector<2x128xf32>
    %185 = arith.select %5, %179, %184 : vector<2x128xi1>, vector<2x128xf32>
    %186 = vector.extract_strided_slice %185 {offsets = [0, 0], sizes = [2, 32], strides = [1, 1]} : vector<2x128xf32> to vector<2x32xf32>
    %187 = vector.extract_strided_slice %185 {offsets = [0, 32], sizes = [2, 32], strides = [1, 1]} : vector<2x128xf32> to vector<2x32xf32>
    %188 = vector.extract_strided_slice %185 {offsets = [0, 64], sizes = [2, 32], strides = [1, 1]} : vector<2x128xf32> to vector<2x32xf32>
    %189 = vector.extract_strided_slice %185 {offsets = [0, 96], sizes = [2, 32], strides = [1, 1]} : vector<2x128xf32> to vector<2x32xf32>
    %190 = arith.mulf %187, %172 : vector<2x32xf32>
    %191 = arith.mulf %186, %188 : vector<2x32xf32>
    %192 = arith.addf %190, %191 : vector<2x32xf32>
    %193 = math.tanh %192 : vector<2x32xf32>
    %194 = arith.mulf %189, %193 : vector<2x32xf32>
    %c16_55 = arith.constant 16 : index
    %c0_56 = arith.constant 0 : index
    %195 = vector.load %arg8[%c16_55, %c0_56] : memref<32x32xf32, #tpu.memory_space<vmem>>, vector<2x32xf32>
    tpu.vector_store %arg8[%c16_55, %c0_56], %194 {strides = array<i32>} : memref<32x32xf32, #tpu.memory_space<vmem>>, vector<2x32xf32>,
    %c18 = arith.constant 18 : index
    %c0_57 = arith.constant 0 : index
    %196 = vector.load %arg9[%c18, %c0_57] : memref<32x128xf32, #tpu.memory_space<vmem>>, vector<2x128xf32>
    %cst_58 = arith.constant dense<0.000000e+00> : vector<2x128xf32>
    %197 = tpu.matmul %194, %7, %cst_58 {dimension_numbers = #tpu.dot_dimension_numbers<[1], [0], [0], [1], [0, 0, 1, 1], [], []>} : vector<2x32xf32>, vector<32x128xf32>, vector<2x128xf32> -> vector<2x128xf32>
    %198 = arith.addf %196, %197 : vector<2x128xf32>
    %199 = math.tanh %198 : vector<2x128xf32>
    %200 = arith.negf %198 : vector<2x128xf32>
    %201 = math.exp %200 : vector<2x128xf32>
    %cst_59 = arith.constant 1.000000e+00 : f32
    %202 = vector.broadcast %cst_59 : f32 to vector<2x128xf32>
    %203 = arith.addf %202, %201 : vector<2x128xf32>
    %204 = arith.divf %202, %203 : vector<2x128xf32>
    %205 = arith.select %5, %199, %204 : vector<2x128xi1>, vector<2x128xf32>
    %206 = vector.extract_strided_slice %205 {offsets = [0, 0], sizes = [2, 32], strides = [1, 1]} : vector<2x128xf32> to vector<2x32xf32>
    %207 = vector.extract_strided_slice %205 {offsets = [0, 32], sizes = [2, 32], strides = [1, 1]} : vector<2x128xf32> to vector<2x32xf32>
    %208 = vector.extract_strided_slice %205 {offsets = [0, 64], sizes = [2, 32], strides = [1, 1]} : vector<2x128xf32> to vector<2x32xf32>
    %209 = vector.extract_strided_slice %205 {offsets = [0, 96], sizes = [2, 32], strides = [1, 1]} : vector<2x128xf32> to vector<2x32xf32>
    %210 = arith.mulf %207, %192 : vector<2x32xf32>
    %211 = arith.mulf %206, %208 : vector<2x32xf32>
    %212 = arith.addf %210, %211 : vector<2x32xf32>
    %213 = math.tanh %212 : vector<2x32xf32>
    %214 = arith.mulf %209, %213 : vector<2x32xf32>
    %c18_60 = arith.constant 18 : index
    %c0_61 = arith.constant 0 : index
    %215 = vector.load %arg8[%c18_60, %c0_61] : memref<32x32xf32, #tpu.memory_space<vmem>>, vector<2x32xf32>
    tpu.vector_store %arg8[%c18_60, %c0_61], %214 {strides = array<i32>} : memref<32x32xf32, #tpu.memory_space<vmem>>, vector<2x32xf32>,
    %c20 = arith.constant 20 : index
    %c0_62 = arith.constant 0 : index
    %216 = vector.load %arg9[%c20, %c0_62] : memref<32x128xf32, #tpu.memory_space<vmem>>, vector<2x128xf32>
    %cst_63 = arith.constant dense<0.000000e+00> : vector<2x128xf32>
    %217 = tpu.matmul %214, %7, %cst_63 {dimension_numbers = #tpu.dot_dimension_numbers<[1], [0], [0], [1], [0, 0, 1, 1], [], []>} : vector<2x32xf32>, vector<32x128xf32>, vector<2x128xf32> -> vector<2x128xf32>
    %218 = arith.addf %216, %217 : vector<2x128xf32>
    %219 = math.tanh %218 : vector<2x128xf32>
    %220 = arith.negf %218 : vector<2x128xf32>
    %221 = math.exp %220 : vector<2x128xf32>
    %cst_64 = arith.constant 1.000000e+00 : f32
    %222 = vector.broadcast %cst_64 : f32 to vector<2x128xf32>
    %223 = arith.addf %222, %221 : vector<2x128xf32>
    %224 = arith.divf %222, %223 : vector<2x128xf32>
    %225 = arith.select %5, %219, %224 : vector<2x128xi1>, vector<2x128xf32>
    %226 = vector.extract_strided_slice %225 {offsets = [0, 0], sizes = [2, 32], strides = [1, 1]} : vector<2x128xf32> to vector<2x32xf32>
    %227 = vector.extract_strided_slice %225 {offsets = [0, 32], sizes = [2, 32], strides = [1, 1]} : vector<2x128xf32> to vector<2x32xf32>
    %228 = vector.extract_strided_slice %225 {offsets = [0, 64], sizes = [2, 32], strides = [1, 1]} : vector<2x128xf32> to vector<2x32xf32>
    %229 = vector.extract_strided_slice %225 {offsets = [0, 96], sizes = [2, 32], strides = [1, 1]} : vector<2x128xf32> to vector<2x32xf32>
    %230 = arith.mulf %227, %212 : vector<2x32xf32>
    %231 = arith.mulf %226, %228 : vector<2x32xf32>
    %232 = arith.addf %230, %231 : vector<2x32xf32>
    %233 = math.tanh %232 : vector<2x32xf32>
    %234 = arith.mulf %229, %233 : vector<2x32xf32>
    %c20_65 = arith.constant 20 : index
    %c0_66 = arith.constant 0 : index
    %235 = vector.load %arg8[%c20_65, %c0_66] : memref<32x32xf32, #tpu.memory_space<vmem>>, vector<2x32xf32>
    tpu.vector_store %arg8[%c20_65, %c0_66], %234 {strides = array<i32>} : memref<32x32xf32, #tpu.memory_space<vmem>>, vector<2x32xf32>,
    %c22 = arith.constant 22 : index
    %c0_67 = arith.constant 0 : index
    %236 = vector.load %arg9[%c22, %c0_67] : memref<32x128xf32, #tpu.memory_space<vmem>>, vector<2x128xf32>
    %cst_68 = arith.constant dense<0.000000e+00> : vector<2x128xf32>
    %237 = tpu.matmul %234, %7, %cst_68 {dimension_numbers = #tpu.dot_dimension_numbers<[1], [0], [0], [1], [0, 0, 1, 1], [], []>} : vector<2x32xf32>, vector<32x128xf32>, vector<2x128xf32> -> vector<2x128xf32>
    %238 = arith.addf %236, %237 : vector<2x128xf32>
    %239 = math.tanh %238 : vector<2x128xf32>
    %240 = arith.negf %238 : vector<2x128xf32>
    %241 = math.exp %240 : vector<2x128xf32>
    %cst_69 = arith.constant 1.000000e+00 : f32
    %242 = vector.broadcast %cst_69 : f32 to vector<2x128xf32>
    %243 = arith.addf %242, %241 : vector<2x128xf32>
    %244 = arith.divf %242, %243 : vector<2x128xf32>
    %245 = arith.select %5, %239, %244 : vector<2x128xi1>, vector<2x128xf32>
    %246 = vector.extract_strided_slice %245 {offsets = [0, 0], sizes = [2, 32], strides = [1, 1]} : vector<2x128xf32> to vector<2x32xf32>
    %247 = vector.extract_strided_slice %245 {offsets = [0, 32], sizes = [2, 32], strides = [1, 1]} : vector<2x128xf32> to vector<2x32xf32>
    %248 = vector.extract_strided_slice %245 {offsets = [0, 64], sizes = [2, 32], strides = [1, 1]} : vector<2x128xf32> to vector<2x32xf32>
    %249 = vector.extract_strided_slice %245 {offsets = [0, 96], sizes = [2, 32], strides = [1, 1]} : vector<2x128xf32> to vector<2x32xf32>
    %250 = arith.mulf %247, %232 : vector<2x32xf32>
    %251 = arith.mulf %246, %248 : vector<2x32xf32>
    %252 = arith.addf %250, %251 : vector<2x32xf32>
    %253 = math.tanh %252 : vector<2x32xf32>
    %254 = arith.mulf %249, %253 : vector<2x32xf32>
    %c22_70 = arith.constant 22 : index
    %c0_71 = arith.constant 0 : index
    %255 = vector.load %arg8[%c22_70, %c0_71] : memref<32x32xf32, #tpu.memory_space<vmem>>, vector<2x32xf32>
    tpu.vector_store %arg8[%c22_70, %c0_71], %254 {strides = array<i32>} : memref<32x32xf32, #tpu.memory_space<vmem>>, vector<2x32xf32>,
    %c24 = arith.constant 24 : index
    %c0_72 = arith.constant 0 : index
    %256 = vector.load %arg9[%c24, %c0_72] : memref<32x128xf32, #tpu.memory_space<vmem>>, vector<2x128xf32>
    %cst_73 = arith.constant dense<0.000000e+00> : vector<2x128xf32>
    %257 = tpu.matmul %254, %7, %cst_73 {dimension_numbers = #tpu.dot_dimension_numbers<[1], [0], [0], [1], [0, 0, 1, 1], [], []>} : vector<2x32xf32>, vector<32x128xf32>, vector<2x128xf32> -> vector<2x128xf32>
    %258 = arith.addf %256, %257 : vector<2x128xf32>
    %259 = math.tanh %258 : vector<2x128xf32>
    %260 = arith.negf %258 : vector<2x128xf32>
    %261 = math.exp %260 : vector<2x128xf32>
    %cst_74 = arith.constant 1.000000e+00 : f32
    %262 = vector.broadcast %cst_74 : f32 to vector<2x128xf32>
    %263 = arith.addf %262, %261 : vector<2x128xf32>
    %264 = arith.divf %262, %263 : vector<2x128xf32>
    %265 = arith.select %5, %259, %264 : vector<2x128xi1>, vector<2x128xf32>
    %266 = vector.extract_strided_slice %265 {offsets = [0, 0], sizes = [2, 32], strides = [1, 1]} : vector<2x128xf32> to vector<2x32xf32>
    %267 = vector.extract_strided_slice %265 {offsets = [0, 32], sizes = [2, 32], strides = [1, 1]} : vector<2x128xf32> to vector<2x32xf32>
    %268 = vector.extract_strided_slice %265 {offsets = [0, 64], sizes = [2, 32], strides = [1, 1]} : vector<2x128xf32> to vector<2x32xf32>
    %269 = vector.extract_strided_slice %265 {offsets = [0, 96], sizes = [2, 32], strides = [1, 1]} : vector<2x128xf32> to vector<2x32xf32>
    %270 = arith.mulf %267, %252 : vector<2x32xf32>
    %271 = arith.mulf %266, %268 : vector<2x32xf32>
    %272 = arith.addf %270, %271 : vector<2x32xf32>
    %273 = math.tanh %272 : vector<2x32xf32>
    %274 = arith.mulf %269, %273 : vector<2x32xf32>
    %c24_75 = arith.constant 24 : index
    %c0_76 = arith.constant 0 : index
    %275 = vector.load %arg8[%c24_75, %c0_76] : memref<32x32xf32, #tpu.memory_space<vmem>>, vector<2x32xf32>
    tpu.vector_store %arg8[%c24_75, %c0_76], %274 {strides = array<i32>} : memref<32x32xf32, #tpu.memory_space<vmem>>, vector<2x32xf32>,
    %c26 = arith.constant 26 : index
    %c0_77 = arith.constant 0 : index
    %276 = vector.load %arg9[%c26, %c0_77] : memref<32x128xf32, #tpu.memory_space<vmem>>, vector<2x128xf32>
    %cst_78 = arith.constant dense<0.000000e+00> : vector<2x128xf32>
    %277 = tpu.matmul %274, %7, %cst_78 {dimension_numbers = #tpu.dot_dimension_numbers<[1], [0], [0], [1], [0, 0, 1, 1], [], []>} : vector<2x32xf32>, vector<32x128xf32>, vector<2x128xf32> -> vector<2x128xf32>
    %278 = arith.addf %276, %277 : vector<2x128xf32>
    %279 = math.tanh %278 : vector<2x128xf32>
    %280 = arith.negf %278 : vector<2x128xf32>
    %281 = math.exp %280 : vector<2x128xf32>
    %cst_79 = arith.constant 1.000000e+00 : f32
    %282 = vector.broadcast %cst_79 : f32 to vector<2x128xf32>
    %283 = arith.addf %282, %281 : vector<2x128xf32>
    %284 = arith.divf %282, %283 : vector<2x128xf32>
    %285 = arith.select %5, %279, %284 : vector<2x128xi1>, vector<2x128xf32>
    %286 = vector.extract_strided_slice %285 {offsets = [0, 0], sizes = [2, 32], strides = [1, 1]} : vector<2x128xf32> to vector<2x32xf32>
    %287 = vector.extract_strided_slice %285 {offsets = [0, 32], sizes = [2, 32], strides = [1, 1]} : vector<2x128xf32> to vector<2x32xf32>
    %288 = vector.extract_strided_slice %285 {offsets = [0, 64], sizes = [2, 32], strides = [1, 1]} : vector<2x128xf32> to vector<2x32xf32>
    %289 = vector.extract_strided_slice %285 {offsets = [0, 96], sizes = [2, 32], strides = [1, 1]} : vector<2x128xf32> to vector<2x32xf32>
    %290 = arith.mulf %287, %272 : vector<2x32xf32>
    %291 = arith.mulf %286, %288 : vector<2x32xf32>
    %292 = arith.addf %290, %291 : vector<2x32xf32>
    %293 = math.tanh %292 : vector<2x32xf32>
    %294 = arith.mulf %289, %293 : vector<2x32xf32>
    %c26_80 = arith.constant 26 : index
    %c0_81 = arith.constant 0 : index
    %295 = vector.load %arg8[%c26_80, %c0_81] : memref<32x32xf32, #tpu.memory_space<vmem>>, vector<2x32xf32>
    tpu.vector_store %arg8[%c26_80, %c0_81], %294 {strides = array<i32>} : memref<32x32xf32, #tpu.memory_space<vmem>>, vector<2x32xf32>,
    %c28 = arith.constant 28 : index
    %c0_82 = arith.constant 0 : index
    %296 = vector.load %arg9[%c28, %c0_82] : memref<32x128xf32, #tpu.memory_space<vmem>>, vector<2x128xf32>
    %cst_83 = arith.constant dense<0.000000e+00> : vector<2x128xf32>
    %297 = tpu.matmul %294, %7, %cst_83 {dimension_numbers = #tpu.dot_dimension_numbers<[1], [0], [0], [1], [0, 0, 1, 1], [], []>} : vector<2x32xf32>, vector<32x128xf32>, vector<2x128xf32> -> vector<2x128xf32>
    %298 = arith.addf %296, %297 : vector<2x128xf32>
    %299 = math.tanh %298 : vector<2x128xf32>
    %300 = arith.negf %298 : vector<2x128xf32>
    %301 = math.exp %300 : vector<2x128xf32>
    %cst_84 = arith.constant 1.000000e+00 : f32
    %302 = vector.broadcast %cst_84 : f32 to vector<2x128xf32>
    %303 = arith.addf %302, %301 : vector<2x128xf32>
    %304 = arith.divf %302, %303 : vector<2x128xf32>
    %305 = arith.select %5, %299, %304 : vector<2x128xi1>, vector<2x128xf32>
    %306 = vector.extract_strided_slice %305 {offsets = [0, 0], sizes = [2, 32], strides = [1, 1]} : vector<2x128xf32> to vector<2x32xf32>
    %307 = vector.extract_strided_slice %305 {offsets = [0, 32], sizes = [2, 32], strides = [1, 1]} : vector<2x128xf32> to vector<2x32xf32>
    %308 = vector.extract_strided_slice %305 {offsets = [0, 64], sizes = [2, 32], strides = [1, 1]} : vector<2x128xf32> to vector<2x32xf32>
    %309 = vector.extract_strided_slice %305 {offsets = [0, 96], sizes = [2, 32], strides = [1, 1]} : vector<2x128xf32> to vector<2x32xf32>
    %310 = arith.mulf %307, %292 : vector<2x32xf32>
    %311 = arith.mulf %306, %308 : vector<2x32xf32>
    %312 = arith.addf %310, %311 : vector<2x32xf32>
    %313 = math.tanh %312 : vector<2x32xf32>
    %314 = arith.mulf %309, %313 : vector<2x32xf32>
    %c28_85 = arith.constant 28 : index
    %c0_86 = arith.constant 0 : index
    %315 = vector.load %arg8[%c28_85, %c0_86] : memref<32x32xf32, #tpu.memory_space<vmem>>, vector<2x32xf32>
    tpu.vector_store %arg8[%c28_85, %c0_86], %314 {strides = array<i32>} : memref<32x32xf32, #tpu.memory_space<vmem>>, vector<2x32xf32>,
    %c30 = arith.constant 30 : index
    %c0_87 = arith.constant 0 : index
    %316 = vector.load %arg9[%c30, %c0_87] : memref<32x128xf32, #tpu.memory_space<vmem>>, vector<2x128xf32>
    %cst_88 = arith.constant dense<0.000000e+00> : vector<2x128xf32>
    %317 = tpu.matmul %314, %7, %cst_88 {dimension_numbers = #tpu.dot_dimension_numbers<[1], [0], [0], [1], [0, 0, 1, 1], [], []>} : vector<2x32xf32>, vector<32x128xf32>, vector<2x128xf32> -> vector<2x128xf32>
    %318 = arith.addf %316, %317 : vector<2x128xf32>
    %319 = math.tanh %318 : vector<2x128xf32>
    %320 = arith.negf %318 : vector<2x128xf32>
    %321 = math.exp %320 : vector<2x128xf32>
    %cst_89 = arith.constant 1.000000e+00 : f32
    %322 = vector.broadcast %cst_89 : f32 to vector<2x128xf32>
    %323 = arith.addf %322, %321 : vector<2x128xf32>
    %324 = arith.divf %322, %323 : vector<2x128xf32>
    %325 = arith.select %5, %319, %324 : vector<2x128xi1>, vector<2x128xf32>
    %326 = vector.extract_strided_slice %325 {offsets = [0, 0], sizes = [2, 32], strides = [1, 1]} : vector<2x128xf32> to vector<2x32xf32>
    %327 = vector.extract_strided_slice %325 {offsets = [0, 32], sizes = [2, 32], strides = [1, 1]} : vector<2x128xf32> to vector<2x32xf32>
    %328 = vector.extract_strided_slice %325 {offsets = [0, 64], sizes = [2, 32], strides = [1, 1]} : vector<2x128xf32> to vector<2x32xf32>
    %329 = vector.extract_strided_slice %325 {offsets = [0, 96], sizes = [2, 32], strides = [1, 1]} : vector<2x128xf32> to vector<2x32xf32>
    %330 = arith.mulf %327, %312 : vector<2x32xf32>
    %331 = arith.mulf %326, %328 : vector<2x32xf32>
    %332 = arith.addf %330, %331 : vector<2x32xf32>
    %333 = math.tanh %332 : vector<2x32xf32>
    %334 = arith.mulf %329, %333 : vector<2x32xf32>
    %c30_90 = arith.constant 30 : index
    %c0_91 = arith.constant 0 : index
    %335 = vector.load %arg8[%c30_90, %c0_91] : memref<32x32xf32, #tpu.memory_space<vmem>>, vector<2x32xf32>
    tpu.vector_store %arg8[%c30_90, %c0_91], %334 {strides = array<i32>} : memref<32x32xf32, #tpu.memory_space<vmem>>, vector<2x32xf32>,
    %c0_92 = arith.constant 0 : index
    %c0_93 = arith.constant 0 : index
    %336 = vector.load %arg4[%c0_92, %c0_93] : memref<32x128xf32, #tpu.memory_space<vmem>>, vector<32x128xf32>
    %c0_94 = arith.constant 0 : index
    %c0_95 = arith.constant 0 : index
    %337 = vector.load %arg5[%c0_94, %c0_95] : memref<32x128xf32, #tpu.memory_space<vmem>>, vector<32x128xf32>
    %c0_96 = arith.constant 0 : index
    %c0_97 = arith.constant 0 : index
    %338 = vector.load %arg6[%c0_96, %c0_97] : memref<1x128xf32, #tpu.memory_space<vmem>>, vector<1x128xf32>
    %c0_98 = arith.constant 0 : index
    %c0_99 = arith.constant 0 : index
    %339 = vector.load %arg8[%c0_98, %c0_99] : memref<32x32xf32, #tpu.memory_space<vmem>>, vector<32x32xf32>
    %cst_100 = arith.constant dense<0.000000e+00> : vector<32x128xf32>
    %340 = tpu.matmul %339, %336, %cst_100 {dimension_numbers = #tpu.dot_dimension_numbers<[1], [0], [0], [1], [0, 0, 1, 1], [], []>} : vector<32x32xf32>, vector<32x128xf32>, vector<32x128xf32> -> vector<32x128xf32>
    %341 = vector.broadcast %338 : vector<1x128xf32> to vector<32x128xf32>
    %342 = arith.addf %340, %341 : vector<32x128xf32>
    %c0_101 = arith.constant 0 : index
    %c0_102 = arith.constant 0 : index
    %343 = vector.load %arg9[%c0_101, %c0_102] : memref<32x128xf32, #tpu.memory_space<vmem>>, vector<32x128xf32>
    tpu.vector_store %arg9[%c0_101, %c0_102], %342 {strides = array<i32>} : memref<32x128xf32, #tpu.memory_space<vmem>>, vector<32x128xf32>,
    %cst_103 = arith.constant 0.000000e+00 : f32
    %344 = vector.broadcast %cst_103 : f32 to vector<2x32xf32>
    %cst_104 = arith.constant 0.000000e+00 : f32
    %345 = vector.broadcast %cst_104 : f32 to vector<2x32xf32>
    %c0_105 = arith.constant 0 : index
    %c0_106 = arith.constant 0 : index
    %346 = vector.load %arg9[%c0_105, %c0_106] : memref<32x128xf32, #tpu.memory_space<vmem>>, vector<2x128xf32>
    %cst_107 = arith.constant dense<0.000000e+00> : vector<2x128xf32>
    %347 = tpu.matmul %344, %337, %cst_107 {dimension_numbers = #tpu.dot_dimension_numbers<[1], [0], [0], [1], [0, 0, 1, 1], [], []>} : vector<2x32xf32>, vector<32x128xf32>, vector<2x128xf32> -> vector<2x128xf32>
    %348 = arith.addf %346, %347 : vector<2x128xf32>
    %349 = math.tanh %348 : vector<2x128xf32>
    %350 = arith.negf %348 : vector<2x128xf32>
    %351 = math.exp %350 : vector<2x128xf32>
    %cst_108 = arith.constant 1.000000e+00 : f32
    %352 = vector.broadcast %cst_108 : f32 to vector<2x128xf32>
    %353 = arith.addf %352, %351 : vector<2x128xf32>
    %354 = arith.divf %352, %353 : vector<2x128xf32>
    %355 = arith.select %5, %349, %354 : vector<2x128xi1>, vector<2x128xf32>
    %356 = vector.extract_strided_slice %355 {offsets = [0, 0], sizes = [2, 32], strides = [1, 1]} : vector<2x128xf32> to vector<2x32xf32>
    %357 = vector.extract_strided_slice %355 {offsets = [0, 32], sizes = [2, 32], strides = [1, 1]} : vector<2x128xf32> to vector<2x32xf32>
    %358 = vector.extract_strided_slice %355 {offsets = [0, 64], sizes = [2, 32], strides = [1, 1]} : vector<2x128xf32> to vector<2x32xf32>
    %359 = vector.extract_strided_slice %355 {offsets = [0, 96], sizes = [2, 32], strides = [1, 1]} : vector<2x128xf32> to vector<2x32xf32>
    %360 = arith.mulf %357, %345 : vector<2x32xf32>
    %361 = arith.mulf %356, %358 : vector<2x32xf32>
    %362 = arith.addf %360, %361 : vector<2x32xf32>
    %363 = math.tanh %362 : vector<2x32xf32>
    %364 = arith.mulf %359, %363 : vector<2x32xf32>
    %c2_109 = arith.constant 2 : index
    %c0_110 = arith.constant 0 : index
    %365 = vector.load %arg9[%c2_109, %c0_110] : memref<32x128xf32, #tpu.memory_space<vmem>>, vector<2x128xf32>
    %cst_111 = arith.constant dense<0.000000e+00> : vector<2x128xf32>
    %366 = tpu.matmul %364, %337, %cst_111 {dimension_numbers = #tpu.dot_dimension_numbers<[1], [0], [0], [1], [0, 0, 1, 1], [], []>} : vector<2x32xf32>, vector<32x128xf32>, vector<2x128xf32> -> vector<2x128xf32>
    %367 = arith.addf %365, %366 : vector<2x128xf32>
    %368 = math.tanh %367 : vector<2x128xf32>
    %369 = arith.negf %367 : vector<2x128xf32>
    %370 = math.exp %369 : vector<2x128xf32>
    %cst_112 = arith.constant 1.000000e+00 : f32
    %371 = vector.broadcast %cst_112 : f32 to vector<2x128xf32>
    %372 = arith.addf %371, %370 : vector<2x128xf32>
    %373 = arith.divf %371, %372 : vector<2x128xf32>
    %374 = arith.select %5, %368, %373 : vector<2x128xi1>, vector<2x128xf32>
    %375 = vector.extract_strided_slice %374 {offsets = [0, 0], sizes = [2, 32], strides = [1, 1]} : vector<2x128xf32> to vector<2x32xf32>
    %376 = vector.extract_strided_slice %374 {offsets = [0, 32], sizes = [2, 32], strides = [1, 1]} : vector<2x128xf32> to vector<2x32xf32>
    %377 = vector.extract_strided_slice %374 {offsets = [0, 64], sizes = [2, 32], strides = [1, 1]} : vector<2x128xf32> to vector<2x32xf32>
    %378 = vector.extract_strided_slice %374 {offsets = [0, 96], sizes = [2, 32], strides = [1, 1]} : vector<2x128xf32> to vector<2x32xf32>
    %379 = arith.mulf %376, %362 : vector<2x32xf32>
    %380 = arith.mulf %375, %377 : vector<2x32xf32>
    %381 = arith.addf %379, %380 : vector<2x32xf32>
    %382 = math.tanh %381 : vector<2x32xf32>
    %383 = arith.mulf %378, %382 : vector<2x32xf32>
    %c4_113 = arith.constant 4 : index
    %c0_114 = arith.constant 0 : index
    %384 = vector.load %arg9[%c4_113, %c0_114] : memref<32x128xf32, #tpu.memory_space<vmem>>, vector<2x128xf32>
    %cst_115 = arith.constant dense<0.000000e+00> : vector<2x128xf32>
    %385 = tpu.matmul %383, %337, %cst_115 {dimension_numbers = #tpu.dot_dimension_numbers<[1], [0], [0], [1], [0, 0, 1, 1], [], []>} : vector<2x32xf32>, vector<32x128xf32>, vector<2x128xf32> -> vector<2x128xf32>
    %386 = arith.addf %384, %385 : vector<2x128xf32>
    %387 = math.tanh %386 : vector<2x128xf32>
    %388 = arith.negf %386 : vector<2x128xf32>
    %389 = math.exp %388 : vector<2x128xf32>
    %cst_116 = arith.constant 1.000000e+00 : f32
    %390 = vector.broadcast %cst_116 : f32 to vector<2x128xf32>
    %391 = arith.addf %390, %389 : vector<2x128xf32>
    %392 = arith.divf %390, %391 : vector<2x128xf32>
    %393 = arith.select %5, %387, %392 : vector<2x128xi1>, vector<2x128xf32>
    %394 = vector.extract_strided_slice %393 {offsets = [0, 0], sizes = [2, 32], strides = [1, 1]} : vector<2x128xf32> to vector<2x32xf32>
    %395 = vector.extract_strided_slice %393 {offsets = [0, 32], sizes = [2, 32], strides = [1, 1]} : vector<2x128xf32> to vector<2x32xf32>
    %396 = vector.extract_strided_slice %393 {offsets = [0, 64], sizes = [2, 32], strides = [1, 1]} : vector<2x128xf32> to vector<2x32xf32>
    %397 = vector.extract_strided_slice %393 {offsets = [0, 96], sizes = [2, 32], strides = [1, 1]} : vector<2x128xf32> to vector<2x32xf32>
    %398 = arith.mulf %395, %381 : vector<2x32xf32>
    %399 = arith.mulf %394, %396 : vector<2x32xf32>
    %400 = arith.addf %398, %399 : vector<2x32xf32>
    %401 = math.tanh %400 : vector<2x32xf32>
    %402 = arith.mulf %397, %401 : vector<2x32xf32>
    %c6_117 = arith.constant 6 : index
    %c0_118 = arith.constant 0 : index
    %403 = vector.load %arg9[%c6_117, %c0_118] : memref<32x128xf32, #tpu.memory_space<vmem>>, vector<2x128xf32>
    %cst_119 = arith.constant dense<0.000000e+00> : vector<2x128xf32>
    %404 = tpu.matmul %402, %337, %cst_119 {dimension_numbers = #tpu.dot_dimension_numbers<[1], [0], [0], [1], [0, 0, 1, 1], [], []>} : vector<2x32xf32>, vector<32x128xf32>, vector<2x128xf32> -> vector<2x128xf32>
    %405 = arith.addf %403, %404 : vector<2x128xf32>
    %406 = math.tanh %405 : vector<2x128xf32>
    %407 = arith.negf %405 : vector<2x128xf32>
    %408 = math.exp %407 : vector<2x128xf32>
    %cst_120 = arith.constant 1.000000e+00 : f32
    %409 = vector.broadcast %cst_120 : f32 to vector<2x128xf32>
    %410 = arith.addf %409, %408 : vector<2x128xf32>
    %411 = arith.divf %409, %410 : vector<2x128xf32>
    %412 = arith.select %5, %406, %411 : vector<2x128xi1>, vector<2x128xf32>
    %413 = vector.extract_strided_slice %412 {offsets = [0, 0], sizes = [2, 32], strides = [1, 1]} : vector<2x128xf32> to vector<2x32xf32>
    %414 = vector.extract_strided_slice %412 {offsets = [0, 32], sizes = [2, 32], strides = [1, 1]} : vector<2x128xf32> to vector<2x32xf32>
    %415 = vector.extract_strided_slice %412 {offsets = [0, 64], sizes = [2, 32], strides = [1, 1]} : vector<2x128xf32> to vector<2x32xf32>
    %416 = vector.extract_strided_slice %412 {offsets = [0, 96], sizes = [2, 32], strides = [1, 1]} : vector<2x128xf32> to vector<2x32xf32>
    %417 = arith.mulf %414, %400 : vector<2x32xf32>
    %418 = arith.mulf %413, %415 : vector<2x32xf32>
    %419 = arith.addf %417, %418 : vector<2x32xf32>
    %420 = math.tanh %419 : vector<2x32xf32>
    %421 = arith.mulf %416, %420 : vector<2x32xf32>
    %c8_121 = arith.constant 8 : index
    %c0_122 = arith.constant 0 : index
    %422 = vector.load %arg9[%c8_121, %c0_122] : memref<32x128xf32, #tpu.memory_space<vmem>>, vector<2x128xf32>
    %cst_123 = arith.constant dense<0.000000e+00> : vector<2x128xf32>
    %423 = tpu.matmul %421, %337, %cst_123 {dimension_numbers = #tpu.dot_dimension_numbers<[1], [0], [0], [1], [0, 0, 1, 1], [], []>} : vector<2x32xf32>, vector<32x128xf32>, vector<2x128xf32> -> vector<2x128xf32>
    %424 = arith.addf %422, %423 : vector<2x128xf32>
    %425 = math.tanh %424 : vector<2x128xf32>
    %426 = arith.negf %424 : vector<2x128xf32>
    %427 = math.exp %426 : vector<2x128xf32>
    %cst_124 = arith.constant 1.000000e+00 : f32
    %428 = vector.broadcast %cst_124 : f32 to vector<2x128xf32>
    %429 = arith.addf %428, %427 : vector<2x128xf32>
    %430 = arith.divf %428, %429 : vector<2x128xf32>
    %431 = arith.select %5, %425, %430 : vector<2x128xi1>, vector<2x128xf32>
    %432 = vector.extract_strided_slice %431 {offsets = [0, 0], sizes = [2, 32], strides = [1, 1]} : vector<2x128xf32> to vector<2x32xf32>
    %433 = vector.extract_strided_slice %431 {offsets = [0, 32], sizes = [2, 32], strides = [1, 1]} : vector<2x128xf32> to vector<2x32xf32>
    %434 = vector.extract_strided_slice %431 {offsets = [0, 64], sizes = [2, 32], strides = [1, 1]} : vector<2x128xf32> to vector<2x32xf32>
    %435 = vector.extract_strided_slice %431 {offsets = [0, 96], sizes = [2, 32], strides = [1, 1]} : vector<2x128xf32> to vector<2x32xf32>
    %436 = arith.mulf %433, %419 : vector<2x32xf32>
    %437 = arith.mulf %432, %434 : vector<2x32xf32>
    %438 = arith.addf %436, %437 : vector<2x32xf32>
    %439 = math.tanh %438 : vector<2x32xf32>
    %440 = arith.mulf %435, %439 : vector<2x32xf32>
    %c10_125 = arith.constant 10 : index
    %c0_126 = arith.constant 0 : index
    %441 = vector.load %arg9[%c10_125, %c0_126] : memref<32x128xf32, #tpu.memory_space<vmem>>, vector<2x128xf32>
    %cst_127 = arith.constant dense<0.000000e+00> : vector<2x128xf32>
    %442 = tpu.matmul %440, %337, %cst_127 {dimension_numbers = #tpu.dot_dimension_numbers<[1], [0], [0], [1], [0, 0, 1, 1], [], []>} : vector<2x32xf32>, vector<32x128xf32>, vector<2x128xf32> -> vector<2x128xf32>
    %443 = arith.addf %441, %442 : vector<2x128xf32>
    %444 = math.tanh %443 : vector<2x128xf32>
    %445 = arith.negf %443 : vector<2x128xf32>
    %446 = math.exp %445 : vector<2x128xf32>
    %cst_128 = arith.constant 1.000000e+00 : f32
    %447 = vector.broadcast %cst_128 : f32 to vector<2x128xf32>
    %448 = arith.addf %447, %446 : vector<2x128xf32>
    %449 = arith.divf %447, %448 : vector<2x128xf32>
    %450 = arith.select %5, %444, %449 : vector<2x128xi1>, vector<2x128xf32>
    %451 = vector.extract_strided_slice %450 {offsets = [0, 0], sizes = [2, 32], strides = [1, 1]} : vector<2x128xf32> to vector<2x32xf32>
    %452 = vector.extract_strided_slice %450 {offsets = [0, 32], sizes = [2, 32], strides = [1, 1]} : vector<2x128xf32> to vector<2x32xf32>
    %453 = vector.extract_strided_slice %450 {offsets = [0, 64], sizes = [2, 32], strides = [1, 1]} : vector<2x128xf32> to vector<2x32xf32>
    %454 = vector.extract_strided_slice %450 {offsets = [0, 96], sizes = [2, 32], strides = [1, 1]} : vector<2x128xf32> to vector<2x32xf32>
    %455 = arith.mulf %452, %438 : vector<2x32xf32>
    %456 = arith.mulf %451, %453 : vector<2x32xf32>
    %457 = arith.addf %455, %456 : vector<2x32xf32>
    %458 = math.tanh %457 : vector<2x32xf32>
    %459 = arith.mulf %454, %458 : vector<2x32xf32>
    %c12_129 = arith.constant 12 : index
    %c0_130 = arith.constant 0 : index
    %460 = vector.load %arg9[%c12_129, %c0_130] : memref<32x128xf32, #tpu.memory_space<vmem>>, vector<2x128xf32>
    %cst_131 = arith.constant dense<0.000000e+00> : vector<2x128xf32>
    %461 = tpu.matmul %459, %337, %cst_131 {dimension_numbers = #tpu.dot_dimension_numbers<[1], [0], [0], [1], [0, 0, 1, 1], [], []>} : vector<2x32xf32>, vector<32x128xf32>, vector<2x128xf32> -> vector<2x128xf32>
    %462 = arith.addf %460, %461 : vector<2x128xf32>
    %463 = math.tanh %462 : vector<2x128xf32>
    %464 = arith.negf %462 : vector<2x128xf32>
    %465 = math.exp %464 : vector<2x128xf32>
    %cst_132 = arith.constant 1.000000e+00 : f32
    %466 = vector.broadcast %cst_132 : f32 to vector<2x128xf32>
    %467 = arith.addf %466, %465 : vector<2x128xf32>
    %468 = arith.divf %466, %467 : vector<2x128xf32>
    %469 = arith.select %5, %463, %468 : vector<2x128xi1>, vector<2x128xf32>
    %470 = vector.extract_strided_slice %469 {offsets = [0, 0], sizes = [2, 32], strides = [1, 1]} : vector<2x128xf32> to vector<2x32xf32>
    %471 = vector.extract_strided_slice %469 {offsets = [0, 32], sizes = [2, 32], strides = [1, 1]} : vector<2x128xf32> to vector<2x32xf32>
    %472 = vector.extract_strided_slice %469 {offsets = [0, 64], sizes = [2, 32], strides = [1, 1]} : vector<2x128xf32> to vector<2x32xf32>
    %473 = vector.extract_strided_slice %469 {offsets = [0, 96], sizes = [2, 32], strides = [1, 1]} : vector<2x128xf32> to vector<2x32xf32>
    %474 = arith.mulf %471, %457 : vector<2x32xf32>
    %475 = arith.mulf %470, %472 : vector<2x32xf32>
    %476 = arith.addf %474, %475 : vector<2x32xf32>
    %477 = math.tanh %476 : vector<2x32xf32>
    %478 = arith.mulf %473, %477 : vector<2x32xf32>
    %c14_133 = arith.constant 14 : index
    %c0_134 = arith.constant 0 : index
    %479 = vector.load %arg9[%c14_133, %c0_134] : memref<32x128xf32, #tpu.memory_space<vmem>>, vector<2x128xf32>
    %cst_135 = arith.constant dense<0.000000e+00> : vector<2x128xf32>
    %480 = tpu.matmul %478, %337, %cst_135 {dimension_numbers = #tpu.dot_dimension_numbers<[1], [0], [0], [1], [0, 0, 1, 1], [], []>} : vector<2x32xf32>, vector<32x128xf32>, vector<2x128xf32> -> vector<2x128xf32>
    %481 = arith.addf %479, %480 : vector<2x128xf32>
    %482 = math.tanh %481 : vector<2x128xf32>
    %483 = arith.negf %481 : vector<2x128xf32>
    %484 = math.exp %483 : vector<2x128xf32>
    %cst_136 = arith.constant 1.000000e+00 : f32
    %485 = vector.broadcast %cst_136 : f32 to vector<2x128xf32>
    %486 = arith.addf %485, %484 : vector<2x128xf32>
    %487 = arith.divf %485, %486 : vector<2x128xf32>
    %488 = arith.select %5, %482, %487 : vector<2x128xi1>, vector<2x128xf32>
    %489 = vector.extract_strided_slice %488 {offsets = [0, 0], sizes = [2, 32], strides = [1, 1]} : vector<2x128xf32> to vector<2x32xf32>
    %490 = vector.extract_strided_slice %488 {offsets = [0, 32], sizes = [2, 32], strides = [1, 1]} : vector<2x128xf32> to vector<2x32xf32>
    %491 = vector.extract_strided_slice %488 {offsets = [0, 64], sizes = [2, 32], strides = [1, 1]} : vector<2x128xf32> to vector<2x32xf32>
    %492 = vector.extract_strided_slice %488 {offsets = [0, 96], sizes = [2, 32], strides = [1, 1]} : vector<2x128xf32> to vector<2x32xf32>
    %493 = arith.mulf %490, %476 : vector<2x32xf32>
    %494 = arith.mulf %489, %491 : vector<2x32xf32>
    %495 = arith.addf %493, %494 : vector<2x32xf32>
    %496 = math.tanh %495 : vector<2x32xf32>
    %497 = arith.mulf %492, %496 : vector<2x32xf32>
    %c16_137 = arith.constant 16 : index
    %c0_138 = arith.constant 0 : index
    %498 = vector.load %arg9[%c16_137, %c0_138] : memref<32x128xf32, #tpu.memory_space<vmem>>, vector<2x128xf32>
    %cst_139 = arith.constant dense<0.000000e+00> : vector<2x128xf32>
    %499 = tpu.matmul %497, %337, %cst_139 {dimension_numbers = #tpu.dot_dimension_numbers<[1], [0], [0], [1], [0, 0, 1, 1], [], []>} : vector<2x32xf32>, vector<32x128xf32>, vector<2x128xf32> -> vector<2x128xf32>
    %500 = arith.addf %498, %499 : vector<2x128xf32>
    %501 = math.tanh %500 : vector<2x128xf32>
    %502 = arith.negf %500 : vector<2x128xf32>
    %503 = math.exp %502 : vector<2x128xf32>
    %cst_140 = arith.constant 1.000000e+00 : f32
    %504 = vector.broadcast %cst_140 : f32 to vector<2x128xf32>
    %505 = arith.addf %504, %503 : vector<2x128xf32>
    %506 = arith.divf %504, %505 : vector<2x128xf32>
    %507 = arith.select %5, %501, %506 : vector<2x128xi1>, vector<2x128xf32>
    %508 = vector.extract_strided_slice %507 {offsets = [0, 0], sizes = [2, 32], strides = [1, 1]} : vector<2x128xf32> to vector<2x32xf32>
    %509 = vector.extract_strided_slice %507 {offsets = [0, 32], sizes = [2, 32], strides = [1, 1]} : vector<2x128xf32> to vector<2x32xf32>
    %510 = vector.extract_strided_slice %507 {offsets = [0, 64], sizes = [2, 32], strides = [1, 1]} : vector<2x128xf32> to vector<2x32xf32>
    %511 = vector.extract_strided_slice %507 {offsets = [0, 96], sizes = [2, 32], strides = [1, 1]} : vector<2x128xf32> to vector<2x32xf32>
    %512 = arith.mulf %509, %495 : vector<2x32xf32>
    %513 = arith.mulf %508, %510 : vector<2x32xf32>
    %514 = arith.addf %512, %513 : vector<2x32xf32>
    %515 = math.tanh %514 : vector<2x32xf32>
    %516 = arith.mulf %511, %515 : vector<2x32xf32>
    %c18_141 = arith.constant 18 : index
    %c0_142 = arith.constant 0 : index
    %517 = vector.load %arg9[%c18_141, %c0_142] : memref<32x128xf32, #tpu.memory_space<vmem>>, vector<2x128xf32>
    %cst_143 = arith.constant dense<0.000000e+00> : vector<2x128xf32>
    %518 = tpu.matmul %516, %337, %cst_143 {dimension_numbers = #tpu.dot_dimension_numbers<[1], [0], [0], [1], [0, 0, 1, 1], [], []>} : vector<2x32xf32>, vector<32x128xf32>, vector<2x128xf32> -> vector<2x128xf32>
    %519 = arith.addf %517, %518 : vector<2x128xf32>
    %520 = math.tanh %519 : vector<2x128xf32>
    %521 = arith.negf %519 : vector<2x128xf32>
    %522 = math.exp %521 : vector<2x128xf32>
    %cst_144 = arith.constant 1.000000e+00 : f32
    %523 = vector.broadcast %cst_144 : f32 to vector<2x128xf32>
    %524 = arith.addf %523, %522 : vector<2x128xf32>
    %525 = arith.divf %523, %524 : vector<2x128xf32>
    %526 = arith.select %5, %520, %525 : vector<2x128xi1>, vector<2x128xf32>
    %527 = vector.extract_strided_slice %526 {offsets = [0, 0], sizes = [2, 32], strides = [1, 1]} : vector<2x128xf32> to vector<2x32xf32>
    %528 = vector.extract_strided_slice %526 {offsets = [0, 32], sizes = [2, 32], strides = [1, 1]} : vector<2x128xf32> to vector<2x32xf32>
    %529 = vector.extract_strided_slice %526 {offsets = [0, 64], sizes = [2, 32], strides = [1, 1]} : vector<2x128xf32> to vector<2x32xf32>
    %530 = vector.extract_strided_slice %526 {offsets = [0, 96], sizes = [2, 32], strides = [1, 1]} : vector<2x128xf32> to vector<2x32xf32>
    %531 = arith.mulf %528, %514 : vector<2x32xf32>
    %532 = arith.mulf %527, %529 : vector<2x32xf32>
    %533 = arith.addf %531, %532 : vector<2x32xf32>
    %534 = math.tanh %533 : vector<2x32xf32>
    %535 = arith.mulf %530, %534 : vector<2x32xf32>
    %c20_145 = arith.constant 20 : index
    %c0_146 = arith.constant 0 : index
    %536 = vector.load %arg9[%c20_145, %c0_146] : memref<32x128xf32, #tpu.memory_space<vmem>>, vector<2x128xf32>
    %cst_147 = arith.constant dense<0.000000e+00> : vector<2x128xf32>
    %537 = tpu.matmul %535, %337, %cst_147 {dimension_numbers = #tpu.dot_dimension_numbers<[1], [0], [0], [1], [0, 0, 1, 1], [], []>} : vector<2x32xf32>, vector<32x128xf32>, vector<2x128xf32> -> vector<2x128xf32>
    %538 = arith.addf %536, %537 : vector<2x128xf32>
    %539 = math.tanh %538 : vector<2x128xf32>
    %540 = arith.negf %538 : vector<2x128xf32>
    %541 = math.exp %540 : vector<2x128xf32>
    %cst_148 = arith.constant 1.000000e+00 : f32
    %542 = vector.broadcast %cst_148 : f32 to vector<2x128xf32>
    %543 = arith.addf %542, %541 : vector<2x128xf32>
    %544 = arith.divf %542, %543 : vector<2x128xf32>
    %545 = arith.select %5, %539, %544 : vector<2x128xi1>, vector<2x128xf32>
    %546 = vector.extract_strided_slice %545 {offsets = [0, 0], sizes = [2, 32], strides = [1, 1]} : vector<2x128xf32> to vector<2x32xf32>
    %547 = vector.extract_strided_slice %545 {offsets = [0, 32], sizes = [2, 32], strides = [1, 1]} : vector<2x128xf32> to vector<2x32xf32>
    %548 = vector.extract_strided_slice %545 {offsets = [0, 64], sizes = [2, 32], strides = [1, 1]} : vector<2x128xf32> to vector<2x32xf32>
    %549 = vector.extract_strided_slice %545 {offsets = [0, 96], sizes = [2, 32], strides = [1, 1]} : vector<2x128xf32> to vector<2x32xf32>
    %550 = arith.mulf %547, %533 : vector<2x32xf32>
    %551 = arith.mulf %546, %548 : vector<2x32xf32>
    %552 = arith.addf %550, %551 : vector<2x32xf32>
    %553 = math.tanh %552 : vector<2x32xf32>
    %554 = arith.mulf %549, %553 : vector<2x32xf32>
    %c22_149 = arith.constant 22 : index
    %c0_150 = arith.constant 0 : index
    %555 = vector.load %arg9[%c22_149, %c0_150] : memref<32x128xf32, #tpu.memory_space<vmem>>, vector<2x128xf32>
    %cst_151 = arith.constant dense<0.000000e+00> : vector<2x128xf32>
    %556 = tpu.matmul %554, %337, %cst_151 {dimension_numbers = #tpu.dot_dimension_numbers<[1], [0], [0], [1], [0, 0, 1, 1], [], []>} : vector<2x32xf32>, vector<32x128xf32>, vector<2x128xf32> -> vector<2x128xf32>
    %557 = arith.addf %555, %556 : vector<2x128xf32>
    %558 = math.tanh %557 : vector<2x128xf32>
    %559 = arith.negf %557 : vector<2x128xf32>
    %560 = math.exp %559 : vector<2x128xf32>
    %cst_152 = arith.constant 1.000000e+00 : f32
    %561 = vector.broadcast %cst_152 : f32 to vector<2x128xf32>
    %562 = arith.addf %561, %560 : vector<2x128xf32>
    %563 = arith.divf %561, %562 : vector<2x128xf32>
    %564 = arith.select %5, %558, %563 : vector<2x128xi1>, vector<2x128xf32>
    %565 = vector.extract_strided_slice %564 {offsets = [0, 0], sizes = [2, 32], strides = [1, 1]} : vector<2x128xf32> to vector<2x32xf32>
    %566 = vector.extract_strided_slice %564 {offsets = [0, 32], sizes = [2, 32], strides = [1, 1]} : vector<2x128xf32> to vector<2x32xf32>
    %567 = vector.extract_strided_slice %564 {offsets = [0, 64], sizes = [2, 32], strides = [1, 1]} : vector<2x128xf32> to vector<2x32xf32>
    %568 = vector.extract_strided_slice %564 {offsets = [0, 96], sizes = [2, 32], strides = [1, 1]} : vector<2x128xf32> to vector<2x32xf32>
    %569 = arith.mulf %566, %552 : vector<2x32xf32>
    %570 = arith.mulf %565, %567 : vector<2x32xf32>
    %571 = arith.addf %569, %570 : vector<2x32xf32>
    %572 = math.tanh %571 : vector<2x32xf32>
    %573 = arith.mulf %568, %572 : vector<2x32xf32>
    %c24_153 = arith.constant 24 : index
    %c0_154 = arith.constant 0 : index
    %574 = vector.load %arg9[%c24_153, %c0_154] : memref<32x128xf32, #tpu.memory_space<vmem>>, vector<2x128xf32>
    %cst_155 = arith.constant dense<0.000000e+00> : vector<2x128xf32>
    %575 = tpu.matmul %573, %337, %cst_155 {dimension_numbers = #tpu.dot_dimension_numbers<[1], [0], [0], [1], [0, 0, 1, 1], [], []>} : vector<2x32xf32>, vector<32x128xf32>, vector<2x128xf32> -> vector<2x128xf32>
    %576 = arith.addf %574, %575 : vector<2x128xf32>
    %577 = math.tanh %576 : vector<2x128xf32>
    %578 = arith.negf %576 : vector<2x128xf32>
    %579 = math.exp %578 : vector<2x128xf32>
    %cst_156 = arith.constant 1.000000e+00 : f32
    %580 = vector.broadcast %cst_156 : f32 to vector<2x128xf32>
    %581 = arith.addf %580, %579 : vector<2x128xf32>
    %582 = arith.divf %580, %581 : vector<2x128xf32>
    %583 = arith.select %5, %577, %582 : vector<2x128xi1>, vector<2x128xf32>
    %584 = vector.extract_strided_slice %583 {offsets = [0, 0], sizes = [2, 32], strides = [1, 1]} : vector<2x128xf32> to vector<2x32xf32>
    %585 = vector.extract_strided_slice %583 {offsets = [0, 32], sizes = [2, 32], strides = [1, 1]} : vector<2x128xf32> to vector<2x32xf32>
    %586 = vector.extract_strided_slice %583 {offsets = [0, 64], sizes = [2, 32], strides = [1, 1]} : vector<2x128xf32> to vector<2x32xf32>
    %587 = vector.extract_strided_slice %583 {offsets = [0, 96], sizes = [2, 32], strides = [1, 1]} : vector<2x128xf32> to vector<2x32xf32>
    %588 = arith.mulf %585, %571 : vector<2x32xf32>
    %589 = arith.mulf %584, %586 : vector<2x32xf32>
    %590 = arith.addf %588, %589 : vector<2x32xf32>
    %591 = math.tanh %590 : vector<2x32xf32>
    %592 = arith.mulf %587, %591 : vector<2x32xf32>
    %c26_157 = arith.constant 26 : index
    %c0_158 = arith.constant 0 : index
    %593 = vector.load %arg9[%c26_157, %c0_158] : memref<32x128xf32, #tpu.memory_space<vmem>>, vector<2x128xf32>
    %cst_159 = arith.constant dense<0.000000e+00> : vector<2x128xf32>
    %594 = tpu.matmul %592, %337, %cst_159 {dimension_numbers = #tpu.dot_dimension_numbers<[1], [0], [0], [1], [0, 0, 1, 1], [], []>} : vector<2x32xf32>, vector<32x128xf32>, vector<2x128xf32> -> vector<2x128xf32>
    %595 = arith.addf %593, %594 : vector<2x128xf32>
    %596 = math.tanh %595 : vector<2x128xf32>
    %597 = arith.negf %595 : vector<2x128xf32>
    %598 = math.exp %597 : vector<2x128xf32>
    %cst_160 = arith.constant 1.000000e+00 : f32
    %599 = vector.broadcast %cst_160 : f32 to vector<2x128xf32>
    %600 = arith.addf %599, %598 : vector<2x128xf32>
    %601 = arith.divf %599, %600 : vector<2x128xf32>
    %602 = arith.select %5, %596, %601 : vector<2x128xi1>, vector<2x128xf32>
    %603 = vector.extract_strided_slice %602 {offsets = [0, 0], sizes = [2, 32], strides = [1, 1]} : vector<2x128xf32> to vector<2x32xf32>
    %604 = vector.extract_strided_slice %602 {offsets = [0, 32], sizes = [2, 32], strides = [1, 1]} : vector<2x128xf32> to vector<2x32xf32>
    %605 = vector.extract_strided_slice %602 {offsets = [0, 64], sizes = [2, 32], strides = [1, 1]} : vector<2x128xf32> to vector<2x32xf32>
    %606 = vector.extract_strided_slice %602 {offsets = [0, 96], sizes = [2, 32], strides = [1, 1]} : vector<2x128xf32> to vector<2x32xf32>
    %607 = arith.mulf %604, %590 : vector<2x32xf32>
    %608 = arith.mulf %603, %605 : vector<2x32xf32>
    %609 = arith.addf %607, %608 : vector<2x32xf32>
    %610 = math.tanh %609 : vector<2x32xf32>
    %611 = arith.mulf %606, %610 : vector<2x32xf32>
    %c28_161 = arith.constant 28 : index
    %c0_162 = arith.constant 0 : index
    %612 = vector.load %arg9[%c28_161, %c0_162] : memref<32x128xf32, #tpu.memory_space<vmem>>, vector<2x128xf32>
    %cst_163 = arith.constant dense<0.000000e+00> : vector<2x128xf32>
    %613 = tpu.matmul %611, %337, %cst_163 {dimension_numbers = #tpu.dot_dimension_numbers<[1], [0], [0], [1], [0, 0, 1, 1], [], []>} : vector<2x32xf32>, vector<32x128xf32>, vector<2x128xf32> -> vector<2x128xf32>
    %614 = arith.addf %612, %613 : vector<2x128xf32>
    %615 = math.tanh %614 : vector<2x128xf32>
    %616 = arith.negf %614 : vector<2x128xf32>
    %617 = math.exp %616 : vector<2x128xf32>
    %cst_164 = arith.constant 1.000000e+00 : f32
    %618 = vector.broadcast %cst_164 : f32 to vector<2x128xf32>
    %619 = arith.addf %618, %617 : vector<2x128xf32>
    %620 = arith.divf %618, %619 : vector<2x128xf32>
    %621 = arith.select %5, %615, %620 : vector<2x128xi1>, vector<2x128xf32>
    %622 = vector.extract_strided_slice %621 {offsets = [0, 0], sizes = [2, 32], strides = [1, 1]} : vector<2x128xf32> to vector<2x32xf32>
    %623 = vector.extract_strided_slice %621 {offsets = [0, 32], sizes = [2, 32], strides = [1, 1]} : vector<2x128xf32> to vector<2x32xf32>
    %624 = vector.extract_strided_slice %621 {offsets = [0, 64], sizes = [2, 32], strides = [1, 1]} : vector<2x128xf32> to vector<2x32xf32>
    %625 = vector.extract_strided_slice %621 {offsets = [0, 96], sizes = [2, 32], strides = [1, 1]} : vector<2x128xf32> to vector<2x32xf32>
    %626 = arith.mulf %623, %609 : vector<2x32xf32>
    %627 = arith.mulf %622, %624 : vector<2x32xf32>
    %628 = arith.addf %626, %627 : vector<2x32xf32>
    %629 = math.tanh %628 : vector<2x32xf32>
    %630 = arith.mulf %625, %629 : vector<2x32xf32>
    %c30_165 = arith.constant 30 : index
    %c0_166 = arith.constant 0 : index
    %631 = vector.load %arg9[%c30_165, %c0_166] : memref<32x128xf32, #tpu.memory_space<vmem>>, vector<2x128xf32>
    %cst_167 = arith.constant dense<0.000000e+00> : vector<2x128xf32>
    %632 = tpu.matmul %630, %337, %cst_167 {dimension_numbers = #tpu.dot_dimension_numbers<[1], [0], [0], [1], [0, 0, 1, 1], [], []>} : vector<2x32xf32>, vector<32x128xf32>, vector<2x128xf32> -> vector<2x128xf32>
    %633 = arith.addf %631, %632 : vector<2x128xf32>
    %634 = math.tanh %633 : vector<2x128xf32>
    %635 = arith.negf %633 : vector<2x128xf32>
    %636 = math.exp %635 : vector<2x128xf32>
    %cst_168 = arith.constant 1.000000e+00 : f32
    %637 = vector.broadcast %cst_168 : f32 to vector<2x128xf32>
    %638 = arith.addf %637, %636 : vector<2x128xf32>
    %639 = arith.divf %637, %638 : vector<2x128xf32>
    %640 = arith.select %5, %634, %639 : vector<2x128xi1>, vector<2x128xf32>
    %641 = vector.extract_strided_slice %640 {offsets = [0, 0], sizes = [2, 32], strides = [1, 1]} : vector<2x128xf32> to vector<2x32xf32>
    %642 = vector.extract_strided_slice %640 {offsets = [0, 32], sizes = [2, 32], strides = [1, 1]} : vector<2x128xf32> to vector<2x32xf32>
    %643 = vector.extract_strided_slice %640 {offsets = [0, 64], sizes = [2, 32], strides = [1, 1]} : vector<2x128xf32> to vector<2x32xf32>
    %644 = vector.extract_strided_slice %640 {offsets = [0, 96], sizes = [2, 32], strides = [1, 1]} : vector<2x128xf32> to vector<2x32xf32>
    %645 = arith.mulf %642, %628 : vector<2x32xf32>
    %646 = arith.mulf %641, %643 : vector<2x32xf32>
    %647 = arith.addf %645, %646 : vector<2x32xf32>
    %648 = math.tanh %647 : vector<2x32xf32>
    %649 = arith.mulf %644, %648 : vector<2x32xf32>
    %c0_169 = arith.constant 0 : index
    %c0_170 = arith.constant 0 : index
    %650 = vector.load %arg7[%c0_169, %c0_170] : memref<2x32xf32, #tpu.memory_space<vmem>>, vector<2x32xf32>
    tpu.vector_store %arg7[%c0_169, %c0_170], %649 {strides = array<i32>} : memref<2x32xf32, #tpu.memory_space<vmem>>, vector<2x32xf32>,
    return
  }
}

</mosaic_0001>

<llo_original>
// kernel: tpu_custom_call.1
$region0: #{tpu_custom_call.1}
  #allocation0 [shape = 'u32[]', space=smem, size = 0x4, offset = 0x4, fixed_abs, tag = 'smem constant byte address 0x4 - core index']
  #allocation1 [shape = 'u32[144,128]{1,0:T(1,128)}', space=vmem, size = 0x12000, scoped, tag = 'internal scratch']
  #allocation2 [shape = 'f32[32,32]{1,0:T(8,128)}', space=vmem, size = 0x4000, scoped, tag = 'scratch operand']
  #allocation3 [shape = 'f32[32,128]{1,0:T(8,128)}', space=vmem, size = 0x4000, scoped, tag = 'scratch operand']
  %s0 = inlined_call_operand.vmem [shape: f32[32,16], index: 0, kind: input, shape index: {}]
  %s1 = inlined_call_operand.hbm [shape: f32[16,128], index: 1, kind: input, shape index: {}]
  %s2 = inlined_call_operand.vmem [shape: f32[32,128], index: 2, kind: input, shape index: {}]
  %s3 = inlined_call_operand.vmem [shape: f32[1,128], index: 3, kind: input, shape index: {}]
  %s4 = inlined_call_operand.hbm [shape: f32[32,128], index: 4, kind: input, shape index: {}]
  %s5 = inlined_call_operand.vmem [shape: f32[32,128], index: 5, kind: input, shape index: {}]
  %s6 = inlined_call_operand.vmem [shape: f32[1,128], index: 6, kind: input, shape index: {}]
  %s7 = inlined_call_operand.hbm [shape: f32[2,32], index: 7, kind: output, shape index: {}]
  %s8 = sld [smem:[#allocation0]]
  $region46: #{tpu_custom_call.1} parent=0
    _
  %s10 = ssub.s32 1, %s8
  %s11 = scalar_select 0, %s10, %s8
  $region1: #{tpu_custom_call.1} parent=0
    #allocation4 [shape = 'u8[8192]{0}', space=vmem, size = 0x2000, scoped, tag = 'input window, operand 1, single buffered']
    #allocation5 [shape = 's32[1]{0}', space=sflag, size = 0x4, scoped, tag = 'scoped memory for tpu_custom_call.1']
    #allocation6 [shape = 's32[1]{0}', space=sflag, size = 0x4, scoped, tag = 'scoped memory for tpu_custom_call.1']
    #allocation7 [shape = 'u8[16384]{0}', space=vmem, size = 0x4000, scoped, tag = 'input window, operand 4, single buffered']
    #allocation8 [shape = 's32[1]{0}', space=sflag, size = 0x4, scoped, tag = 'scoped memory for tpu_custom_call.1']
    #allocation9 [shape = 'u8[1024]{0}', space=vmem, size = 0x400, scoped, tag = 'output window, operand 0, single buffered']
    %12 = vsyncpa [#allocation5], 0
    %13 = vsyncpa [#allocation8], 0
    %14 = vsyncpa [#allocation6], 0
    // Predicated region
    $region2: #{tpu_custom_call.1} parent=1 // pred_check
      _
    $region3: #{tpu_custom_call.1} parent=1 // pred_check_branch
      %16 = sbr.rel (0) target = $region5
    $region4: #{tpu_custom_call.1} parent=1 // pred_region
      _
    $region5: #{tpu_custom_call.1} parent=1 // pred_fallthru
      _
    // Predicated region
    $region6: #{tpu_custom_call.1} parent=1 // pred_check
      _
    $region7: #{tpu_custom_call.1} parent=1 // pred_check_branch
      %18 = sbr.rel (0) target = $region9
    $region8: #{tpu_custom_call.1} parent=1 // pred_region
      %s20 = ssub.s32 256, 256
      %21 = vsyncadd [#allocation5], %s20
      %s22 = sshll.u32 [#allocation4], 4
      %s23 = int_to_ptr.vmem [resolvable:$true] %s22
      %28 = dma.hbm_to_vmem [thread:$0]  %s1, 256, %s23, [#allocation5], 128, 128, 8
    $region9: #{tpu_custom_call.1} parent=1 // pred_fallthru
      _
    // Predicated region
    $region10: #{tpu_custom_call.1} parent=1 // pred_check
      _
    $region11: #{tpu_custom_call.1} parent=1 // pred_check_branch
      %30 = sbr.rel (0) target = $region13
    $region12: #{tpu_custom_call.1} parent=1 // pred_region
      _
    $region13: #{tpu_custom_call.1} parent=1 // pred_fallthru
      _
    // Predicated region
    $region14: #{tpu_custom_call.1} parent=1 // pred_check
      _
    $region15: #{tpu_custom_call.1} parent=1 // pred_check_branch
      %32 = sbr.rel (0) target = $region17
    $region16: #{tpu_custom_call.1} parent=1 // pred_region
      _
    $region17: #{tpu_custom_call.1} parent=1 // pred_fallthru
      _
    // Predicated region
    $region18: #{tpu_custom_call.1} parent=1 // pred_check
      _
    $region19: #{tpu_custom_call.1} parent=1 // pred_check_branch
      %34 = sbr.rel (0) target = $region21
    $region20: #{tpu_custom_call.1} parent=1 // pred_region
      %s36 = ssub.s32 512, 512
      %37 = vsyncadd [#allocation8], %s36
      %s38 = sshll.u32 [#allocation7], 4
      %s39 = int_to_ptr.vmem [resolvable:$true] %s38
      %44 = dma.hbm_to_vmem [thread:$0]  %s4, 512, %s39, [#allocation8], 128, 128, 8
    $region21: #{tpu_custom_call.1} parent=1 // pred_fallthru
      _
    // Predicated region
    $region22: #{tpu_custom_call.1} parent=1 // pred_check
      _
    $region23: #{tpu_custom_call.1} parent=1 // pred_check_branch
      %46 = sbr.rel (0) target = $region25
    $region24: #{tpu_custom_call.1} parent=1 // pred_region
      _
    $region25: #{tpu_custom_call.1} parent=1 // pred_fallthru
      _
    // Predicated region
    $region26: #{tpu_custom_call.1} parent=1 // pred_check
      _
    $region27: #{tpu_custom_call.1} parent=1 // pred_check_branch
      %48 = sbr.rel (0) target = $region29
    $region28: #{tpu_custom_call.1} parent=1 // pred_region
      _
    $region29: #{tpu_custom_call.1} parent=1 // pred_fallthru
      _
    // Predicated region
    $region30: #{tpu_custom_call.1} parent=1 // pred_check
      _
    $region31: #{tpu_custom_call.1} parent=1 // pred_check_branch
      %50 = sbr.rel (0) target = $region33
    $region32: #{tpu_custom_call.1} parent=1 // pred_region
      %51 = dma.done [#allocation5], 256
    $region33: #{tpu_custom_call.1} parent=1 // pred_fallthru
      _
    // Predicated region
    $region34: #{tpu_custom_call.1} parent=1 // pred_check
      _
    $region35: #{tpu_custom_call.1} parent=1 // pred_check_branch
      %53 = sbr.rel (0) target = $region37
    $region36: #{tpu_custom_call.1} parent=1 // pred_region
      %54 = dma.done [#allocation8], 512
    $region37: #{tpu_custom_call.1} parent=1 // pred_fallthru
      _
    %v55 = vlaneseq
    %v56 = vand.u32 %v55, 127
    %vm57 = vcmp.ge.s32.totalorder %v56, 64
    %vm58 = vcmp.lt.s32.totalorder %v56, 96
    %vm59 = vmand %vm57, %vm58
    %v60 = vld [vmem:[#allocation4] sm:$0xff]
    %v61 = vld [vmem:[#allocation4 + $0x8] sm:$0xff]
    %v62 = vld [vmem:[%s2] sm:$0xff]
    %v63 = vld [vmem:[%s2 + $0x8] sm:$0xff]
    %v64 = vld [vmem:[%s2 + $0x10] sm:$0xff]
    %v65 = vld [vmem:[%s2 + $0x18] sm:$0xff]
    %v66 = vld [vmem:[%s3] sm:$0x1]
    %v67 = vld [vmem:[%s0] sm:$0xff]
    %v68 = vld [vmem:[%s0 + $0x8] sm:$0xff]
    %v69 = vld [vmem:[%s0 + $0x10] sm:$0xff]
    %v70 = vld [vmem:[%s0 + $0x18] sm:$0xff]
    %v72 = vlaneseq
    %v73 = vshrl.u32 %v72, 7
    %v74 = vsub.s32 0, %v73
    %v75 = vrot.slane %v66, %v74
    %vm77 = vcmask 130048
    %v79 = vsel %vm77, %v67, 0
    %v82 = vsel %vm77, %v68, 0
    %v85 = vsel %vm77, %v69, 0
    %v88 = vsel %vm77, %v70, 0
    %90 = vmatprep.subr.mxu0 0.0
    %91 = vmatpush1.msra.mxu0 %v60
    %92 = vmatprep.subr.mxu0 0.0
    %93 = vmatpush1.msra.mxu0 %v61
    %94 = vmatprep.subr.mxu0 0.0
    %95 = vmatpush1.msra.mxu0 0.0
    %96 = vmatprep.subr.mxu0 0.0
    %97 = vmatpush1.msra.mxu0 0.0
    %98 = vmatprep.subr.mxu0 0.0
    %99 = vmatpush1.msra.mxu0 0.0
    %100 = vmatprep.subr.mxu0 0.0
    %101 = vmatpush1.msra.mxu0 0.0
    %102 = vmatprep.subr.mxu0 0.0
    %103 = vmatpush1.msra.mxu0 0.0
    %104 = vmatprep.subr.mxu0 0.0
    %105 = vmatpush1.msra.mxu0 0.0
    %106 = vmatprep.subr.mxu0 0.0
    %107 = vmatpush1.msra.mxu0 0.0
    %108 = vmatprep.subr.mxu0 0.0
    %109 = vmatpush1.msra.mxu0 0.0
    %110 = vmatprep.subr.mxu0 0.0
    %111 = vmatpush1.msra.mxu0 0.0
    %112 = vmatprep.subr.mxu0 0.0
    %113 = vmatpush1.msra.mxu0 0.0
    %114 = vmatprep.subr.mxu0 0.0
    %115 = vmatpush1.msra.mxu0 0.0
    %116 = vmatprep.subr.mxu0 0.0
    %117 = vmatpush1.msra.mxu0 0.0
    %118 = vmatprep.subr.mxu0 0.0
    %119 = vmatpush1.msra.mxu0 0.0
    %120 = vmatprep.subr.mxu0 0.0
    %121 = vmatpush1.msra.mxu0 0.0
    %122 = vmatprep.subr.mxu0 0.0
    %123 = vmatpush1.msra.mxu0 0.0
    %124 = vmatprep.subr.mxu0 0.0
    %125 = vmatpush1.msra.mxu0 0.0
    %126 = vmatprep.subr.mxu0 0.0
    %127 = vmatpush1.msra.mxu0 0.0
    %128 = vmatprep.subr.mxu0 0.0
    %129 = vmatpush1.msra.mxu0 0.0
    %130 = vmatprep.subr.mxu0 0.0
    %131 = vmatpush1.msra.mxu0 0.0
    %132 = vmatprep.subr.mxu0 0.0
    %133 = vmatpush1.msra.mxu0 0.0
    %134 = vmatprep.subr.mxu0 0.0
    %135 = vmatpush1.msra.mxu0 0.0
    %136 = vmatprep.subr.mxu0 0.0
    %137 = vmatpush1.msra.mxu0 0.0
    %138 = vmatprep.subr.mxu0 0.0
    %139 = vmatpush1.msra.mxu0 0.0
    %140 = vmatprep.subr.mxu0 0.0
    %141 = vmatpush1.msra.mxu0 0.0
    %142 = vmatprep.subr.mxu0 0.0
    %143 = vmatpush1.msra.mxu0 0.0
    %144 = vmatprep.subr.mxu0 0.0
    %145 = vmatpush1.msra.mxu0 0.0
    %146 = vmatprep.subr.mxu0 0.0
    %147 = vmatpush1.msra.mxu0 0.0
    %148 = vmatprep.subr.mxu0 0.0
    %149 = vmatpush1.msra.mxu0 0.0
    %150 = vmatprep.subr.mxu0 0.0
    %151 = vmatpush1.msra.mxu0 0.0
    %152 = vmatprep.subr.mxu0 0.0
    %153 = vmatpush1.msra.mxu0 0.0
    %154 = vmatprep.mubr.f32.mxu0 0.0
    %155 = vmatmul.mubr.f32.gmra.mrb[0].mxu0 %v79
    %v156 = vpop.f32.mrb[0].mxu0
    %v157 = vadd.f32 %v75, %v156
    %v158 = vpop.f32.mrb[0].mxu0
    %159 = vmatprep.mubr.f32.mxu0 0.0
    %160 = vmatmul.mubr.f32.gmra.mrb[0].mxu0 %v82
    %v161 = vpop.f32.mrb[0].mxu0
    %v162 = vadd.f32 %v75, %v161
    %v163 = vpop.f32.mrb[0].mxu0
    %164 = vmatprep.mubr.f32.mxu0 0.0
    %165 = vmatmul.mubr.f32.gmra.mrb[0].mxu0 %v85
    %v166 = vpop.f32.mrb[0].mxu0
    %v167 = vadd.f32 %v75, %v166
    %v168 = vpop.f32.mrb[0].mxu0
    %169 = vmatprep.mubr.f32.mxu0 0.0
    %170 = vmatmul.mubr.f32.gmra.mrb[0].mxu0 %v88
    %v171 = vpop.f32.mrb[0].mxu0
    %v172 = vadd.f32 %v75, %v171
    %v173 = vpop.f32.mrb[0].mxu0
    %174 = vdwg.mxu0
    %175 = vst [vmem:[#allocation3] sm:$0xff] %v157
    %176 = vst [vmem:[#allocation3 + $0x8] sm:$0xff] %v162
    %177 = vst [vmem:[#allocation3 + $0x10] sm:$0xff] %v167
    %178 = vst [vmem:[#allocation3 + $0x18] sm:$0xff] %v172
    %v179 = vld [vmem:[#allocation3] sm:$0x3]
    %vm180 = vcmask 261120
    %v182 = vsel %vm180, 0.0, 0
    %184 = vmatprep.subr.mxu0 0.0
    %185 = vmatpush1.msra.mxu0 %v62
    %186 = vmatprep.subr.mxu0 0.0
    %187 = vmatpush1.msra.mxu0 %v63
    %188 = vmatprep.subr.mxu0 0.0
    %189 = vmatpush1.msra.mxu0 %v64
    %190 = vmatprep.subr.mxu0 0.0
    %191 = vmatpush1.msra.mxu0 %v65
    %192 = vmatprep.subr.mxu0 0.0
    %193 = vmatpush1.msra.mxu0 0.0
    %194 = vmatprep.subr.mxu0 0.0
    %195 = vmatpush1.msra.mxu0 0.0
    %196 = vmatprep.subr.mxu0 0.0
    %197 = vmatpush1.msra.mxu0 0.0
    %198 = vmatprep.subr.mxu0 0.0
    %199 = vmatpush1.msra.mxu0 0.0
    %200 = vmatprep.subr.mxu0 0.0
    %201 = vmatpush1.msra.mxu0 0.0
    %202 = vmatprep.subr.mxu0 0.0
    %203 = vmatpush1.msra.mxu0 0.0
    %204 = vmatprep.subr.mxu0 0.0
    %205 = vmatpush1.msra.mxu0 0.0
    %206 = vmatprep.subr.mxu0 0.0
    %207 = vmatpush1.msra.mxu0 0.0
    %208 = vmatprep.subr.mxu0 0.0
    %209 = vmatpush1.msra.mxu0 0.0
    %210 = vmatprep.subr.mxu0 0.0
    %211 = vmatpush1.msra.mxu0 0.0
    %212 = vmatprep.subr.mxu0 0.0
    %213 = vmatpush1.msra.mxu0 0.0
    %214 = vmatprep.subr.mxu0 0.0
    %215 = vmatpush1.msra.mxu0 0.0
    %216 = vmatprep.subr.mxu0 0.0
    %217 = vmatpush1.msra.mxu0 0.0
    %218 = vmatprep.subr.mxu0 0.0
    %219 = vmatpush1.msra.mxu0 0.0
    %220 = vmatprep.subr.mxu0 0.0
    %221 = vmatpush1.msra.mxu0 0.0
    %222 = vmatprep.subr.mxu0 0.0
    %223 = vmatpush1.msra.mxu0 0.0
    %224 = vmatprep.subr.mxu0 0.0
    %225 = vmatpush1.msra.mxu0 0.0
    %226 = vmatprep.subr.mxu0 0.0
    %227 = vmatpush1.msra.mxu0 0.0
    %228 = vmatprep.subr.mxu0 0.0
    %229 = vmatpush1.msra.mxu0 0.0
    %230 = vmatprep.subr.mxu0 0.0
    %231 = vmatpush1.msra.mxu0 0.0
    %232 = vmatprep.subr.mxu0 0.0
    %233 = vmatpush1.msra.mxu0 0.0
    %234 = vmatprep.subr.mxu0 0.0
    %235 = vmatpush1.msra.mxu0 0.0
    %236 = vmatprep.subr.mxu0 0.0
    %237 = vmatpush1.msra.mxu0 0.0
    %238 = vmatprep.subr.mxu0 0.0
    %239 = vmatpush1.msra.mxu0 0.0
    %240 = vmatprep.subr.mxu0 0.0
    %241 = vmatpush1.msra.mxu0 0.0
    %242 = vmatprep.subr.mxu0 0.0
    %243 = vmatpush1.msra.mxu0 0.0
    %244 = vmatprep.subr.mxu0 0.0
    %245 = vmatpush1.msra.mxu0 0.0
    %246 = vmatprep.subr.mxu0 0.0
    %247 = vmatpush1.msra.mxu0 0.0
    %248 = vmatprep.mubr.f32.mxu0 0.0
    %249 = vmatmul.mubr.f32.gmra.mrb[0].mxu0 %v182
    %v250 = vpop.f32.mrb[0].mxu0
    %v251 = vadd.f32 0.0, %v250
    %v252 = vpop.f32.mrb[0].mxu0
    %253 = vdwg.mxu0
    %v254 = vadd.f32 %v179, %v251
    %v255 = vtanh.pop %v254
    %v256 = vxor.u32 %v254, 2147483648
    %v257 = vmul.f32 %v256, 1.442695
    %v258 = vpow.pop %v257
    %v259 = vadd.f32 %v258, 1.0
    %v260 = vrcp.pop %v259
    %v261 = vmul.f32 1.0, %v260
    %v262 = vsel %vm59, %v255, %v261
    %v263 = vmul.f32 %v262, 0.0
    %265 = vrot.lane.b32.xlu0 %v262, 64
    %v266 = vpop.permute.xlu0 %265
    %v268 = vmul.f32 %v262, %v266
    %270 = vrot.lane.b32.xlu0 %v268, 32
    %v271 = vpop.permute.xlu0 %270
    %v273 = vadd.f32 %v263, %v271
    %v274 = vtanh.pop %v273
    %276 = vrot.lane.b32.xlu0 %v274, 64
    %v277 = vpop.permute.xlu0 %276
    %v279 = vmul.f32 %v262, %v277
    %281 = vrot.lane.b32.xlu0 %v279, 32
    %v282 = vpop.permute.xlu0 %281
    %vm284 = vcmask 254976
    %285 = vst.msk [vmem:[#allocation2] sm:$0x3] %vm284, %v282
    %v286 = vld [vmem:[#allocation3 + $0x2] sm:$0x3]
    %v287 = vsel %vm180, %v282, 0
    %289 = vmatprep.subr.mxu0 0.0
    %290 = vmatpush1.msra.mxu0 %v62
    %291 = vmatprep.subr.mxu0 0.0
    %292 = vmatpush1.msra.mxu0 %v63
    %293 = vmatprep.subr.mxu0 0.0
    %294 = vmatpush1.msra.mxu0 %v64
    %295 = vmatprep.subr.mxu0 0.0
    %296 = vmatpush1.msra.mxu0 %v65
    %297 = vmatprep.subr.mxu0 0.0
    %298 = vmatpush1.msra.mxu0 0.0
    %299 = vmatprep.subr.mxu0 0.0
    %300 = vmatpush1.msra.mxu0 0.0
    %301 = vmatprep.subr.mxu0 0.0
    %302 = vmatpush1.msra.mxu0 0.0
    %303 = vmatprep.subr.mxu0 0.0
    %304 = vmatpush1.msra.mxu0 0.0
    %305 = vmatprep.subr.mxu0 0.0
    %306 = vmatpush1.msra.mxu0 0.0
    %307 = vmatprep.subr.mxu0 0.0
    %308 = vmatpush1.msra.mxu0 0.0
    %309 = vmatprep.subr.mxu0 0.0
    %310 = vmatpush1.msra.mxu0 0.0
    %311 = vmatprep.subr.mxu0 0.0
    %312 = vmatpush1.msra.mxu0 0.0
    %313 = vmatprep.subr.mxu0 0.0
    %314 = vmatpush1.msra.mxu0 0.0
    %315 = vmatprep.subr.mxu0 0.0
    %316 = vmatpush1.msra.mxu0 0.0
    %317 = vmatprep.subr.mxu0 0.0
    %318 = vmatpush1.msra.mxu0 0.0
    %319 = vmatprep.subr.mxu0 0.0
    %320 = vmatpush1.msra.mxu0 0.0
    %321 = vmatprep.subr.mxu0 0.0
    %322 = vmatpush1.msra.mxu0 0.0
    %323 = vmatprep.subr.mxu0 0.0
    %324 = vmatpush1.msra.mxu0 0.0
    %325 = vmatprep.subr.mxu0 0.0
    %326 = vmatpush1.msra.mxu0 0.0
    %327 = vmatprep.subr.mxu0 0.0
    %328 = vmatpush1.msra.mxu0 0.0
    %329 = vmatprep.subr.mxu0 0.0
    %330 = vmatpush1.msra.mxu0 0.0
    %331 = vmatprep.subr.mxu0 0.0
    %332 = vmatpush1.msra.mxu0 0.0
    %333 = vmatprep.subr.mxu0 0.0
    %334 = vmatpush1.msra.mxu0 0.0
    %335 = vmatprep.subr.mxu0 0.0
    %336 = vmatpush1.msra.mxu0 0.0
    %337 = vmatprep.subr.mxu0 0.0
    %338 = vmatpush1.msra.mxu0 0.0
    %339 = vmatprep.subr.mxu0 0.0
    %340 = vmatpush1.msra.mxu0 0.0
    %341 = vmatprep.subr.mxu0 0.0
    %342 = vmatpush1.msra.mxu0 0.0
    %343 = vmatprep.subr.mxu0 0.0
    %344 = vmatpush1.msra.mxu0 0.0
    %345 = vmatprep.subr.mxu0 0.0
    %346 = vmatpush1.msra.mxu0 0.0
    %347 = vmatprep.subr.mxu0 0.0
    %348 = vmatpush1.msra.mxu0 0.0
    %349 = vmatprep.subr.mxu0 0.0
    %350 = vmatpush1.msra.mxu0 0.0
    %351 = vmatprep.subr.mxu0 0.0
    %352 = vmatpush1.msra.mxu0 0.0
    %353 = vmatprep.mubr.f32.mxu0 0.0
    %354 = vmatmul.mubr.f32.gmra.mrb[0].mxu0 %v287
    %v355 = vpop.f32.mrb[0].mxu0
    %v356 = vadd.f32 0.0, %v355
    %v357 = vpop.f32.mrb[0].mxu0
    %358 = vdwg.mxu0
    %v359 = vadd.f32 %v286, %v356
    %v360 = vtanh.pop %v359
    %v361 = vxor.u32 %v359, 2147483648
    %v362 = vmul.f32 %v361, 1.442695
    %v363 = vpow.pop %v362
    %v364 = vadd.f32 %v363, 1.0
    %v365 = vrcp.pop %v364
    %v366 = vmul.f32 1.0, %v365
    %v367 = vsel %vm59, %v360, %v366
    %v368 = vmul.f32 %v367, %v273
    %370 = vrot.lane.b32.xlu0 %v367, 64
    %v371 = vpop.permute.xlu0 %370
    %v373 = vmul.f32 %v367, %v371
    %375 = vrot.lane.b32.xlu0 %v373, 32
    %v376 = vpop.permute.xlu0 %375
    %v378 = vadd.f32 %v368, %v376
    %v379 = vtanh.pop %v378
    %381 = vrot.lane.b32.xlu0 %v379, 64
    %v382 = vpop.permute.xlu0 %381
    %v384 = vmul.f32 %v367, %v382
    %386 = vrot.lane.b32.xlu0 %v384, 32
    %v387 = vpop.permute.xlu0 %386
    %389 = vst.msk [vmem:[#allocation2 + $0x2] sm:$0x3] %vm284, %v387
    %v390 = vld [vmem:[#allocation3 + $0x4] sm:$0x3]
    %v391 = vsel %vm180, %v387, 0
    %393 = vmatprep.subr.mxu0 0.0
    %394 = vmatpush1.msra.mxu0 %v62
    %395 = vmatprep.subr.mxu0 0.0
    %396 = vmatpush1.msra.mxu0 %v63
    %397 = vmatprep.subr.mxu0 0.0
    %398 = vmatpush1.msra.mxu0 %v64
    %399 = vmatprep.subr.mxu0 0.0
    %400 = vmatpush1.msra.mxu0 %v65
    %401 = vmatprep.subr.mxu0 0.0
    %402 = vmatpush1.msra.mxu0 0.0
    %403 = vmatprep.subr.mxu0 0.0
    %404 = vmatpush1.msra.mxu0 0.0
    %405 = vmatprep.subr.mxu0 0.0
    %406 = vmatpush1.msra.mxu0 0.0
    %407 = vmatprep.subr.mxu0 0.0
    %408 = vmatpush1.msra.mxu0 0.0
    %409 = vmatprep.subr.mxu0 0.0
    %410 = vmatpush1.msra.mxu0 0.0
    %411 = vmatprep.subr.mxu0 0.0
    %412 = vmatpush1.msra.mxu0 0.0
    %413 = vmatprep.subr.mxu0 0.0
    %414 = vmatpush1.msra.mxu0 0.0
    %415 = vmatprep.subr.mxu0 0.0
    %416 = vmatpush1.msra.mxu0 0.0
    %417 = vmatprep.subr.mxu0 0.0
    %418 = vmatpush1.msra.mxu0 0.0
    %419 = vmatprep.subr.mxu0 0.0
    %420 = vmatpush1.msra.mxu0 0.0
    %421 = vmatprep.subr.mxu0 0.0
    %422 = vmatpush1.msra.mxu0 0.0
    %423 = vmatprep.subr.mxu0 0.0
    %424 = vmatpush1.msra.mxu0 0.0
    %425 = vmatprep.subr.mxu0 0.0
    %426 = vmatpush1.msra.mxu0 0.0
    %427 = vmatprep.subr.mxu0 0.0
    %428 = vmatpush1.msra.mxu0 0.0
    %429 = vmatprep.subr.mxu0 0.0
    %430 = vmatpush1.msra.mxu0 0.0
    %431 = vmatprep.subr.mxu0 0.0
    %432 = vmatpush1.msra.mxu0 0.0
    %433 = vmatprep.subr.mxu0 0.0
    %434 = vmatpush1.msra.mxu0 0.0
    %435 = vmatprep.subr.mxu0 0.0
    %436 = vmatpush1.msra.mxu0 0.0
    %437 = vmatprep.subr.mxu0 0.0
    %438 = vmatpush1.msra.mxu0 0.0
    %439 = vmatprep.subr.mxu0 0.0
    %440 = vmatpush1.msra.mxu0 0.0
    %441 = vmatprep.subr.mxu0 0.0
    %442 = vmatpush1.msra.mxu0 0.0
    %443 = vmatprep.subr.mxu0 0.0
    %444 = vmatpush1.msra.mxu0 0.0
    %445 = vmatprep.subr.mxu0 0.0
    %446 = vmatpush1.msra.mxu0 0.0
    %447 = vmatprep.subr.mxu0 0.0
    %448 = vmatpush1.msra.mxu0 0.0
    %449 = vmatprep.subr.mxu0 0.0
    %450 = vmatpush1.msra.mxu0 0.0
    %451 = vmatprep.subr.mxu0 0.0
    %452 = vmatpush1.msra.mxu0 0.0
    %453 = vmatprep.subr.mxu0 0.0
    %454 = vmatpush1.msra.mxu0 0.0
    %455 = vmatprep.subr.mxu0 0.0
    %456 = vmatpush1.msra.mxu0 0.0
    %457 = vmatprep.mubr.f32.mxu0 0.0
    %458 = vmatmul.mubr.f32.gmra.mrb[0].mxu0 %v391
    %v459 = vpop.f32.mrb[0].mxu0
    %v460 = vadd.f32 0.0, %v459
    %v461 = vpop.f32.mrb[0].mxu0
    %462 = vdwg.mxu0
    %v463 = vadd.f32 %v390, %v460
    %v464 = vtanh.pop %v463
    %v465 = vxor.u32 %v463, 2147483648
    %v466 = vmul.f32 %v465, 1.442695
    %v467 = vpow.pop %v466
    %v468 = vadd.f32 %v467, 1.0
    %v469 = vrcp.pop %v468
    %v470 = vmul.f32 1.0, %v469
    %v471 = vsel %vm59, %v464, %v470
    %v472 = vmul.f32 %v471, %v378
    %474 = vrot.lane.b32.xlu0 %v471, 64
    %v475 = vpop.permute.xlu0 %474
    %v477 = vmul.f32 %v471, %v475
    %479 = vrot.lane.b32.xlu0 %v477, 32
    %v480 = vpop.permute.xlu0 %479
    %v482 = vadd.f32 %v472, %v480
    %v483 = vtanh.pop %v482
    %485 = vrot.lane.b32.xlu0 %v483, 64
    %v486 = vpop.permute.xlu0 %485
    %v488 = vmul.f32 %v471, %v486
    %490 = vrot.lane.b32.xlu0 %v488, 32
    %v491 = vpop.permute.xlu0 %490
    %493 = vst.msk [vmem:[#allocation2 + $0x4] sm:$0x3] %vm284, %v491
    %v494 = vld [vmem:[#allocation3 + $0x6] sm:$0x3]
    %v495 = vsel %vm180, %v491, 0
    %497 = vmatprep.subr.mxu0 0.0
    %498 = vmatpush1.msra.mxu0 %v62
    %499 = vmatprep.subr.mxu0 0.0
    %500 = vmatpush1.msra.mxu0 %v63
    %501 = vmatprep.subr.mxu0 0.0
    %502 = vmatpush1.msra.mxu0 %v64
    %503 = vmatprep.subr.mxu0 0.0
    %504 = vmatpush1.msra.mxu0 %v65
    %505 = vmatprep.subr.mxu0 0.0
    %506 = vmatpush1.msra.mxu0 0.0
    %507 = vmatprep.subr.mxu0 0.0
    %508 = vmatpush1.msra.mxu0 0.0
    %509 = vmatprep.subr.mxu0 0.0
    %510 = vmatpush1.msra.mxu0 0.0
    %511 = vmatprep.subr.mxu0 0.0
    %512 = vmatpush1.msra.mxu0 0.0
    %513 = vmatprep.subr.mxu0 0.0
    %514 = vmatpush1.msra.mxu0 0.0
    %515 = vmatprep.subr.mxu0 0.0
    %516 = vmatpush1.msra.mxu0 0.0
    %517 = vmatprep.subr.mxu0 0.0
    %518 = vmatpush1.msra.mxu0 0.0
    %519 = vmatprep.subr.mxu0 0.0
    %520 = vmatpush1.msra.mxu0 0.0
    %521 = vmatprep.subr.mxu0 0.0
    %522 = vmatpush1.msra.mxu0 0.0
    %523 = vmatprep.subr.mxu0 0.0
    %524 = vmatpush1.msra.mxu0 0.0
    %525 = vmatprep.subr.mxu0 0.0
    %526 = vmatpush1.msra.mxu0 0.0
    %527 = vmatprep.subr.mxu0 0.0
    %528 = vmatpush1.msra.mxu0 0.0
    %529 = vmatprep.subr.mxu0 0.0
    %530 = vmatpush1.msra.mxu0 0.0
    %531 = vmatprep.subr.mxu0 0.0
    %532 = vmatpush1.msra.mxu0 0.0
    %533 = vmatprep.subr.mxu0 0.0
    %534 = vmatpush1.msra.mxu0 0.0
    %535 = vmatprep.subr.mxu0 0.0
    %536 = vmatpush1.msra.mxu0 0.0
    %537 = vmatprep.subr.mxu0 0.0
    %538 = vmatpush1.msra.mxu0 0.0
    %539 = vmatprep.subr.mxu0 0.0
    %540 = vmatpush1.msra.mxu0 0.0
    %541 = vmatprep.subr.mxu0 0.0
    %542 = vmatpush1.msra.mxu0 0.0
    %543 = vmatprep.subr.mxu0 0.0
    %544 = vmatpush1.msra.mxu0 0.0
    %545 = vmatprep.subr.mxu0 0.0
    %546 = vmatpush1.msra.mxu0 0.0
    %547 = vmatprep.subr.mxu0 0.0
    %548 = vmatpush1.msra.mxu0 0.0
    %549 = vmatprep.subr.mxu0 0.0
    %550 = vmatpush1.msra.mxu0 0.0
    %551 = vmatprep.subr.mxu0 0.0
    %552 = vmatpush1.msra.mxu0 0.0
    %553 = vmatprep.subr.mxu0 0.0
    %554 = vmatpush1.msra.mxu0 0.0
    %555 = vmatprep.subr.mxu0 0.0
    %556 = vmatpush1.msra.mxu0 0.0
    %557 = vmatprep.subr.mxu0 0.0
    %558 = vmatpush1.msra.mxu0 0.0
    %559 = vmatprep.subr.mxu0 0.0
    %560 = vmatpush1.msra.mxu0 0.0
    %561 = vmatprep.mubr.f32.mxu0 0.0
    %562 = vmatmul.mubr.f32.gmra.mrb[0].mxu0 %v495
    %v563 = vpop.f32.mrb[0].mxu0
    %v564 = vadd.f32 0.0, %v563
    %v565 = vpop.f32.mrb[0].mxu0
    %566 = vdwg.mxu0
    %v567 = vadd.f32 %v494, %v564
    %v568 = vtanh.pop %v567
    %v569 = vxor.u32 %v567, 2147483648
    %v570 = vmul.f32 %v569, 1.442695
    %v571 = vpow.pop %v570
    %v572 = vadd.f32 %v571, 1.0
    %v573 = vrcp.pop %v572
    %v574 = vmul.f32 1.0, %v573
    %v575 = vsel %vm59, %v568, %v574
    %v576 = vmul.f32 %v575, %v482
    %578 = vrot.lane.b32.xlu0 %v575, 64
    %v579 = vpop.permute.xlu0 %578
    %v581 = vmul.f32 %v575, %v579
    %583 = vrot.lane.b32.xlu0 %v581, 32
    %v584 = vpop.permute.xlu0 %583
    %v586 = vadd.f32 %v576, %v584
    %v587 = vtanh.pop %v586
    %589 = vrot.lane.b32.xlu0 %v587, 64
    %v590 = vpop.permute.xlu0 %589
    %v592 = vmul.f32 %v575, %v590
    %594 = vrot.lane.b32.xlu0 %v592, 32
    %v595 = vpop.permute.xlu0 %594
    %597 = vst.msk [vmem:[#allocation2 + $0x6] sm:$0x3] %vm284, %v595
    %v598 = vld [vmem:[#allocation3 + $0x8] sm:$0x3]
    %v599 = vsel %vm180, %v595, 0
    %601 = vmatprep.subr.mxu0 0.0
    %602 = vmatpush1.msra.mxu0 %v62
    %603 = vmatprep.subr.mxu0 0.0
    %604 = vmatpush1.msra.mxu0 %v63
    %605 = vmatprep.subr.mxu0 0.0
    %606 = vmatpush1.msra.mxu0 %v64
    %607 = vmatprep.subr.mxu0 0.0
    %608 = vmatpush1.msra.mxu0 %v65
    %609 = vmatprep.subr.mxu0 0.0
    %610 = vmatpush1.msra.mxu0 0.0
    %611 = vmatprep.subr.mxu0 0.0
    %612 = vmatpush1.msra.mxu0 0.0
    %613 = vmatprep.subr.mxu0 0.0
    %614 = vmatpush1.msra.mxu0 0.0
    %615 = vmatprep.subr.mxu0 0.0
    %616 = vmatpush1.msra.mxu0 0.0
    %617 = vmatprep.subr.mxu0 0.0
    %618 = vmatpush1.msra.mxu0 0.0
    %619 = vmatprep.subr.mxu0 0.0
    %620 = vmatpush1.msra.mxu0 0.0
    %621 = vmatprep.subr.mxu0 0.0
    %622 = vmatpush1.msra.mxu0 0.0
    %623 = vmatprep.subr.mxu0 0.0
    %624 = vmatpush1.msra.mxu0 0.0
    %625 = vmatprep.subr.mxu0 0.0
    %626 = vmatpush1.msra.mxu0 0.0
    %627 = vmatprep.subr.mxu0 0.0
    %628 = vmatpush1.msra.mxu0 0.0
    %629 = vmatprep.subr.mxu0 0.0
    %630 = vmatpush1.msra.mxu0 0.0
    %631 = vmatprep.subr.mxu0 0.0
    %632 = vmatpush1.msra.mxu0 0.0
    %633 = vmatprep.subr.mxu0 0.0
    %634 = vmatpush1.msra.mxu0 0.0
    %635 = vmatprep.subr.mxu0 0.0
    %636 = vmatpush1.msra.mxu0 0.0
    %637 = vmatprep.subr.mxu0 0.0
    %638 = vmatpush1.msra.mxu0 0.0
    %639 = vmatprep.subr.mxu0 0.0
    %640 = vmatpush1.msra.mxu0 0.0
    %641 = vmatprep.subr.mxu0 0.0
    %642 = vmatpush1.msra.mxu0 0.0
    %643 = vmatprep.subr.mxu0 0.0
    %644 = vmatpush1.msra.mxu0 0.0
    %645 = vmatprep.subr.mxu0 0.0
    %646 = vmatpush1.msra.mxu0 0.0
    %647 = vmatprep.subr.mxu0 0.0
    %648 = vmatpush1.msra.mxu0 0.0
    %649 = vmatprep.subr.mxu0 0.0
    %650 = vmatpush1.msra.mxu0 0.0
    %651 = vmatprep.subr.mxu0 0.0
    %652 = vmatpush1.msra.mxu0 0.0
    %653 = vmatprep.subr.mxu0 0.0
    %654 = vmatpush1.msra.mxu0 0.0
    %655 = vmatprep.subr.mxu0 0.0
    %656 = vmatpush1.msra.mxu0 0.0
    %657 = vmatprep.subr.mxu0 0.0
    %658 = vmatpush1.msra.mxu0 0.0
    %659 = vmatprep.subr.mxu0 0.0
    %660 = vmatpush1.msra.mxu0 0.0
    %661 = vmatprep.subr.mxu0 0.0
    %662 = vmatpush1.msra.mxu0 0.0
    %663 = vmatprep.subr.mxu0 0.0
    %664 = vmatpush1.msra.mxu0 0.0
    %665 = vmatprep.mubr.f32.mxu0 0.0
    %666 = vmatmul.mubr.f32.gmra.mrb[0].mxu0 %v599
    %v667 = vpop.f32.mrb[0].mxu0
    %v668 = vadd.f32 0.0, %v667
    %v669 = vpop.f32.mrb[0].mxu0
    %670 = vdwg.mxu0
    %v671 = vadd.f32 %v598, %v668
    %v672 = vtanh.pop %v671
    %v673 = vxor.u32 %v671, 2147483648
    %v674 = vmul.f32 %v673, 1.442695
    %v675 = vpow.pop %v674
    %v676 = vadd.f32 %v675, 1.0
    %v677 = vrcp.pop %v676
    %v678 = vmul.f32 1.0, %v677
    %v679 = vsel %vm59, %v672, %v678
    %v680 = vmul.f32 %v679, %v586
    %682 = vrot.lane.b32.xlu0 %v679, 64
    %v683 = vpop.permute.xlu0 %682
    %v685 = vmul.f32 %v679, %v683
    %687 = vrot.lane.b32.xlu0 %v685, 32
    %v688 = vpop.permute.xlu0 %687
    %v690 = vadd.f32 %v680, %v688
    %v691 = vtanh.pop %v690
    %693 = vrot.lane.b32.xlu0 %v691, 64
    %v694 = vpop.permute.xlu0 %693
    %v696 = vmul.f32 %v679, %v694
    %698 = vrot.lane.b32.xlu0 %v696, 32
    %v699 = vpop.permute.xlu0 %698
    %701 = vst.msk [vmem:[#allocation2 + $0x8] sm:$0x3] %vm284, %v699
    %v702 = vld [vmem:[#allocation3 + $0xa] sm:$0x3]
    %v703 = vsel %vm180, %v699, 0
    %705 = vmatprep.subr.mxu0 0.0
    %706 = vmatpush1.msra.mxu0 %v62
    %707 = vmatprep.subr.mxu0 0.0
    %708 = vmatpush1.msra.mxu0 %v63
    %709 = vmatprep.subr.mxu0 0.0
    %710 = vmatpush1.msra.mxu0 %v64
    %711 = vmatprep.subr.mxu0 0.0
    %712 = vmatpush1.msra.mxu0 %v65
    %713 = vmatprep.subr.mxu0 0.0
    %714 = vmatpush1.msra.mxu0 0.0
    %715 = vmatprep.subr.mxu0 0.0
    %716 = vmatpush1.msra.mxu0 0.0
    %717 = vmatprep.subr.mxu0 0.0
    %718 = vmatpush1.msra.mxu0 0.0
    %719 = vmatprep.subr.mxu0 0.0
    %720 = vmatpush1.msra.mxu0 0.0
    %721 = vmatprep.subr.mxu0 0.0
    %722 = vmatpush1.msra.mxu0 0.0
    %723 = vmatprep.subr.mxu0 0.0
    %724 = vmatpush1.msra.mxu0 0.0
    %725 = vmatprep.subr.mxu0 0.0
    %726 = vmatpush1.msra.mxu0 0.0
    %727 = vmatprep.subr.mxu0 0.0
    %728 = vmatpush1.msra.mxu0 0.0
    %729 = vmatprep.subr.mxu0 0.0
    %730 = vmatpush1.msra.mxu0 0.0
    %731 = vmatprep.subr.mxu0 0.0
    %732 = vmatpush1.msra.mxu0 0.0
    %733 = vmatprep.subr.mxu0 0.0
    %734 = vmatpush1.msra.mxu0 0.0
    %735 = vmatprep.subr.mxu0 0.0
    %736 = vmatpush1.msra.mxu0 0.0
    %737 = vmatprep.subr.mxu0 0.0
    %738 = vmatpush1.msra.mxu0 0.0
    %739 = vmatprep.subr.mxu0 0.0
    %740 = vmatpush1.msra.mxu0 0.0
    %741 = vmatprep.subr.mxu0 0.0
    %742 = vmatpush1.msra.mxu0 0.0
    %743 = vmatprep.subr.mxu0 0.0
    %744 = vmatpush1.msra.mxu0 0.0
    %745 = vmatprep.subr.mxu0 0.0
    %746 = vmatpush1.msra.mxu0 0.0
    %747 = vmatprep.subr.mxu0 0.0
    %748 = vmatpush1.msra.mxu0 0.0
    %749 = vmatprep.subr.mxu0 0.0
    %750 = vmatpush1.msra.mxu0 0.0
    %751 = vmatprep.subr.mxu0 0.0
    %752 = vmatpush1.msra.mxu0 0.0
    %753 = vmatprep.subr.mxu0 0.0
    %754 = vmatpush1.msra.mxu0 0.0
    %755 = vmatprep.subr.mxu0 0.0
    %756 = vmatpush1.msra.mxu0 0.0
    %757 = vmatprep.subr.mxu0 0.0
    %758 = vmatpush1.msra.mxu0 0.0
    %759 = vmatprep.subr.mxu0 0.0
    %760 = vmatpush1.msra.mxu0 0.0
    %761 = vmatprep.subr.mxu0 0.0
    %762 = vmatpush1.msra.mxu0 0.0
    %763 = vmatprep.subr.mxu0 0.0
    %764 = vmatpush1.msra.mxu0 0.0
    %765 = vmatprep.subr.mxu0 0.0
    %766 = vmatpush1.msra.mxu0 0.0
    %767 = vmatprep.subr.mxu0 0.0
    %768 = vmatpush1.msra.mxu0 0.0
    %769 = vmatprep.mubr.f32.mxu0 0.0
    %770 = vmatmul.mubr.f32.gmra.mrb[0].mxu0 %v703
    %v771 = vpop.f32.mrb[0].mxu0
    %v772 = vadd.f32 0.0, %v771
    %v773 = vpop.f32.mrb[0].mxu0
    %774 = vdwg.mxu0
    %v775 = vadd.f32 %v702, %v772
    %v776 = vtanh.pop %v775
    %v777 = vxor.u32 %v775, 2147483648
    %v778 = vmul.f32 %v777, 1.442695
    %v779 = vpow.pop %v778
    %v780 = vadd.f32 %v779, 1.0
    %v781 = vrcp.pop %v780
    %v782 = vmul.f32 1.0, %v781
    %v783 = vsel %vm59, %v776, %v782
    %v784 = vmul.f32 %v783, %v690
    %786 = vrot.lane.b32.xlu0 %v783, 64
    %v787 = vpop.permute.xlu0 %786
    %v789 = vmul.f32 %v783, %v787
    %791 = vrot.lane.b32.xlu0 %v789, 32
    %v792 = vpop.permute.xlu0 %791
    %v794 = vadd.f32 %v784, %v792
    %v795 = vtanh.pop %v794
    %797 = vrot.lane.b32.xlu0 %v795, 64
    %v798 = vpop.permute.xlu0 %797
    %v800 = vmul.f32 %v783, %v798
    %802 = vrot.lane.b32.xlu0 %v800, 32
    %v803 = vpop.permute.xlu0 %802
    %805 = vst.msk [vmem:[#allocation2 + $0xa] sm:$0x3] %vm284, %v803
    %v806 = vld [vmem:[#allocation3 + $0xc] sm:$0x3]
    %v807 = vsel %vm180, %v803, 0
    %809 = vmatprep.subr.mxu0 0.0
    %810 = vmatpush1.msra.mxu0 %v62
    %811 = vmatprep.subr.mxu0 0.0
    %812 = vmatpush1.msra.mxu0 %v63
    %813 = vmatprep.subr.mxu0 0.0
    %814 = vmatpush1.msra.mxu0 %v64
    %815 = vmatprep.subr.mxu0 0.0
    %816 = vmatpush1.msra.mxu0 %v65
    %817 = vmatprep.subr.mxu0 0.0
    %818 = vmatpush1.msra.mxu0 0.0
    %819 = vmatprep.subr.mxu0 0.0
    %820 = vmatpush1.msra.mxu0 0.0
    %821 = vmatprep.subr.mxu0 0.0
    %822 = vmatpush1.msra.mxu0 0.0
    %823 = vmatprep.subr.mxu0 0.0
    %824 = vmatpush1.msra.mxu0 0.0
    %825 = vmatprep.subr.mxu0 0.0
    %826 = vmatpush1.msra.mxu0 0.0
    %827 = vmatprep.subr.mxu0 0.0
    %828 = vmatpush1.msra.mxu0 0.0
    %829 = vmatprep.subr.mxu0 0.0
    %830 = vmatpush1.msra.mxu0 0.0
    %831 = vmatprep.subr.mxu0 0.0
    %832 = vmatpush1.msra.mxu0 0.0
    %833 = vmatprep.subr.mxu0 0.0
    %834 = vmatpush1.msra.mxu0 0.0
    %835 = vmatprep.subr.mxu0 0.0
    %836 = vmatpush1.msra.mxu0 0.0
    %837 = vmatprep.subr.mxu0 0.0
    %838 = vmatpush1.msra.mxu0 0.0
    %839 = vmatprep.subr.mxu0 0.0
    %840 = vmatpush1.msra.mxu0 0.0
    %841 = vmatprep.subr.mxu0 0.0
    %842 = vmatpush1.msra.mxu0 0.0
    %843 = vmatprep.subr.mxu0 0.0
    %844 = vmatpush1.msra.mxu0 0.0
    %845 = vmatprep.subr.mxu0 0.0
    %846 = vmatpush1.msra.mxu0 0.0
    %847 = vmatprep.subr.mxu0 0.0
    %848 = vmatpush1.msra.mxu0 0.0
    %849 = vmatprep.subr.mxu0 0.0
    %850 = vmatpush1.msra.mxu0 0.0
    %851 = vmatprep.subr.mxu0 0.0
    %852 = vmatpush1.msra.mxu0 0.0
    %853 = vmatprep.subr.mxu0 0.0
    %854 = vmatpush1.msra.mxu0 0.0
    %855 = vmatprep.subr.mxu0 0.0
    %856 = vmatpush1.msra.mxu0 0.0
    %857 = vmatprep.subr.mxu0 0.0
    %858 = vmatpush1.msra.mxu0 0.0
    %859 = vmatprep.subr.mxu0 0.0
    %860 = vmatpush1.msra.mxu0 0.0
    %861 = vmatprep.subr.mxu0 0.0
    %862 = vmatpush1.msra.mxu0 0.0
    %863 = vmatprep.subr.mxu0 0.0
    %864 = vmatpush1.msra.mxu0 0.0
    %865 = vmatprep.subr.mxu0 0.0
    %866 = vmatpush1.msra.mxu0 0.0
    %867 = vmatprep.subr.mxu0 0.0
    %868 = vmatpush1.msra.mxu0 0.0
    %869 = vmatprep.subr.mxu0 0.0
    %870 = vmatpush1.msra.mxu0 0.0
    %871 = vmatprep.subr.mxu0 0.0
    %872 = vmatpush1.msra.mxu0 0.0
    %873 = vmatprep.mubr.f32.mxu0 0.0
    %874 = vmatmul.mubr.f32.gmra.mrb[0].mxu0 %v807
    %v875 = vpop.f32.mrb[0].mxu0
    %v876 = vadd.f32 0.0, %v875
    %v877 = vpop.f32.mrb[0].mxu0
    %878 = vdwg.mxu0
    %v879 = vadd.f32 %v806, %v876
    %v880 = vtanh.pop %v879
    %v881 = vxor.u32 %v879, 2147483648
    %v882 = vmul.f32 %v881, 1.442695
    %v883 = vpow.pop %v882
    %v884 = vadd.f32 %v883, 1.0
    %v885 = vrcp.pop %v884
    %v886 = vmul.f32 1.0, %v885
    %v887 = vsel %vm59, %v880, %v886
    %v888 = vmul.f32 %v887, %v794
    %890 = vrot.lane.b32.xlu0 %v887, 64
    %v891 = vpop.permute.xlu0 %890
    %v893 = vmul.f32 %v887, %v891
    %895 = vrot.lane.b32.xlu0 %v893, 32
    %v896 = vpop.permute.xlu0 %895
    %v898 = vadd.f32 %v888, %v896
    %v899 = vtanh.pop %v898
    %901 = vrot.lane.b32.xlu0 %v899, 64
    %v902 = vpop.permute.xlu0 %901
    %v904 = vmul.f32 %v887, %v902
    %906 = vrot.lane.b32.xlu0 %v904, 32
    %v907 = vpop.permute.xlu0 %906
    %909 = vst.msk [vmem:[#allocation2 + $0xc] sm:$0x3] %vm284, %v907
    %v910 = vld [vmem:[#allocation3 + $0xe] sm:$0x3]
    %v911 = vsel %vm180, %v907, 0
    %913 = vmatprep.subr.mxu0 0.0
    %914 = vmatpush1.msra.mxu0 %v62
    %915 = vmatprep.subr.mxu0 0.0
    %916 = vmatpush1.msra.mxu0 %v63
    %917 = vmatprep.subr.mxu0 0.0
    %918 = vmatpush1.msra.mxu0 %v64
    %919 = vmatprep.subr.mxu0 0.0
    %920 = vmatpush1.msra.mxu0 %v65
    %921 = vmatprep.subr.mxu0 0.0
    %922 = vmatpush1.msra.mxu0 0.0
    %923 = vmatprep.subr.mxu0 0.0
    %924 = vmatpush1.msra.mxu0 0.0
    %925 = vmatprep.subr.mxu0 0.0
    %926 = vmatpush1.msra.mxu0 0.0
    %927 = vmatprep.subr.mxu0 0.0
    %928 = vmatpush1.msra.mxu0 0.0
    %929 = vmatprep.subr.mxu0 0.0
    %930 = vmatpush1.msra.mxu0 0.0
    %931 = vmatprep.subr.mxu0 0.0
    %932 = vmatpush1.msra.mxu0 0.0
    %933 = vmatprep.subr.mxu0 0.0
    %934 = vmatpush1.msra.mxu0 0.0
    %935 = vmatprep.subr.mxu0 0.0
    %936 = vmatpush1.msra.mxu0 0.0
    %937 = vmatprep.subr.mxu0 0.0
    %938 = vmatpush1.msra.mxu0 0.0
    %939 = vmatprep.subr.mxu0 0.0
    %940 = vmatpush1.msra.mxu0 0.0
    %941 = vmatprep.subr.mxu0 0.0
    %942 = vmatpush1.msra.mxu0 0.0
    %943 = vmatprep.subr.mxu0 0.0
    %944 = vmatpush1.msra.mxu0 0.0
    %945 = vmatprep.subr.mxu0 0.0
    %946 = vmatpush1.msra.mxu0 0.0
    %947 = vmatprep.subr.mxu0 0.0
    %948 = vmatpush1.msra.mxu0 0.0
    %949 = vmatprep.subr.mxu0 0.0
    %950 = vmatpush1.msra.mxu0 0.0
    %951 = vmatprep.subr.mxu0 0.0
    %952 = vmatpush1.msra.mxu0 0.0
    %953 = vmatprep.subr.mxu0 0.0
    %954 = vmatpush1.msra.mxu0 0.0
    %955 = vmatprep.subr.mxu0 0.0
    %956 = vmatpush1.msra.mxu0 0.0
    %957 = vmatprep.subr.mxu0 0.0
    %958 = vmatpush1.msra.mxu0 0.0
    %959 = vmatprep.subr.mxu0 0.0
    %960 = vmatpush1.msra.mxu0 0.0
    %961 = vmatprep.subr.mxu0 0.0
    %962 = vmatpush1.msra.mxu0 0.0
    %963 = vmatprep.subr.mxu0 0.0
    %964 = vmatpush1.msra.mxu0 0.0
    %965 = vmatprep.subr.mxu0 0.0
    %966 = vmatpush1.msra.mxu0 0.0
    %967 = vmatprep.subr.mxu0 0.0
    %968 = vmatpush1.msra.mxu0 0.0
    %969 = vmatprep.subr.mxu0 0.0
    %970 = vmatpush1.msra.mxu0 0.0
    %971 = vmatprep.subr.mxu0 0.0
    %972 = vmatpush1.msra.mxu0 0.0
    %973 = vmatprep.subr.mxu0 0.0
    %974 = vmatpush1.msra.mxu0 0.0
    %975 = vmatprep.subr.mxu0 0.0
    %976 = vmatpush1.msra.mxu0 0.0
    %977 = vmatprep.mubr.f32.mxu0 0.0
    %978 = vmatmul.mubr.f32.gmra.mrb[0].mxu0 %v911
    %v979 = vpop.f32.mrb[0].mxu0
    %v980 = vadd.f32 0.0, %v979
    %v981 = vpop.f32.mrb[0].mxu0
    %982 = vdwg.mxu0
    %v983 = vadd.f32 %v910, %v980
    %v984 = vtanh.pop %v983
    %v985 = vxor.u32 %v983, 2147483648
    %v986 = vmul.f32 %v985, 1.442695
    %v987 = vpow.pop %v986
    %v988 = vadd.f32 %v987, 1.0
    %v989 = vrcp.pop %v988
    %v990 = vmul.f32 1.0, %v989
    %v991 = vsel %vm59, %v984, %v990
    %v992 = vmul.f32 %v991, %v898
    %994 = vrot.lane.b32.xlu0 %v991, 64
    %v995 = vpop.permute.xlu0 %994
    %v997 = vmul.f32 %v991, %v995
    %999 = vrot.lane.b32.xlu0 %v997, 32
    %v1000 = vpop.permute.xlu0 %999
    %v1002 = vadd.f32 %v992, %v1000
    %v1003 = vtanh.pop %v1002
    %1005 = vrot.lane.b32.xlu0 %v1003, 64
    %v1006 = vpop.permute.xlu0 %1005
    %v1008 = vmul.f32 %v991, %v1006
    %1010 = vrot.lane.b32.xlu0 %v1008, 32
    %v1011 = vpop.permute.xlu0 %1010
    %1013 = vst.msk [vmem:[#allocation2 + $0xe] sm:$0x3] %vm284, %v1011
    %v1014 = vld [vmem:[#allocation3 + $0x10] sm:$0x3]
    %v1015 = vsel %vm180, %v1011, 0
    %1017 = vmatprep.subr.mxu0 0.0
    %1018 = vmatpush1.msra.mxu0 %v62
    %1019 = vmatprep.subr.mxu0 0.0
    %1020 = vmatpush1.msra.mxu0 %v63
    %1021 = vmatprep.subr.mxu0 0.0
    %1022 = vmatpush1.msra.mxu0 %v64
    %1023 = vmatprep.subr.mxu0 0.0
    %1024 = vmatpush1.msra.mxu0 %v65
    %1025 = vmatprep.subr.mxu0 0.0
    %1026 = vmatpush1.msra.mxu0 0.0
    %1027 = vmatprep.subr.mxu0 0.0
    %1028 = vmatpush1.msra.mxu0 0.0
    %1029 = vmatprep.subr.mxu0 0.0
    %1030 = vmatpush1.msra.mxu0 0.0
    %1031 = vmatprep.subr.mxu0 0.0
    %1032 = vmatpush1.msra.mxu0 0.0
    %1033 = vmatprep.subr.mxu0 0.0
    %1034 = vmatpush1.msra.mxu0 0.0
    %1035 = vmatprep.subr.mxu0 0.0
    %1036 = vmatpush1.msra.mxu0 0.0
    %1037 = vmatprep.subr.mxu0 0.0
    %1038 = vmatpush1.msra.mxu0 0.0
    %1039 = vmatprep.subr.mxu0 0.0
    %1040 = vmatpush1.msra.mxu0 0.0
    %1041 = vmatprep.subr.mxu0 0.0
    %1042 = vmatpush1.msra.mxu0 0.0
    %1043 = vmatprep.subr.mxu0 0.0
    %1044 = vmatpush1.msra.mxu0 0.0
    %1045 = vmatprep.subr.mxu0 0.0
    %1046 = vmatpush1.msra.mxu0 0.0
    %1047 = vmatprep.subr.mxu0 0.0
    %1048 = vmatpush1.msra.mxu0 0.0
    %1049 = vmatprep.subr.mxu0 0.0
    %1050 = vmatpush1.msra.mxu0 0.0
    %1051 = vmatprep.subr.mxu0 0.0
    %1052 = vmatpush1.msra.mxu0 0.0
    %1053 = vmatprep.subr.mxu0 0.0
    %1054 = vmatpush1.msra.mxu0 0.0
    %1055 = vmatprep.subr.mxu0 0.0
    %1056 = vmatpush1.msra.mxu0 0.0
    %1057 = vmatprep.subr.mxu0 0.0
    %1058 = vmatpush1.msra.mxu0 0.0
    %1059 = vmatprep.subr.mxu0 0.0
    %1060 = vmatpush1.msra.mxu0 0.0
    %1061 = vmatprep.subr.mxu0 0.0
    %1062 = vmatpush1.msra.mxu0 0.0
    %1063 = vmatprep.subr.mxu0 0.0
    %1064 = vmatpush1.msra.mxu0 0.0
    %1065 = vmatprep.subr.mxu0 0.0
    %1066 = vmatpush1.msra.mxu0 0.0
    %1067 = vmatprep.subr.mxu0 0.0
    %1068 = vmatpush1.msra.mxu0 0.0
    %1069 = vmatprep.subr.mxu0 0.0
    %1070 = vmatpush1.msra.mxu0 0.0
    %1071 = vmatprep.subr.mxu0 0.0
    %1072 = vmatpush1.msra.mxu0 0.0
    %1073 = vmatprep.subr.mxu0 0.0
    %1074 = vmatpush1.msra.mxu0 0.0
    %1075 = vmatprep.subr.mxu0 0.0
    %1076 = vmatpush1.msra.mxu0 0.0
    %1077 = vmatprep.subr.mxu0 0.0
    %1078 = vmatpush1.msra.mxu0 0.0
    %1079 = vmatprep.subr.mxu0 0.0
    %1080 = vmatpush1.msra.mxu0 0.0
    %1081 = vmatprep.mubr.f32.mxu0 0.0
    %1082 = vmatmul.mubr.f32.gmra.mrb[0].mxu0 %v1015
    %v1083 = vpop.f32.mrb[0].mxu0
    %v1084 = vadd.f32 0.0, %v1083
    %v1085 = vpop.f32.mrb[0].mxu0
    %1086 = vdwg.mxu0
    %v1087 = vadd.f32 %v1014, %v1084
    %v1088 = vtanh.pop %v1087
    %v1089 = vxor.u32 %v1087, 2147483648
    %v1090 = vmul.f32 %v1089, 1.442695
    %v1091 = vpow.pop %v1090
    %v1092 = vadd.f32 %v1091, 1.0
    %v1093 = vrcp.pop %v1092
    %v1094 = vmul.f32 1.0, %v1093
    %v1095 = vsel %vm59, %v1088, %v1094
    %v1096 = vmul.f32 %v1095, %v1002
    %1098 = vrot.lane.b32.xlu0 %v1095, 64
    %v1099 = vpop.permute.xlu0 %1098
    %v1101 = vmul.f32 %v1095, %v1099
    %1103 = vrot.lane.b32.xlu0 %v1101, 32
    %v1104 = vpop.permute.xlu0 %1103
    %v1106 = vadd.f32 %v1096, %v1104
    %v1107 = vtanh.pop %v1106
    %1109 = vrot.lane.b32.xlu0 %v1107, 64
    %v1110 = vpop.permute.xlu0 %1109
    %v1112 = vmul.f32 %v1095, %v1110
    %1114 = vrot.lane.b32.xlu0 %v1112, 32
    %v1115 = vpop.permute.xlu0 %1114
    %1117 = vst.msk [vmem:[#allocation2 + $0x10] sm:$0x3] %vm284, %v1115
    %v1118 = vld [vmem:[#allocation3 + $0x12] sm:$0x3]
    %v1119 = vsel %vm180, %v1115, 0
    %1121 = vmatprep.subr.mxu0 0.0
    %1122 = vmatpush1.msra.mxu0 %v62
    %1123 = vmatprep.subr.mxu0 0.0
    %1124 = vmatpush1.msra.mxu0 %v63
    %1125 = vmatprep.subr.mxu0 0.0
    %1126 = vmatpush1.msra.mxu0 %v64
    %1127 = vmatprep.subr.mxu0 0.0
    %1128 = vmatpush1.msra.mxu0 %v65
    %1129 = vmatprep.subr.mxu0 0.0
    %1130 = vmatpush1.msra.mxu0 0.0
    %1131 = vmatprep.subr.mxu0 0.0
    %1132 = vmatpush1.msra.mxu0 0.0
    %1133 = vmatprep.subr.mxu0 0.0
    %1134 = vmatpush1.msra.mxu0 0.0
    %1135 = vmatprep.subr.mxu0 0.0
    %1136 = vmatpush1.msra.mxu0 0.0
    %1137 = vmatprep.subr.mxu0 0.0
    %1138 = vmatpush1.msra.mxu0 0.0
    %1139 = vmatprep.subr.mxu0 0.0
    %1140 = vmatpush1.msra.mxu0 0.0
    %1141 = vmatprep.subr.mxu0 0.0
    %1142 = vmatpush1.msra.mxu0 0.0
    %1143 = vmatprep.subr.mxu0 0.0
    %1144 = vmatpush1.msra.mxu0 0.0
    %1145 = vmatprep.subr.mxu0 0.0
    %1146 = vmatpush1.msra.mxu0 0.0
    %1147 = vmatprep.subr.mxu0 0.0
    %1148 = vmatpush1.msra.mxu0 0.0
    %1149 = vmatprep.subr.mxu0 0.0
    %1150 = vmatpush1.msra.mxu0 0.0
    %1151 = vmatprep.subr.mxu0 0.0
    %1152 = vmatpush1.msra.mxu0 0.0
    %1153 = vmatprep.subr.mxu0 0.0
    %1154 = vmatpush1.msra.mxu0 0.0
    %1155 = vmatprep.subr.mxu0 0.0
    %1156 = vmatpush1.msra.mxu0 0.0
    %1157 = vmatprep.subr.mxu0 0.0
    %1158 = vmatpush1.msra.mxu0 0.0
    %1159 = vmatprep.subr.mxu0 0.0
    %1160 = vmatpush1.msra.mxu0 0.0
    %1161 = vmatprep.subr.mxu0 0.0
    %1162 = vmatpush1.msra.mxu0 0.0
    %1163 = vmatprep.subr.mxu0 0.0
    %1164 = vmatpush1.msra.mxu0 0.0
    %1165 = vmatprep.subr.mxu0 0.0
    %1166 = vmatpush1.msra.mxu0 0.0
    %1167 = vmatprep.subr.mxu0 0.0
    %1168 = vmatpush1.msra.mxu0 0.0
    %1169 = vmatprep.subr.mxu0 0.0
    %1170 = vmatpush1.msra.mxu0 0.0
    %1171 = vmatprep.subr.mxu0 0.0
    %1172 = vmatpush1.msra.mxu0 0.0
    %1173 = vmatprep.subr.mxu0 0.0
    %1174 = vmatpush1.msra.mxu0 0.0
    %1175 = vmatprep.subr.mxu0 0.0
    %1176 = vmatpush1.msra.mxu0 0.0
    %1177 = vmatprep.subr.mxu0 0.0
    %1178 = vmatpush1.msra.mxu0 0.0
    %1179 = vmatprep.subr.mxu0 0.0
    %1180 = vmatpush1.msra.mxu0 0.0
    %1181 = vmatprep.subr.mxu0 0.0
    %1182 = vmatpush1.msra.mxu0 0.0
    %1183 = vmatprep.subr.mxu0 0.0
    %1184 = vmatpush1.msra.mxu0 0.0
    %1185 = vmatprep.mubr.f32.mxu0 0.0
    %1186 = vmatmul.mubr.f32.gmra.mrb[0].mxu0 %v1119
    %v1187 = vpop.f32.mrb[0].mxu0
    %v1188 = vadd.f32 0.0, %v1187
    %v1189 = vpop.f32.mrb[0].mxu0
    %1190 = vdwg.mxu0
    %v1191 = vadd.f32 %v1118, %v1188
    %v1192 = vtanh.pop %v1191
    %v1193 = vxor.u32 %v1191, 2147483648
    %v1194 = vmul.f32 %v1193, 1.442695
    %v1195 = vpow.pop %v1194
    %v1196 = vadd.f32 %v1195, 1.0
    %v1197 = vrcp.pop %v1196
    %v1198 = vmul.f32 1.0, %v1197
    %v1199 = vsel %vm59, %v1192, %v1198
    %v1200 = vmul.f32 %v1199, %v1106
    %1202 = vrot.lane.b32.xlu0 %v1199, 64
    %v1203 = vpop.permute.xlu0 %1202
    %v1205 = vmul.f32 %v1199, %v1203
    %1207 = vrot.lane.b32.xlu0 %v1205, 32
    %v1208 = vpop.permute.xlu0 %1207
    %v1210 = vadd.f32 %v1200, %v1208
    %v1211 = vtanh.pop %v1210
    %1213 = vrot.lane.b32.xlu0 %v1211, 64
    %v1214 = vpop.permute.xlu0 %1213
    %v1216 = vmul.f32 %v1199, %v1214
    %1218 = vrot.lane.b32.xlu0 %v1216, 32
    %v1219 = vpop.permute.xlu0 %1218
    %1221 = vst.msk [vmem:[#allocation2 + $0x12] sm:$0x3] %vm284, %v1219
    %v1222 = vld [vmem:[#allocation3 + $0x14] sm:$0x3]
    %v1223 = vsel %vm180, %v1219, 0
    %1225 = vmatprep.subr.mxu0 0.0
    %1226 = vmatpush1.msra.mxu0 %v62
    %1227 = vmatprep.subr.mxu0 0.0
    %1228 = vmatpush1.msra.mxu0 %v63
    %1229 = vmatprep.subr.mxu0 0.0
    %1230 = vmatpush1.msra.mxu0 %v64
    %1231 = vmatprep.subr.mxu0 0.0
    %1232 = vmatpush1.msra.mxu0 %v65
    %1233 = vmatprep.subr.mxu0 0.0
    %1234 = vmatpush1.msra.mxu0 0.0
    %1235 = vmatprep.subr.mxu0 0.0
    %1236 = vmatpush1.msra.mxu0 0.0
    %1237 = vmatprep.subr.mxu0 0.0
    %1238 = vmatpush1.msra.mxu0 0.0
    %1239 = vmatprep.subr.mxu0 0.0
    %1240 = vmatpush1.msra.mxu0 0.0
    %1241 = vmatprep.subr.mxu0 0.0
    %1242 = vmatpush1.msra.mxu0 0.0
    %1243 = vmatprep.subr.mxu0 0.0
    %1244 = vmatpush1.msra.mxu0 0.0
    %1245 = vmatprep.subr.mxu0 0.0
    %1246 = vmatpush1.msra.mxu0 0.0
    %1247 = vmatprep.subr.mxu0 0.0
    %1248 = vmatpush1.msra.mxu0 0.0
    %1249 = vmatprep.subr.mxu0 0.0
    %1250 = vmatpush1.msra.mxu0 0.0
    %1251 = vmatprep.subr.mxu0 0.0
    %1252 = vmatpush1.msra.mxu0 0.0
    %1253 = vmatprep.subr.mxu0 0.0
    %1254 = vmatpush1.msra.mxu0 0.0
    %1255 = vmatprep.subr.mxu0 0.0
    %1256 = vmatpush1.msra.mxu0 0.0
    %1257 = vmatprep.subr.mxu0 0.0
    %1258 = vmatpush1.msra.mxu0 0.0
    %1259 = vmatprep.subr.mxu0 0.0
    %1260 = vmatpush1.msra.mxu0 0.0
    %1261 = vmatprep.subr.mxu0 0.0
    %1262 = vmatpush1.msra.mxu0 0.0
    %1263 = vmatprep.subr.mxu0 0.0
    %1264 = vmatpush1.msra.mxu0 0.0
    %1265 = vmatprep.subr.mxu0 0.0
    %1266 = vmatpush1.msra.mxu0 0.0
    %1267 = vmatprep.subr.mxu0 0.0
    %1268 = vmatpush1.msra.mxu0 0.0
    %1269 = vmatprep.subr.mxu0 0.0
    %1270 = vmatpush1.msra.mxu0 0.0
    %1271 = vmatprep.subr.mxu0 0.0
    %1272 = vmatpush1.msra.mxu0 0.0
    %1273 = vmatprep.subr.mxu0 0.0
    %1274 = vmatpush1.msra.mxu0 0.0
    %1275 = vmatprep.subr.mxu0 0.0
    %1276 = vmatpush1.msra.mxu0 0.0
    %1277 = vmatprep.subr.mxu0 0.0
    %1278 = vmatpush1.msra.mxu0 0.0
    %1279 = vmatprep.subr.mxu0 0.0
    %1280 = vmatpush1.msra.mxu0 0.0
    %1281 = vmatprep.subr.mxu0 0.0
    %1282 = vmatpush1.msra.mxu0 0.0
    %1283 = vmatprep.subr.mxu0 0.0
    %1284 = vmatpush1.msra.mxu0 0.0
    %1285 = vmatprep.subr.mxu0 0.0
    %1286 = vmatpush1.msra.mxu0 0.0
    %1287 = vmatprep.subr.mxu0 0.0
    %1288 = vmatpush1.msra.mxu0 0.0
    %1289 = vmatprep.mubr.f32.mxu0 0.0
    %1290 = vmatmul.mubr.f32.gmra.mrb[0].mxu0 %v1223
    %v1291 = vpop.f32.mrb[0].mxu0
    %v1292 = vadd.f32 0.0, %v1291
    %v1293 = vpop.f32.mrb[0].mxu0
    %1294 = vdwg.mxu0
    %v1295 = vadd.f32 %v1222, %v1292
    %v1296 = vtanh.pop %v1295
    %v1297 = vxor.u32 %v1295, 2147483648
    %v1298 = vmul.f32 %v1297, 1.442695
    %v1299 = vpow.pop %v1298
    %v1300 = vadd.f32 %v1299, 1.0
    %v1301 = vrcp.pop %v1300
    %v1302 = vmul.f32 1.0, %v1301
    %v1303 = vsel %vm59, %v1296, %v1302
    %v1304 = vmul.f32 %v1303, %v1210
    %1306 = vrot.lane.b32.xlu0 %v1303, 64
    %v1307 = vpop.permute.xlu0 %1306
    %v1309 = vmul.f32 %v1303, %v1307
    %1311 = vrot.lane.b32.xlu0 %v1309, 32
    %v1312 = vpop.permute.xlu0 %1311
    %v1314 = vadd.f32 %v1304, %v1312
    %v1315 = vtanh.pop %v1314
    %1317 = vrot.lane.b32.xlu0 %v1315, 64
    %v1318 = vpop.permute.xlu0 %1317
    %v1320 = vmul.f32 %v1303, %v1318
    %1322 = vrot.lane.b32.xlu0 %v1320, 32
    %v1323 = vpop.permute.xlu0 %1322
    %1325 = vst.msk [vmem:[#allocation2 + $0x14] sm:$0x3] %vm284, %v1323
    %v1326 = vld [vmem:[#allocation3 + $0x16] sm:$0x3]
    %v1327 = vsel %vm180, %v1323, 0
    %1329 = vmatprep.subr.mxu0 0.0
    %1330 = vmatpush1.msra.mxu0 %v62
    %1331 = vmatprep.subr.mxu0 0.0
    %1332 = vmatpush1.msra.mxu0 %v63
    %1333 = vmatprep.subr.mxu0 0.0
    %1334 = vmatpush1.msra.mxu0 %v64
    %1335 = vmatprep.subr.mxu0 0.0
    %1336 = vmatpush1.msra.mxu0 %v65
    %1337 = vmatprep.subr.mxu0 0.0
    %1338 = vmatpush1.msra.mxu0 0.0
    %1339 = vmatprep.subr.mxu0 0.0
    %1340 = vmatpush1.msra.mxu0 0.0
    %1341 = vmatprep.subr.mxu0 0.0
    %1342 = vmatpush1.msra.mxu0 0.0
    %1343 = vmatprep.subr.mxu0 0.0
    %1344 = vmatpush1.msra.mxu0 0.0
    %1345 = vmatprep.subr.mxu0 0.0
    %1346 = vmatpush1.msra.mxu0 0.0
    %1347 = vmatprep.subr.mxu0 0.0
    %1348 = vmatpush1.msra.mxu0 0.0
    %1349 = vmatprep.subr.mxu0 0.0
    %1350 = vmatpush1.msra.mxu0 0.0
    %1351 = vmatprep.subr.mxu0 0.0
    %1352 = vmatpush1.msra.mxu0 0.0
    %1353 = vmatprep.subr.mxu0 0.0
    %1354 = vmatpush1.msra.mxu0 0.0
    %1355 = vmatprep.subr.mxu0 0.0
    %1356 = vmatpush1.msra.mxu0 0.0
    %1357 = vmatprep.subr.mxu0 0.0
    %1358 = vmatpush1.msra.mxu0 0.0
    %1359 = vmatprep.subr.mxu0 0.0
    %1360 = vmatpush1.msra.mxu0 0.0
    %1361 = vmatprep.subr.mxu0 0.0
    %1362 = vmatpush1.msra.mxu0 0.0
    %1363 = vmatprep.subr.mxu0 0.0
    %1364 = vmatpush1.msra.mxu0 0.0
    %1365 = vmatprep.subr.mxu0 0.0
    %1366 = vmatpush1.msra.mxu0 0.0
    %1367 = vmatprep.subr.mxu0 0.0
    %1368 = vmatpush1.msra.mxu0 0.0
    %1369 = vmatprep.subr.mxu0 0.0
    %1370 = vmatpush1.msra.mxu0 0.0
    %1371 = vmatprep.subr.mxu0 0.0
    %1372 = vmatpush1.msra.mxu0 0.0
    %1373 = vmatprep.subr.mxu0 0.0
    %1374 = vmatpush1.msra.mxu0 0.0
    %1375 = vmatprep.subr.mxu0 0.0
    %1376 = vmatpush1.msra.mxu0 0.0
    %1377 = vmatprep.subr.mxu0 0.0
    %1378 = vmatpush1.msra.mxu0 0.0
    %1379 = vmatprep.subr.mxu0 0.0
    %1380 = vmatpush1.msra.mxu0 0.0
    %1381 = vmatprep.subr.mxu0 0.0
    %1382 = vmatpush1.msra.mxu0 0.0
    %1383 = vmatprep.subr.mxu0 0.0
    %1384 = vmatpush1.msra.mxu0 0.0
    %1385 = vmatprep.subr.mxu0 0.0
    %1386 = vmatpush1.msra.mxu0 0.0
    %1387 = vmatprep.subr.mxu0 0.0
    %1388 = vmatpush1.msra.mxu0 0.0
    %1389 = vmatprep.subr.mxu0 0.0
    %1390 = vmatpush1.msra.mxu0 0.0
    %1391 = vmatprep.subr.mxu0 0.0
    %1392 = vmatpush1.msra.mxu0 0.0
    %1393 = vmatprep.mubr.f32.mxu0 0.0
    %1394 = vmatmul.mubr.f32.gmra.mrb[0].mxu0 %v1327
    %v1395 = vpop.f32.mrb[0].mxu0
    %v1396 = vadd.f32 0.0, %v1395
    %v1397 = vpop.f32.mrb[0].mxu0
    %1398 = vdwg.mxu0
    %v1399 = vadd.f32 %v1326, %v1396
    %v1400 = vtanh.pop %v1399
    %v1401 = vxor.u32 %v1399, 2147483648
    %v1402 = vmul.f32 %v1401, 1.442695
    %v1403 = vpow.pop %v1402
    %v1404 = vadd.f32 %v1403, 1.0
    %v1405 = vrcp.pop %v1404
    %v1406 = vmul.f32 1.0, %v1405
    %v1407 = vsel %vm59, %v1400, %v1406
    %v1408 = vmul.f32 %v1407, %v1314
    %1410 = vrot.lane.b32.xlu0 %v1407, 64
    %v1411 = vpop.permute.xlu0 %1410
    %v1413 = vmul.f32 %v1407, %v1411
    %1415 = vrot.lane.b32.xlu0 %v1413, 32
    %v1416 = vpop.permute.xlu0 %1415
    %v1418 = vadd.f32 %v1408, %v1416
    %v1419 = vtanh.pop %v1418
    %1421 = vrot.lane.b32.xlu0 %v1419, 64
    %v1422 = vpop.permute.xlu0 %1421
    %v1424 = vmul.f32 %v1407, %v1422
    %1426 = vrot.lane.b32.xlu0 %v1424, 32
    %v1427 = vpop.permute.xlu0 %1426
    %1429 = vst.msk [vmem:[#allocation2 + $0x16] sm:$0x3] %vm284, %v1427
    %v1430 = vld [vmem:[#allocation3 + $0x18] sm:$0x3]
    %v1431 = vsel %vm180, %v1427, 0
    %1433 = vmatprep.subr.mxu0 0.0
    %1434 = vmatpush1.msra.mxu0 %v62
    %1435 = vmatprep.subr.mxu0 0.0
    %1436 = vmatpush1.msra.mxu0 %v63
    %1437 = vmatprep.subr.mxu0 0.0
    %1438 = vmatpush1.msra.mxu0 %v64
    %1439 = vmatprep.subr.mxu0 0.0
    %1440 = vmatpush1.msra.mxu0 %v65
    %1441 = vmatprep.subr.mxu0 0.0
    %1442 = vmatpush1.msra.mxu0 0.0
    %1443 = vmatprep.subr.mxu0 0.0
    %1444 = vmatpush1.msra.mxu0 0.0
    %1445 = vmatprep.subr.mxu0 0.0
    %1446 = vmatpush1.msra.mxu0 0.0
    %1447 = vmatprep.subr.mxu0 0.0
    %1448 = vmatpush1.msra.mxu0 0.0
    %1449 = vmatprep.subr.mxu0 0.0
    %1450 = vmatpush1.msra.mxu0 0.0
    %1451 = vmatprep.subr.mxu0 0.0
    %1452 = vmatpush1.msra.mxu0 0.0
    %1453 = vmatprep.subr.mxu0 0.0
    %1454 = vmatpush1.msra.mxu0 0.0
    %1455 = vmatprep.subr.mxu0 0.0
    %1456 = vmatpush1.msra.mxu0 0.0
    %1457 = vmatprep.subr.mxu0 0.0
    %1458 = vmatpush1.msra.mxu0 0.0
    %1459 = vmatprep.subr.mxu0 0.0
    %1460 = vmatpush1.msra.mxu0 0.0
    %1461 = vmatprep.subr.mxu0 0.0
    %1462 = vmatpush1.msra.mxu0 0.0
    %1463 = vmatprep.subr.mxu0 0.0
    %1464 = vmatpush1.msra.mxu0 0.0
    %1465 = vmatprep.subr.mxu0 0.0
    %1466 = vmatpush1.msra.mxu0 0.0
    %1467 = vmatprep.subr.mxu0 0.0
    %1468 = vmatpush1.msra.mxu0 0.0
    %1469 = vmatprep.subr.mxu0 0.0
    %1470 = vmatpush1.msra.mxu0 0.0
    %1471 = vmatprep.subr.mxu0 0.0
    %1472 = vmatpush1.msra.mxu0 0.0
    %1473 = vmatprep.subr.mxu0 0.0
    %1474 = vmatpush1.msra.mxu0 0.0
    %1475 = vmatprep.subr.mxu0 0.0
    %1476 = vmatpush1.msra.mxu0 0.0
    %1477 = vmatprep.subr.mxu0 0.0
    %1478 = vmatpush1.msra.mxu0 0.0
    %1479 = vmatprep.subr.mxu0 0.0
    %1480 = vmatpush1.msra.mxu0 0.0
    %1481 = vmatprep.subr.mxu0 0.0
    %1482 = vmatpush1.msra.mxu0 0.0
    %1483 = vmatprep.subr.mxu0 0.0
    %1484 = vmatpush1.msra.mxu0 0.0
    %1485 = vmatprep.subr.mxu0 0.0
    %1486 = vmatpush1.msra.mxu0 0.0
    %1487 = vmatprep.subr.mxu0 0.0
    %1488 = vmatpush1.msra.mxu0 0.0
    %1489 = vmatprep.subr.mxu0 0.0
    %1490 = vmatpush1.msra.mxu0 0.0
    %1491 = vmatprep.subr.mxu0 0.0
    %1492 = vmatpush1.msra.mxu0 0.0
    %1493 = vmatprep.subr.mxu0 0.0
    %1494 = vmatpush1.msra.mxu0 0.0
    %1495 = vmatprep.subr.mxu0 0.0
    %1496 = vmatpush1.msra.mxu0 0.0
    %1497 = vmatprep.mubr.f32.mxu0 0.0
    %1498 = vmatmul.mubr.f32.gmra.mrb[0].mxu0 %v1431
    %v1499 = vpop.f32.mrb[0].mxu0
    %v1500 = vadd.f32 0.0, %v1499
    %v1501 = vpop.f32.mrb[0].mxu0
    %1502 = vdwg.mxu0
    %v1503 = vadd.f32 %v1430, %v1500
    %v1504 = vtanh.pop %v1503
    %v1505 = vxor.u32 %v1503, 2147483648
    %v1506 = vmul.f32 %v1505, 1.442695
    %v1507 = vpow.pop %v1506
    %v1508 = vadd.f32 %v1507, 1.0
    %v1509 = vrcp.pop %v1508
    %v1510 = vmul.f32 1.0, %v1509
    %v1511 = vsel %vm59, %v1504, %v1510
    %v1512 = vmul.f32 %v1511, %v1418
    %1514 = vrot.lane.b32.xlu0 %v1511, 64
    %v1515 = vpop.permute.xlu0 %1514
    %v1517 = vmul.f32 %v1511, %v1515
    %1519 = vrot.lane.b32.xlu0 %v1517, 32
    %v1520 = vpop.permute.xlu0 %1519
    %v1522 = vadd.f32 %v1512, %v1520
    %v1523 = vtanh.pop %v1522
    %1525 = vrot.lane.b32.xlu0 %v1523, 64
    %v1526 = vpop.permute.xlu0 %1525
    %v1528 = vmul.f32 %v1511, %v1526
    %1530 = vrot.lane.b32.xlu0 %v1528, 32
    %v1531 = vpop.permute.xlu0 %1530
    %1533 = vst.msk [vmem:[#allocation2 + $0x18] sm:$0x3] %vm284, %v1531
    %v1534 = vld [vmem:[#allocation3 + $0x1a] sm:$0x3]
    %v1535 = vsel %vm180, %v1531, 0
    %1537 = vmatprep.subr.mxu0 0.0
    %1538 = vmatpush1.msra.mxu0 %v62
    %1539 = vmatprep.subr.mxu0 0.0
    %1540 = vmatpush1.msra.mxu0 %v63
    %1541 = vmatprep.subr.mxu0 0.0
    %1542 = vmatpush1.msra.mxu0 %v64
    %1543 = vmatprep.subr.mxu0 0.0
    %1544 = vmatpush1.msra.mxu0 %v65
    %1545 = vmatprep.subr.mxu0 0.0
    %1546 = vmatpush1.msra.mxu0 0.0
    %1547 = vmatprep.subr.mxu0 0.0
    %1548 = vmatpush1.msra.mxu0 0.0
    %1549 = vmatprep.subr.mxu0 0.0
    %1550 = vmatpush1.msra.mxu0 0.0
    %1551 = vmatprep.subr.mxu0 0.0
    %1552 = vmatpush1.msra.mxu0 0.0
    %1553 = vmatprep.subr.mxu0 0.0
    %1554 = vmatpush1.msra.mxu0 0.0
    %1555 = vmatprep.subr.mxu0 0.0
    %1556 = vmatpush1.msra.mxu0 0.0
    %1557 = vmatprep.subr.mxu0 0.0
    %1558 = vmatpush1.msra.mxu0 0.0
    %1559 = vmatprep.subr.mxu0 0.0
    %1560 = vmatpush1.msra.mxu0 0.0
    %1561 = vmatprep.subr.mxu0 0.0
    %1562 = vmatpush1.msra.mxu0 0.0
    %1563 = vmatprep.subr.mxu0 0.0
    %1564 = vmatpush1.msra.mxu0 0.0
    %1565 = vmatprep.subr.mxu0 0.0
    %1566 = vmatpush1.msra.mxu0 0.0
    %1567 = vmatprep.subr.mxu0 0.0
    %1568 = vmatpush1.msra.mxu0 0.0
    %1569 = vmatprep.subr.mxu0 0.0
    %1570 = vmatpush1.msra.mxu0 0.0
    %1571 = vmatprep.subr.mxu0 0.0
    %1572 = vmatpush1.msra.mxu0 0.0
    %1573 = vmatprep.subr.mxu0 0.0
    %1574 = vmatpush1.msra.mxu0 0.0
    %1575 = vmatprep.subr.mxu0 0.0
    %1576 = vmatpush1.msra.mxu0 0.0
    %1577 = vmatprep.subr.mxu0 0.0
    %1578 = vmatpush1.msra.mxu0 0.0
    %1579 = vmatprep.subr.mxu0 0.0
    %1580 = vmatpush1.msra.mxu0 0.0
    %1581 = vmatprep.subr.mxu0 0.0
    %1582 = vmatpush1.msra.mxu0 0.0
    %1583 = vmatprep.subr.mxu0 0.0
    %1584 = vmatpush1.msra.mxu0 0.0
    %1585 = vmatprep.subr.mxu0 0.0
    %1586 = vmatpush1.msra.mxu0 0.0
    %1587 = vmatprep.subr.mxu0 0.0
    %1588 = vmatpush1.msra.mxu0 0.0
    %1589 = vmatprep.subr.mxu0 0.0
    %1590 = vmatpush1.msra.mxu0 0.0
    %1591 = vmatprep.subr.mxu0 0.0
    %1592 = vmatpush1.msra.mxu0 0.0
    %1593 = vmatprep.subr.mxu0 0.0
    %1594 = vmatpush1.msra.mxu0 0.0
    %1595 = vmatprep.subr.mxu0 0.0
    %1596 = vmatpush1.msra.mxu0 0.0
    %1597 = vmatprep.subr.mxu0 0.0
    %1598 = vmatpush1.msra.mxu0 0.0
    %1599 = vmatprep.subr.mxu0 0.0
    %1600 = vmatpush1.msra.mxu0 0.0
    %1601 = vmatprep.mubr.f32.mxu0 0.0
    %1602 = vmatmul.mubr.f32.gmra.mrb[0].mxu0 %v1535
    %v1603 = vpop.f32.mrb[0].mxu0
    %v1604 = vadd.f32 0.0, %v1603
    %v1605 = vpop.f32.mrb[0].mxu0
    %1606 = vdwg.mxu0
    %v1607 = vadd.f32 %v1534, %v1604
    %v1608 = vtanh.pop %v1607
    %v1609 = vxor.u32 %v1607, 2147483648
    %v1610 = vmul.f32 %v1609, 1.442695
    %v1611 = vpow.pop %v1610
    %v1612 = vadd.f32 %v1611, 1.0
    %v1613 = vrcp.pop %v1612
    %v1614 = vmul.f32 1.0, %v1613
    %v1615 = vsel %vm59, %v1608, %v1614
    %v1616 = vmul.f32 %v1615, %v1522
    %1618 = vrot.lane.b32.xlu0 %v1615, 64
    %v1619 = vpop.permute.xlu0 %1618
    %v1621 = vmul.f32 %v1615, %v1619
    %1623 = vrot.lane.b32.xlu0 %v1621, 32
    %v1624 = vpop.permute.xlu0 %1623
    %v1626 = vadd.f32 %v1616, %v1624
    %v1627 = vtanh.pop %v1626
    %1629 = vrot.lane.b32.xlu0 %v1627, 64
    %v1630 = vpop.permute.xlu0 %1629
    %v1632 = vmul.f32 %v1615, %v1630
    %1634 = vrot.lane.b32.xlu0 %v1632, 32
    %v1635 = vpop.permute.xlu0 %1634
    %1637 = vst.msk [vmem:[#allocation2 + $0x1a] sm:$0x3] %vm284, %v1635
    %v1638 = vld [vmem:[#allocation3 + $0x1c] sm:$0x3]
    %v1639 = vsel %vm180, %v1635, 0
    %1641 = vmatprep.subr.mxu0 0.0
    %1642 = vmatpush1.msra.mxu0 %v62
    %1643 = vmatprep.subr.mxu0 0.0
    %1644 = vmatpush1.msra.mxu0 %v63
    %1645 = vmatprep.subr.mxu0 0.0
    %1646 = vmatpush1.msra.mxu0 %v64
    %1647 = vmatprep.subr.mxu0 0.0
    %1648 = vmatpush1.msra.mxu0 %v65
    %1649 = vmatprep.subr.mxu0 0.0
    %1650 = vmatpush1.msra.mxu0 0.0
    %1651 = vmatprep.subr.mxu0 0.0
    %1652 = vmatpush1.msra.mxu0 0.0
    %1653 = vmatprep.subr.mxu0 0.0
    %1654 = vmatpush1.msra.mxu0 0.0
    %1655 = vmatprep.subr.mxu0 0.0
    %1656 = vmatpush1.msra.mxu0 0.0
    %1657 = vmatprep.subr.mxu0 0.0
    %1658 = vmatpush1.msra.mxu0 0.0
    %1659 = vmatprep.subr.mxu0 0.0
    %1660 = vmatpush1.msra.mxu0 0.0
    %1661 = vmatprep.subr.mxu0 0.0
    %1662 = vmatpush1.msra.mxu0 0.0
    %1663 = vmatprep.subr.mxu0 0.0
    %1664 = vmatpush1.msra.mxu0 0.0
    %1665 = vmatprep.subr.mxu0 0.0
    %1666 = vmatpush1.msra.mxu0 0.0
    %1667 = vmatprep.subr.mxu0 0.0
    %1668 = vmatpush1.msra.mxu0 0.0
    %1669 = vmatprep.subr.mxu0 0.0
    %1670 = vmatpush1.msra.mxu0 0.0
    %1671 = vmatprep.subr.mxu0 0.0
    %1672 = vmatpush1.msra.mxu0 0.0
    %1673 = vmatprep.subr.mxu0 0.0
    %1674 = vmatpush1.msra.mxu0 0.0
    %1675 = vmatprep.subr.mxu0 0.0
    %1676 = vmatpush1.msra.mxu0 0.0
    %1677 = vmatprep.subr.mxu0 0.0
    %1678 = vmatpush1.msra.mxu0 0.0
    %1679 = vmatprep.subr.mxu0 0.0
    %1680 = vmatpush1.msra.mxu0 0.0
    %1681 = vmatprep.subr.mxu0 0.0
    %1682 = vmatpush1.msra.mxu0 0.0
    %1683 = vmatprep.subr.mxu0 0.0
    %1684 = vmatpush1.msra.mxu0 0.0
    %1685 = vmatprep.subr.mxu0 0.0
    %1686 = vmatpush1.msra.mxu0 0.0
    %1687 = vmatprep.subr.mxu0 0.0
    %1688 = vmatpush1.msra.mxu0 0.0
    %1689 = vmatprep.subr.mxu0 0.0
    %1690 = vmatpush1.msra.mxu0 0.0
    %1691 = vmatprep.subr.mxu0 0.0
    %1692 = vmatpush1.msra.mxu0 0.0
    %1693 = vmatprep.subr.mxu0 0.0
    %1694 = vmatpush1.msra.mxu0 0.0
    %1695 = vmatprep.subr.mxu0 0.0
    %1696 = vmatpush1.msra.mxu0 0.0
    %1697 = vmatprep.subr.mxu0 0.0
    %1698 = vmatpush1.msra.mxu0 0.0
    %1699 = vmatprep.subr.mxu0 0.0
    %1700 = vmatpush1.msra.mxu0 0.0
    %1701 = vmatprep.subr.mxu0 0.0
    %1702 = vmatpush1.msra.mxu0 0.0
    %1703 = vmatprep.subr.mxu0 0.0
    %1704 = vmatpush1.msra.mxu0 0.0
    %1705 = vmatprep.mubr.f32.mxu0 0.0
    %1706 = vmatmul.mubr.f32.gmra.mrb[0].mxu0 %v1639
    %v1707 = vpop.f32.mrb[0].mxu0
    %v1708 = vadd.f32 0.0, %v1707
    %v1709 = vpop.f32.mrb[0].mxu0
    %1710 = vdwg.mxu0
    %v1711 = vadd.f32 %v1638, %v1708
    %v1712 = vtanh.pop %v1711
    %v1713 = vxor.u32 %v1711, 2147483648
    %v1714 = vmul.f32 %v1713, 1.442695
    %v1715 = vpow.pop %v1714
    %v1716 = vadd.f32 %v1715, 1.0
    %v1717 = vrcp.pop %v1716
    %v1718 = vmul.f32 1.0, %v1717
    %v1719 = vsel %vm59, %v1712, %v1718
    %v1720 = vmul.f32 %v1719, %v1626
    %1722 = vrot.lane.b32.xlu0 %v1719, 64
    %v1723 = vpop.permute.xlu0 %1722
    %v1725 = vmul.f32 %v1719, %v1723
    %1727 = vrot.lane.b32.xlu0 %v1725, 32
    %v1728 = vpop.permute.xlu0 %1727
    %v1730 = vadd.f32 %v1720, %v1728
    %v1731 = vtanh.pop %v1730
    %1733 = vrot.lane.b32.xlu0 %v1731, 64
    %v1734 = vpop.permute.xlu0 %1733
    %v1736 = vmul.f32 %v1719, %v1734
    %1738 = vrot.lane.b32.xlu0 %v1736, 32
    %v1739 = vpop.permute.xlu0 %1738
    %1741 = vst.msk [vmem:[#allocation2 + $0x1c] sm:$0x3] %vm284, %v1739
    %v1742 = vld [vmem:[#allocation3 + $0x1e] sm:$0x3]
    %v1743 = vsel %vm180, %v1739, 0
    %1745 = vmatprep.subr.mxu0 0.0
    %1746 = vmatpush1.msra.mxu0 %v62
    %1747 = vmatprep.subr.mxu0 0.0
    %1748 = vmatpush1.msra.mxu0 %v63
    %1749 = vmatprep.subr.mxu0 0.0
    %1750 = vmatpush1.msra.mxu0 %v64
    %1751 = vmatprep.subr.mxu0 0.0
    %1752 = vmatpush1.msra.mxu0 %v65
    %1753 = vmatprep.subr.mxu0 0.0
    %1754 = vmatpush1.msra.mxu0 0.0
    %1755 = vmatprep.subr.mxu0 0.0
    %1756 = vmatpush1.msra.mxu0 0.0
    %1757 = vmatprep.subr.mxu0 0.0
    %1758 = vmatpush1.msra.mxu0 0.0
    %1759 = vmatprep.subr.mxu0 0.0
    %1760 = vmatpush1.msra.mxu0 0.0
    %1761 = vmatprep.subr.mxu0 0.0
    %1762 = vmatpush1.msra.mxu0 0.0
    %1763 = vmatprep.subr.mxu0 0.0
    %1764 = vmatpush1.msra.mxu0 0.0
    %1765 = vmatprep.subr.mxu0 0.0
    %1766 = vmatpush1.msra.mxu0 0.0
    %1767 = vmatprep.subr.mxu0 0.0
    %1768 = vmatpush1.msra.mxu0 0.0
    %1769 = vmatprep.subr.mxu0 0.0
    %1770 = vmatpush1.msra.mxu0 0.0
    %1771 = vmatprep.subr.mxu0 0.0
    %1772 = vmatpush1.msra.mxu0 0.0
    %1773 = vmatprep.subr.mxu0 0.0
    %1774 = vmatpush1.msra.mxu0 0.0
    %1775 = vmatprep.subr.mxu0 0.0
    %1776 = vmatpush1.msra.mxu0 0.0
    %1777 = vmatprep.subr.mxu0 0.0
    %1778 = vmatpush1.msra.mxu0 0.0
    %1779 = vmatprep.subr.mxu0 0.0
    %1780 = vmatpush1.msra.mxu0 0.0
    %1781 = vmatprep.subr.mxu0 0.0
    %1782 = vmatpush1.msra.mxu0 0.0
    %1783 = vmatprep.subr.mxu0 0.0
    %1784 = vmatpush1.msra.mxu0 0.0
    %1785 = vmatprep.subr.mxu0 0.0
    %1786 = vmatpush1.msra.mxu0 0.0
    %1787 = vmatprep.subr.mxu0 0.0
    %1788 = vmatpush1.msra.mxu0 0.0
    %1789 = vmatprep.subr.mxu0 0.0
    %1790 = vmatpush1.msra.mxu0 0.0
    %1791 = vmatprep.subr.mxu0 0.0
    %1792 = vmatpush1.msra.mxu0 0.0
    %1793 = vmatprep.subr.mxu0 0.0
    %1794 = vmatpush1.msra.mxu0 0.0
    %1795 = vmatprep.subr.mxu0 0.0
    %1796 = vmatpush1.msra.mxu0 0.0
    %1797 = vmatprep.subr.mxu0 0.0
    %1798 = vmatpush1.msra.mxu0 0.0
    %1799 = vmatprep.subr.mxu0 0.0
    %1800 = vmatpush1.msra.mxu0 0.0
    %1801 = vmatprep.subr.mxu0 0.0
    %1802 = vmatpush1.msra.mxu0 0.0
    %1803 = vmatprep.subr.mxu0 0.0
    %1804 = vmatpush1.msra.mxu0 0.0
    %1805 = vmatprep.subr.mxu0 0.0
    %1806 = vmatpush1.msra.mxu0 0.0
    %1807 = vmatprep.subr.mxu0 0.0
    %1808 = vmatpush1.msra.mxu0 0.0
    %1809 = vmatprep.mubr.f32.mxu0 0.0
    %1810 = vmatmul.mubr.f32.gmra.mrb[0].mxu0 %v1743
    %v1811 = vpop.f32.mrb[0].mxu0
    %v1812 = vadd.f32 0.0, %v1811
    %v1813 = vpop.f32.mrb[0].mxu0
    %1814 = vdwg.mxu0
    %v1815 = vadd.f32 %v1742, %v1812
    %v1816 = vtanh.pop %v1815
    %v1817 = vxor.u32 %v1815, 2147483648
    %v1818 = vmul.f32 %v1817, 1.442695
    %v1819 = vpow.pop %v1818
    %v1820 = vadd.f32 %v1819, 1.0
    %v1821 = vrcp.pop %v1820
    %v1822 = vmul.f32 1.0, %v1821
    %v1823 = vsel %vm59, %v1816, %v1822
    %v1824 = vmul.f32 %v1823, %v1730
    %1826 = vrot.lane.b32.xlu0 %v1823, 64
    %v1827 = vpop.permute.xlu0 %1826
    %v1829 = vmul.f32 %v1823, %v1827
    %1831 = vrot.lane.b32.xlu0 %v1829, 32
    %v1832 = vpop.permute.xlu0 %1831
    %v1834 = vadd.f32 %v1824, %v1832
    %v1835 = vtanh.pop %v1834
    %1837 = vrot.lane.b32.xlu0 %v1835, 64
    %v1838 = vpop.permute.xlu0 %1837
    %v1840 = vmul.f32 %v1823, %v1838
    %1842 = vrot.lane.b32.xlu0 %v1840, 32
    %v1843 = vpop.permute.xlu0 %1842
    %1845 = vst.msk [vmem:[#allocation2 + $0x1e] sm:$0x3] %vm284, %v1843
    %v1846 = vld [vmem:[#allocation7] sm:$0xff]
    %v1847 = vld [vmem:[#allocation7 + $0x8] sm:$0xff]
    %v1848 = vld [vmem:[#allocation7 + $0x10] sm:$0xff]
    %v1849 = vld [vmem:[#allocation7 + $0x18] sm:$0xff]
    %v1850 = vld [vmem:[%s5] sm:$0xff]
    %v1851 = vld [vmem:[%s5 + $0x8] sm:$0xff]
    %v1852 = vld [vmem:[%s5 + $0x10] sm:$0xff]
    %v1853 = vld [vmem:[%s5 + $0x18] sm:$0xff]
    %v1854 = vld [vmem:[%s6] sm:$0x1]
    %v1855 = vld [vmem:[#allocation2] sm:$0xff]
    %v1856 = vld [vmem:[#allocation2 + $0x8] sm:$0xff]
    %v1857 = vld [vmem:[#allocation2 + $0x10] sm:$0xff]
    %v1858 = vld [vmem:[#allocation2 + $0x18] sm:$0xff]
    %v1860 = vlaneseq
    %v1861 = vshrl.u32 %v1860, 7
    %v1862 = vsub.s32 0, %v1861
    %v1863 = vrot.slane %v1854, %v1862
    %v1866 = vsel %vm180, %v1855, 0
    %v1869 = vsel %vm180, %v1856, 0
    %v1872 = vsel %vm180, %v1857, 0
    %v1875 = vsel %vm180, %v1858, 0
    %1877 = vmatprep.subr.mxu0 0.0
    %1878 = vmatpush1.msra.mxu0 %v1846
    %1879 = vmatprep.subr.mxu0 0.0
    %1880 = vmatpush1.msra.mxu0 %v1847
    %1881 = vmatprep.subr.mxu0 0.0
    %1882 = vmatpush1.msra.mxu0 %v1848
    %1883 = vmatprep.subr.mxu0 0.0
    %1884 = vmatpush1.msra.mxu0 %v1849
    %1885 = vmatprep.subr.mxu0 0.0
    %1886 = vmatpush1.msra.mxu0 0.0
    %1887 = vmatprep.subr.mxu0 0.0
    %1888 = vmatpush1.msra.mxu0 0.0
    %1889 = vmatprep.subr.mxu0 0.0
    %1890 = vmatpush1.msra.mxu0 0.0
    %1891 = vmatprep.subr.mxu0 0.0
    %1892 = vmatpush1.msra.mxu0 0.0
    %1893 = vmatprep.subr.mxu0 0.0
    %1894 = vmatpush1.msra.mxu0 0.0
    %1895 = vmatprep.subr.mxu0 0.0
    %1896 = vmatpush1.msra.mxu0 0.0
    %1897 = vmatprep.subr.mxu0 0.0
    %1898 = vmatpush1.msra.mxu0 0.0
    %1899 = vmatprep.subr.mxu0 0.0
    %1900 = vmatpush1.msra.mxu0 0.0
    %1901 = vmatprep.subr.mxu0 0.0
    %1902 = vmatpush1.msra.mxu0 0.0
    %1903 = vmatprep.subr.mxu0 0.0
    %1904 = vmatpush1.msra.mxu0 0.0
    %1905 = vmatprep.subr.mxu0 0.0
    %1906 = vmatpush1.msra.mxu0 0.0
    %1907 = vmatprep.subr.mxu0 0.0
    %1908 = vmatpush1.msra.mxu0 0.0
    %1909 = vmatprep.subr.mxu0 0.0
    %1910 = vmatpush1.msra.mxu0 0.0
    %1911 = vmatprep.subr.mxu0 0.0
    %1912 = vmatpush1.msra.mxu0 0.0
    %1913 = vmatprep.subr.mxu0 0.0
    %1914 = vmatpush1.msra.mxu0 0.0
    %1915 = vmatprep.subr.mxu0 0.0
    %1916 = vmatpush1.msra.mxu0 0.0
    %1917 = vmatprep.subr.mxu0 0.0
    %1918 = vmatpush1.msra.mxu0 0.0
    %1919 = vmatprep.subr.mxu0 0.0
    %1920 = vmatpush1.msra.mxu0 0.0
    %1921 = vmatprep.subr.mxu0 0.0
    %1922 = vmatpush1.msra.mxu0 0.0
    %1923 = vmatprep.subr.mxu0 0.0
    %1924 = vmatpush1.msra.mxu0 0.0
    %1925 = vmatprep.subr.mxu0 0.0
    %1926 = vmatpush1.msra.mxu0 0.0
    %1927 = vmatprep.subr.mxu0 0.0
    %1928 = vmatpush1.msra.mxu0 0.0
    %1929 = vmatprep.subr.mxu0 0.0
    %1930 = vmatpush1.msra.mxu0 0.0
    %1931 = vmatprep.subr.mxu0 0.0
    %1932 = vmatpush1.msra.mxu0 0.0
    %1933 = vmatprep.subr.mxu0 0.0
    %1934 = vmatpush1.msra.mxu0 0.0
    %1935 = vmatprep.subr.mxu0 0.0
    %1936 = vmatpush1.msra.mxu0 0.0
    %1937 = vmatprep.subr.mxu0 0.0
    %1938 = vmatpush1.msra.mxu0 0.0
    %1939 = vmatprep.subr.mxu0 0.0
    %1940 = vmatpush1.msra.mxu0 0.0
    %1941 = vmatprep.mubr.f32.mxu0 0.0
    %1942 = vmatmul.mubr.f32.gmra.mrb[0].mxu0 %v1866
    %v1943 = vpop.f32.mrb[0].mxu0
    %v1944 = vadd.f32 %v1863, %v1943
    %v1945 = vpop.f32.mrb[0].mxu0
    %1946 = vmatprep.mubr.f32.mxu0 0.0
    %1947 = vmatmul.mubr.f32.gmra.mrb[0].mxu0 %v1869
    %v1948 = vpop.f32.mrb[0].mxu0
    %v1949 = vadd.f32 %v1863, %v1948
    %v1950 = vpop.f32.mrb[0].mxu0
    %1951 = vmatprep.mubr.f32.mxu0 0.0
    %1952 = vmatmul.mubr.f32.gmra.mrb[0].mxu0 %v1872
    %v1953 = vpop.f32.mrb[0].mxu0
    %v1954 = vadd.f32 %v1863, %v1953
    %v1955 = vpop.f32.mrb[0].mxu0
    %1956 = vmatprep.mubr.f32.mxu0 0.0
    %1957 = vmatmul.mubr.f32.gmra.mrb[0].mxu0 %v1875
    %v1958 = vpop.f32.mrb[0].mxu0
    %v1959 = vadd.f32 %v1863, %v1958
    %v1960 = vpop.f32.mrb[0].mxu0
    %1961 = vdwg.mxu0
    %1962 = vst [vmem:[#allocation3] sm:$0xff] %v1944
    %1963 = vst [vmem:[#allocation3 + $0x8] sm:$0xff] %v1949
    %1964 = vst [vmem:[#allocation3 + $0x10] sm:$0xff] %v1954
    %1965 = vst [vmem:[#allocation3 + $0x18] sm:$0xff] %v1959
    %v1966 = vld [vmem:[#allocation3] sm:$0x3]
    %1967 = vmatprep.subr.mxu0 0.0
    %1968 = vmatpush1.msra.mxu0 %v1850
    %1969 = vmatprep.subr.mxu0 0.0
    %1970 = vmatpush1.msra.mxu0 %v1851
    %1971 = vmatprep.subr.mxu0 0.0
    %1972 = vmatpush1.msra.mxu0 %v1852
    %1973 = vmatprep.subr.mxu0 0.0
    %1974 = vmatpush1.msra.mxu0 %v1853
    %1975 = vmatprep.subr.mxu0 0.0
    %1976 = vmatpush1.msra.mxu0 0.0
    %1977 = vmatprep.subr.mxu0 0.0
    %1978 = vmatpush1.msra.mxu0 0.0
    %1979 = vmatprep.subr.mxu0 0.0
    %1980 = vmatpush1.msra.mxu0 0.0
    %1981 = vmatprep.subr.mxu0 0.0
    %1982 = vmatpush1.msra.mxu0 0.0
    %1983 = vmatprep.subr.mxu0 0.0
    %1984 = vmatpush1.msra.mxu0 0.0
    %1985 = vmatprep.subr.mxu0 0.0
    %1986 = vmatpush1.msra.mxu0 0.0
    %1987 = vmatprep.subr.mxu0 0.0
    %1988 = vmatpush1.msra.mxu0 0.0
    %1989 = vmatprep.subr.mxu0 0.0
    %1990 = vmatpush1.msra.mxu0 0.0
    %1991 = vmatprep.subr.mxu0 0.0
    %1992 = vmatpush1.msra.mxu0 0.0
    %1993 = vmatprep.subr.mxu0 0.0
    %1994 = vmatpush1.msra.mxu0 0.0
    %1995 = vmatprep.subr.mxu0 0.0
    %1996 = vmatpush1.msra.mxu0 0.0
    %1997 = vmatprep.subr.mxu0 0.0
    %1998 = vmatpush1.msra.mxu0 0.0
    %1999 = vmatprep.subr.mxu0 0.0
    %2000 = vmatpush1.msra.mxu0 0.0
    %2001 = vmatprep.subr.mxu0 0.0
    %2002 = vmatpush1.msra.mxu0 0.0
    %2003 = vmatprep.subr.mxu0 0.0
    %2004 = vmatpush1.msra.mxu0 0.0
    %2005 = vmatprep.subr.mxu0 0.0
    %2006 = vmatpush1.msra.mxu0 0.0
    %2007 = vmatprep.subr.mxu0 0.0
    %2008 = vmatpush1.msra.mxu0 0.0
    %2009 = vmatprep.subr.mxu0 0.0
    %2010 = vmatpush1.msra.mxu0 0.0
    %2011 = vmatprep.subr.mxu0 0.0
    %2012 = vmatpush1.msra.mxu0 0.0
    %2013 = vmatprep.subr.mxu0 0.0
    %2014 = vmatpush1.msra.mxu0 0.0
    %2015 = vmatprep.subr.mxu0 0.0
    %2016 = vmatpush1.msra.mxu0 0.0
    %2017 = vmatprep.subr.mxu0 0.0
    %2018 = vmatpush1.msra.mxu0 0.0
    %2019 = vmatprep.subr.mxu0 0.0
    %2020 = vmatpush1.msra.mxu0 0.0
    %2021 = vmatprep.subr.mxu0 0.0
    %2022 = vmatpush1.msra.mxu0 0.0
    %2023 = vmatprep.subr.mxu0 0.0
    %2024 = vmatpush1.msra.mxu0 0.0
    %2025 = vmatprep.subr.mxu0 0.0
    %2026 = vmatpush1.msra.mxu0 0.0
    %2027 = vmatprep.subr.mxu0 0.0
    %2028 = vmatpush1.msra.mxu0 0.0
    %2029 = vmatprep.subr.mxu0 0.0
    %2030 = vmatpush1.msra.mxu0 0.0
    %2031 = vmatprep.mubr.f32.mxu0 0.0
    %2032 = vmatmul.mubr.f32.gmra.mrb[0].mxu0 %v182
    %v2033 = vpop.f32.mrb[0].mxu0
    %v2034 = vadd.f32 0.0, %v2033
    %v2035 = vpop.f32.mrb[0].mxu0
    %2036 = vdwg.mxu0
    %v2037 = vadd.f32 %v1966, %v2034
    %v2038 = vtanh.pop %v2037
    %v2039 = vxor.u32 %v2037, 2147483648
    %v2040 = vmul.f32 %v2039, 1.442695
    %v2041 = vpow.pop %v2040
    %v2042 = vadd.f32 %v2041, 1.0
    %v2043 = vrcp.pop %v2042
    %v2044 = vmul.f32 1.0, %v2043
    %v2045 = vsel %vm59, %v2038, %v2044
    %v2046 = vmul.f32 %v2045, 0.0
    %2048 = vrot.lane.b32.xlu0 %v2045, 64
    %v2049 = vpop.permute.xlu0 %2048
    %v2051 = vmul.f32 %v2045, %v2049
    %2053 = vrot.lane.b32.xlu0 %v2051, 32
    %v2054 = vpop.permute.xlu0 %2053
    %v2056 = vadd.f32 %v2046, %v2054
    %v2057 = vtanh.pop %v2056
    %2059 = vrot.lane.b32.xlu0 %v2057, 64
    %v2060 = vpop.permute.xlu0 %2059
    %v2062 = vmul.f32 %v2045, %v2060
    %v2063 = vld [vmem:[#allocation3 + $0x2] sm:$0x3]
    %2065 = vrot.lane.b32.xlu0 %v2062, 32
    %v2066 = vpop.permute.xlu0 %2065
    %v2067 = vsel %vm180, %v2066, 0
    %2069 = vmatprep.subr.mxu0 0.0
    %2070 = vmatpush1.msra.mxu0 %v1850
    %2071 = vmatprep.subr.mxu0 0.0
    %2072 = vmatpush1.msra.mxu0 %v1851
    %2073 = vmatprep.subr.mxu0 0.0
    %2074 = vmatpush1.msra.mxu0 %v1852
    %2075 = vmatprep.subr.mxu0 0.0
    %2076 = vmatpush1.msra.mxu0 %v1853
    %2077 = vmatprep.subr.mxu0 0.0
    %2078 = vmatpush1.msra.mxu0 0.0
    %2079 = vmatprep.subr.mxu0 0.0
    %2080 = vmatpush1.msra.mxu0 0.0
    %2081 = vmatprep.subr.mxu0 0.0
    %2082 = vmatpush1.msra.mxu0 0.0
    %2083 = vmatprep.subr.mxu0 0.0
    %2084 = vmatpush1.msra.mxu0 0.0
    %2085 = vmatprep.subr.mxu0 0.0
    %2086 = vmatpush1.msra.mxu0 0.0
    %2087 = vmatprep.subr.mxu0 0.0
    %2088 = vmatpush1.msra.mxu0 0.0
    %2089 = vmatprep.subr.mxu0 0.0
    %2090 = vmatpush1.msra.mxu0 0.0
    %2091 = vmatprep.subr.mxu0 0.0
    %2092 = vmatpush1.msra.mxu0 0.0
    %2093 = vmatprep.subr.mxu0 0.0
    %2094 = vmatpush1.msra.mxu0 0.0
    %2095 = vmatprep.subr.mxu0 0.0
    %2096 = vmatpush1.msra.mxu0 0.0
    %2097 = vmatprep.subr.mxu0 0.0
    %2098 = vmatpush1.msra.mxu0 0.0
    %2099 = vmatprep.subr.mxu0 0.0
    %2100 = vmatpush1.msra.mxu0 0.0
    %2101 = vmatprep.subr.mxu0 0.0
    %2102 = vmatpush1.msra.mxu0 0.0
    %2103 = vmatprep.subr.mxu0 0.0
    %2104 = vmatpush1.msra.mxu0 0.0
    %2105 = vmatprep.subr.mxu0 0.0
    %2106 = vmatpush1.msra.mxu0 0.0
    %2107 = vmatprep.subr.mxu0 0.0
    %2108 = vmatpush1.msra.mxu0 0.0
    %2109 = vmatprep.subr.mxu0 0.0
    %2110 = vmatpush1.msra.mxu0 0.0
    %2111 = vmatprep.subr.mxu0 0.0
    %2112 = vmatpush1.msra.mxu0 0.0
    %2113 = vmatprep.subr.mxu0 0.0
    %2114 = vmatpush1.msra.mxu0 0.0
    %2115 = vmatprep.subr.mxu0 0.0
    %2116 = vmatpush1.msra.mxu0 0.0
    %2117 = vmatprep.subr.mxu0 0.0
    %2118 = vmatpush1.msra.mxu0 0.0
    %2119 = vmatprep.subr.mxu0 0.0
    %2120 = vmatpush1.msra.mxu0 0.0
    %2121 = vmatprep.subr.mxu0 0.0
    %2122 = vmatpush1.msra.mxu0 0.0
    %2123 = vmatprep.subr.mxu0 0.0
    %2124 = vmatpush1.msra.mxu0 0.0
    %2125 = vmatprep.subr.mxu0 0.0
    %2126 = vmatpush1.msra.mxu0 0.0
    %2127 = vmatprep.subr.mxu0 0.0
    %2128 = vmatpush1.msra.mxu0 0.0
    %2129 = vmatprep.subr.mxu0 0.0
    %2130 = vmatpush1.msra.mxu0 0.0
    %2131 = vmatprep.subr.mxu0 0.0
    %2132 = vmatpush1.msra.mxu0 0.0
    %2133 = vmatprep.mubr.f32.mxu0 0.0
    %2134 = vmatmul.mubr.f32.gmra.mrb[0].mxu0 %v2067
    %v2135 = vpop.f32.mrb[0].mxu0
    %v2136 = vadd.f32 0.0, %v2135
    %v2137 = vpop.f32.mrb[0].mxu0
    %2138 = vdwg.mxu0
    %v2139 = vadd.f32 %v2063, %v2136
    %v2140 = vtanh.pop %v2139
    %v2141 = vxor.u32 %v2139, 2147483648
    %v2142 = vmul.f32 %v2141, 1.442695
    %v2143 = vpow.pop %v2142
    %v2144 = vadd.f32 %v2143, 1.0
    %v2145 = vrcp.pop %v2144
    %v2146 = vmul.f32 1.0, %v2145
    %v2147 = vsel %vm59, %v2140, %v2146
    %v2148 = vmul.f32 %v2147, %v2056
    %2150 = vrot.lane.b32.xlu0 %v2147, 64
    %v2151 = vpop.permute.xlu0 %2150
    %v2153 = vmul.f32 %v2147, %v2151
    %2155 = vrot.lane.b32.xlu0 %v2153, 32
    %v2156 = vpop.permute.xlu0 %2155
    %v2158 = vadd.f32 %v2148, %v2156
    %v2159 = vtanh.pop %v2158
    %2161 = vrot.lane.b32.xlu0 %v2159, 64
    %v2162 = vpop.permute.xlu0 %2161
    %v2164 = vmul.f32 %v2147, %v2162
    %v2165 = vld [vmem:[#allocation3 + $0x4] sm:$0x3]
    %2167 = vrot.lane.b32.xlu0 %v2164, 32
    %v2168 = vpop.permute.xlu0 %2167
    %v2169 = vsel %vm180, %v2168, 0
    %2171 = vmatprep.subr.mxu0 0.0
    %2172 = vmatpush1.msra.mxu0 %v1850
    %2173 = vmatprep.subr.mxu0 0.0
    %2174 = vmatpush1.msra.mxu0 %v1851
    %2175 = vmatprep.subr.mxu0 0.0
    %2176 = vmatpush1.msra.mxu0 %v1852
    %2177 = vmatprep.subr.mxu0 0.0
    %2178 = vmatpush1.msra.mxu0 %v1853
    %2179 = vmatprep.subr.mxu0 0.0
    %2180 = vmatpush1.msra.mxu0 0.0
    %2181 = vmatprep.subr.mxu0 0.0
    %2182 = vmatpush1.msra.mxu0 0.0
    %2183 = vmatprep.subr.mxu0 0.0
    %2184 = vmatpush1.msra.mxu0 0.0
    %2185 = vmatprep.subr.mxu0 0.0
    %2186 = vmatpush1.msra.mxu0 0.0
    %2187 = vmatprep.subr.mxu0 0.0
    %2188 = vmatpush1.msra.mxu0 0.0
    %2189 = vmatprep.subr.mxu0 0.0
    %2190 = vmatpush1.msra.mxu0 0.0
    %2191 = vmatprep.subr.mxu0 0.0
    %2192 = vmatpush1.msra.mxu0 0.0
    %2193 = vmatprep.subr.mxu0 0.0
    %2194 = vmatpush1.msra.mxu0 0.0
    %2195 = vmatprep.subr.mxu0 0.0
    %2196 = vmatpush1.msra.mxu0 0.0
    %2197 = vmatprep.subr.mxu0 0.0
    %2198 = vmatpush1.msra.mxu0 0.0
    %2199 = vmatprep.subr.mxu0 0.0
    %2200 = vmatpush1.msra.mxu0 0.0
    %2201 = vmatprep.subr.mxu0 0.0
    %2202 = vmatpush1.msra.mxu0 0.0
    %2203 = vmatprep.subr.mxu0 0.0
    %2204 = vmatpush1.msra.mxu0 0.0
    %2205 = vmatprep.subr.mxu0 0.0
    %2206 = vmatpush1.msra.mxu0 0.0
    %2207 = vmatprep.subr.mxu0 0.0
    %2208 = vmatpush1.msra.mxu0 0.0
    %2209 = vmatprep.subr.mxu0 0.0
    %2210 = vmatpush1.msra.mxu0 0.0
    %2211 = vmatprep.subr.mxu0 0.0
    %2212 = vmatpush1.msra.mxu0 0.0
    %2213 = vmatprep.subr.mxu0 0.0
    %2214 = vmatpush1.msra.mxu0 0.0
    %2215 = vmatprep.subr.mxu0 0.0
    %2216 = vmatpush1.msra.mxu0 0.0
    %2217 = vmatprep.subr.mxu0 0.0
    %2218 = vmatpush1.msra.mxu0 0.0
    %2219 = vmatprep.subr.mxu0 0.0
    %2220 = vmatpush1.msra.mxu0 0.0
    %2221 = vmatprep.subr.mxu0 0.0
    %2222 = vmatpush1.msra.mxu0 0.0
    %2223 = vmatprep.subr.mxu0 0.0
    %2224 = vmatpush1.msra.mxu0 0.0
    %2225 = vmatprep.subr.mxu0 0.0
    %2226 = vmatpush1.msra.mxu0 0.0
    %2227 = vmatprep.subr.mxu0 0.0
    %2228 = vmatpush1.msra.mxu0 0.0
    %2229 = vmatprep.subr.mxu0 0.0
    %2230 = vmatpush1.msra.mxu0 0.0
    %2231 = vmatprep.subr.mxu0 0.0
    %2232 = vmatpush1.msra.mxu0 0.0
    %2233 = vmatprep.subr.mxu0 0.0
    %2234 = vmatpush1.msra.mxu0 0.0
    %2235 = vmatprep.mubr.f32.mxu0 0.0
    %2236 = vmatmul.mubr.f32.gmra.mrb[0].mxu0 %v2169
    %v2237 = vpop.f32.mrb[0].mxu0
    %v2238 = vadd.f32 0.0, %v2237
    %v2239 = vpop.f32.mrb[0].mxu0
    %2240 = vdwg.mxu0
    %v2241 = vadd.f32 %v2165, %v2238
    %v2242 = vtanh.pop %v2241
    %v2243 = vxor.u32 %v2241, 2147483648
    %v2244 = vmul.f32 %v2243, 1.442695
    %v2245 = vpow.pop %v2244
    %v2246 = vadd.f32 %v2245, 1.0
    %v2247 = vrcp.pop %v2246
    %v2248 = vmul.f32 1.0, %v2247
    %v2249 = vsel %vm59, %v2242, %v2248
    %v2250 = vmul.f32 %v2249, %v2158
    %2252 = vrot.lane.b32.xlu0 %v2249, 64
    %v2253 = vpop.permute.xlu0 %2252
    %v2255 = vmul.f32 %v2249, %v2253
    %2257 = vrot.lane.b32.xlu0 %v2255, 32
    %v2258 = vpop.permute.xlu0 %2257
    %v2260 = vadd.f32 %v2250, %v2258
    %v2261 = vtanh.pop %v2260
    %2263 = vrot.lane.b32.xlu0 %v2261, 64
    %v2264 = vpop.permute.xlu0 %2263
    %v2266 = vmul.f32 %v2249, %v2264
    %v2267 = vld [vmem:[#allocation3 + $0x6] sm:$0x3]
    %2269 = vrot.lane.b32.xlu0 %v2266, 32
    %v2270 = vpop.permute.xlu0 %2269
    %v2271 = vsel %vm180, %v2270, 0
    %2273 = vmatprep.subr.mxu0 0.0
    %2274 = vmatpush1.msra.mxu0 %v1850
    %2275 = vmatprep.subr.mxu0 0.0
    %2276 = vmatpush1.msra.mxu0 %v1851
    %2277 = vmatprep.subr.mxu0 0.0
    %2278 = vmatpush1.msra.mxu0 %v1852
    %2279 = vmatprep.subr.mxu0 0.0
    %2280 = vmatpush1.msra.mxu0 %v1853
    %2281 = vmatprep.subr.mxu0 0.0
    %2282 = vmatpush1.msra.mxu0 0.0
    %2283 = vmatprep.subr.mxu0 0.0
    %2284 = vmatpush1.msra.mxu0 0.0
    %2285 = vmatprep.subr.mxu0 0.0
    %2286 = vmatpush1.msra.mxu0 0.0
    %2287 = vmatprep.subr.mxu0 0.0
    %2288 = vmatpush1.msra.mxu0 0.0
    %2289 = vmatprep.subr.mxu0 0.0
    %2290 = vmatpush1.msra.mxu0 0.0
    %2291 = vmatprep.subr.mxu0 0.0
    %2292 = vmatpush1.msra.mxu0 0.0
    %2293 = vmatprep.subr.mxu0 0.0
    %2294 = vmatpush1.msra.mxu0 0.0
    %2295 = vmatprep.subr.mxu0 0.0
    %2296 = vmatpush1.msra.mxu0 0.0
    %2297 = vmatprep.subr.mxu0 0.0
    %2298 = vmatpush1.msra.mxu0 0.0
    %2299 = vmatprep.subr.mxu0 0.0
    %2300 = vmatpush1.msra.mxu0 0.0
    %2301 = vmatprep.subr.mxu0 0.0
    %2302 = vmatpush1.msra.mxu0 0.0
    %2303 = vmatprep.subr.mxu0 0.0
    %2304 = vmatpush1.msra.mxu0 0.0
    %2305 = vmatprep.subr.mxu0 0.0
    %2306 = vmatpush1.msra.mxu0 0.0
    %2307 = vmatprep.subr.mxu0 0.0
    %2308 = vmatpush1.msra.mxu0 0.0
    %2309 = vmatprep.subr.mxu0 0.0
    %2310 = vmatpush1.msra.mxu0 0.0
    %2311 = vmatprep.subr.mxu0 0.0
    %2312 = vmatpush1.msra.mxu0 0.0
    %2313 = vmatprep.subr.mxu0 0.0
    %2314 = vmatpush1.msra.mxu0 0.0
    %2315 = vmatprep.subr.mxu0 0.0
    %2316 = vmatpush1.msra.mxu0 0.0
    %2317 = vmatprep.subr.mxu0 0.0
    %2318 = vmatpush1.msra.mxu0 0.0
    %2319 = vmatprep.subr.mxu0 0.0
    %2320 = vmatpush1.msra.mxu0 0.0
    %2321 = vmatprep.subr.mxu0 0.0
    %2322 = vmatpush1.msra.mxu0 0.0
    %2323 = vmatprep.subr.mxu0 0.0
    %2324 = vmatpush1.msra.mxu0 0.0
    %2325 = vmatprep.subr.mxu0 0.0
    %2326 = vmatpush1.msra.mxu0 0.0
    %2327 = vmatprep.subr.mxu0 0.0
    %2328 = vmatpush1.msra.mxu0 0.0
    %2329 = vmatprep.subr.mxu0 0.0
    %2330 = vmatpush1.msra.mxu0 0.0
    %2331 = vmatprep.subr.mxu0 0.0
    %2332 = vmatpush1.msra.mxu0 0.0
    %2333 = vmatprep.subr.mxu0 0.0
    %2334 = vmatpush1.msra.mxu0 0.0
    %2335 = vmatprep.subr.mxu0 0.0
    %2336 = vmatpush1.msra.mxu0 0.0
    %2337 = vmatprep.mubr.f32.mxu0 0.0
    %2338 = vmatmul.mubr.f32.gmra.mrb[0].mxu0 %v2271
    %v2339 = vpop.f32.mrb[0].mxu0
    %v2340 = vadd.f32 0.0, %v2339
    %v2341 = vpop.f32.mrb[0].mxu0
    %2342 = vdwg.mxu0
    %v2343 = vadd.f32 %v2267, %v2340
    %v2344 = vtanh.pop %v2343
    %v2345 = vxor.u32 %v2343, 2147483648
    %v2346 = vmul.f32 %v2345, 1.442695
    %v2347 = vpow.pop %v2346
    %v2348 = vadd.f32 %v2347, 1.0
    %v2349 = vrcp.pop %v2348
    %v2350 = vmul.f32 1.0, %v2349
    %v2351 = vsel %vm59, %v2344, %v2350
    %v2352 = vmul.f32 %v2351, %v2260
    %2354 = vrot.lane.b32.xlu0 %v2351, 64
    %v2355 = vpop.permute.xlu0 %2354
    %v2357 = vmul.f32 %v2351, %v2355
    %2359 = vrot.lane.b32.xlu0 %v2357, 32
    %v2360 = vpop.permute.xlu0 %2359
    %v2362 = vadd.f32 %v2352, %v2360
    %v2363 = vtanh.pop %v2362
    %2365 = vrot.lane.b32.xlu0 %v2363, 64
    %v2366 = vpop.permute.xlu0 %2365
    %v2368 = vmul.f32 %v2351, %v2366
    %v2369 = vld [vmem:[#allocation3 + $0x8] sm:$0x3]
    %2371 = vrot.lane.b32.xlu0 %v2368, 32
    %v2372 = vpop.permute.xlu0 %2371
    %v2373 = vsel %vm180, %v2372, 0
    %2375 = vmatprep.subr.mxu0 0.0
    %2376 = vmatpush1.msra.mxu0 %v1850
    %2377 = vmatprep.subr.mxu0 0.0
    %2378 = vmatpush1.msra.mxu0 %v1851
    %2379 = vmatprep.subr.mxu0 0.0
    %2380 = vmatpush1.msra.mxu0 %v1852
    %2381 = vmatprep.subr.mxu0 0.0
    %2382 = vmatpush1.msra.mxu0 %v1853
    %2383 = vmatprep.subr.mxu0 0.0
    %2384 = vmatpush1.msra.mxu0 0.0
    %2385 = vmatprep.subr.mxu0 0.0
    %2386 = vmatpush1.msra.mxu0 0.0
    %2387 = vmatprep.subr.mxu0 0.0
    %2388 = vmatpush1.msra.mxu0 0.0
    %2389 = vmatprep.subr.mxu0 0.0
    %2390 = vmatpush1.msra.mxu0 0.0
    %2391 = vmatprep.subr.mxu0 0.0
    %2392 = vmatpush1.msra.mxu0 0.0
    %2393 = vmatprep.subr.mxu0 0.0
    %2394 = vmatpush1.msra.mxu0 0.0
    %2395 = vmatprep.subr.mxu0 0.0
    %2396 = vmatpush1.msra.mxu0 0.0
    %2397 = vmatprep.subr.mxu0 0.0
    %2398 = vmatpush1.msra.mxu0 0.0
    %2399 = vmatprep.subr.mxu0 0.0
    %2400 = vmatpush1.msra.mxu0 0.0
    %2401 = vmatprep.subr.mxu0 0.0
    %2402 = vmatpush1.msra.mxu0 0.0
    %2403 = vmatprep.subr.mxu0 0.0
    %2404 = vmatpush1.msra.mxu0 0.0
    %2405 = vmatprep.subr.mxu0 0.0
    %2406 = vmatpush1.msra.mxu0 0.0
    %2407 = vmatprep.subr.mxu0 0.0
    %2408 = vmatpush1.msra.mxu0 0.0
    %2409 = vmatprep.subr.mxu0 0.0
    %2410 = vmatpush1.msra.mxu0 0.0
    %2411 = vmatprep.subr.mxu0 0.0
    %2412 = vmatpush1.msra.mxu0 0.0
    %2413 = vmatprep.subr.mxu0 0.0
    %2414 = vmatpush1.msra.mxu0 0.0
    %2415 = vmatprep.subr.mxu0 0.0
    %2416 = vmatpush1.msra.mxu0 0.0
    %2417 = vmatprep.subr.mxu0 0.0
    %2418 = vmatpush1.msra.mxu0 0.0
    %2419 = vmatprep.subr.mxu0 0.0
    %2420 = vmatpush1.msra.mxu0 0.0
    %2421 = vmatprep.subr.mxu0 0.0
    %2422 = vmatpush1.msra.mxu0 0.0
    %2423 = vmatprep.subr.mxu0 0.0
    %2424 = vmatpush1.msra.mxu0 0.0
    %2425 = vmatprep.subr.mxu0 0.0
    %2426 = vmatpush1.msra.mxu0 0.0
    %2427 = vmatprep.subr.mxu0 0.0
    %2428 = vmatpush1.msra.mxu0 0.0
    %2429 = vmatprep.subr.mxu0 0.0
    %2430 = vmatpush1.msra.mxu0 0.0
    %2431 = vmatprep.subr.mxu0 0.0
    %2432 = vmatpush1.msra.mxu0 0.0
    %2433 = vmatprep.subr.mxu0 0.0
    %2434 = vmatpush1.msra.mxu0 0.0
    %2435 = vmatprep.subr.mxu0 0.0
    %2436 = vmatpush1.msra.mxu0 0.0
    %2437 = vmatprep.subr.mxu0 0.0
    %2438 = vmatpush1.msra.mxu0 0.0
    %2439 = vmatprep.mubr.f32.mxu0 0.0
    %2440 = vmatmul.mubr.f32.gmra.mrb[0].mxu0 %v2373
    %v2441 = vpop.f32.mrb[0].mxu0
    %v2442 = vadd.f32 0.0, %v2441
    %v2443 = vpop.f32.mrb[0].mxu0
    %2444 = vdwg.mxu0
    %v2445 = vadd.f32 %v2369, %v2442
    %v2446 = vtanh.pop %v2445
    %v2447 = vxor.u32 %v2445, 2147483648
    %v2448 = vmul.f32 %v2447, 1.442695
    %v2449 = vpow.pop %v2448
    %v2450 = vadd.f32 %v2449, 1.0
    %v2451 = vrcp.pop %v2450
    %v2452 = vmul.f32 1.0, %v2451
    %v2453 = vsel %vm59, %v2446, %v2452
    %v2454 = vmul.f32 %v2453, %v2362
    %2456 = vrot.lane.b32.xlu0 %v2453, 64
    %v2457 = vpop.permute.xlu0 %2456
    %v2459 = vmul.f32 %v2453, %v2457
    %2461 = vrot.lane.b32.xlu0 %v2459, 32
    %v2462 = vpop.permute.xlu0 %2461
    %v2464 = vadd.f32 %v2454, %v2462
    %v2465 = vtanh.pop %v2464
    %2467 = vrot.lane.b32.xlu0 %v2465, 64
    %v2468 = vpop.permute.xlu0 %2467
    %v2470 = vmul.f32 %v2453, %v2468
    %v2471 = vld [vmem:[#allocation3 + $0xa] sm:$0x3]
    %2473 = vrot.lane.b32.xlu0 %v2470, 32
    %v2474 = vpop.permute.xlu0 %2473
    %v2475 = vsel %vm180, %v2474, 0
    %2477 = vmatprep.subr.mxu0 0.0
    %2478 = vmatpush1.msra.mxu0 %v1850
    %2479 = vmatprep.subr.mxu0 0.0
    %2480 = vmatpush1.msra.mxu0 %v1851
    %2481 = vmatprep.subr.mxu0 0.0
    %2482 = vmatpush1.msra.mxu0 %v1852
    %2483 = vmatprep.subr.mxu0 0.0
    %2484 = vmatpush1.msra.mxu0 %v1853
    %2485 = vmatprep.subr.mxu0 0.0
    %2486 = vmatpush1.msra.mxu0 0.0
    %2487 = vmatprep.subr.mxu0 0.0
    %2488 = vmatpush1.msra.mxu0 0.0
    %2489 = vmatprep.subr.mxu0 0.0
    %2490 = vmatpush1.msra.mxu0 0.0
    %2491 = vmatprep.subr.mxu0 0.0
    %2492 = vmatpush1.msra.mxu0 0.0
    %2493 = vmatprep.subr.mxu0 0.0
    %2494 = vmatpush1.msra.mxu0 0.0
    %2495 = vmatprep.subr.mxu0 0.0
    %2496 = vmatpush1.msra.mxu0 0.0
    %2497 = vmatprep.subr.mxu0 0.0
    %2498 = vmatpush1.msra.mxu0 0.0
    %2499 = vmatprep.subr.mxu0 0.0
    %2500 = vmatpush1.msra.mxu0 0.0
    %2501 = vmatprep.subr.mxu0 0.0
    %2502 = vmatpush1.msra.mxu0 0.0
    %2503 = vmatprep.subr.mxu0 0.0
    %2504 = vmatpush1.msra.mxu0 0.0
    %2505 = vmatprep.subr.mxu0 0.0
    %2506 = vmatpush1.msra.mxu0 0.0
    %2507 = vmatprep.subr.mxu0 0.0
    %2508 = vmatpush1.msra.mxu0 0.0
    %2509 = vmatprep.subr.mxu0 0.0
    %2510 = vmatpush1.msra.mxu0 0.0
    %2511 = vmatprep.subr.mxu0 0.0
    %2512 = vmatpush1.msra.mxu0 0.0
    %2513 = vmatprep.subr.mxu0 0.0
    %2514 = vmatpush1.msra.mxu0 0.0
    %2515 = vmatprep.subr.mxu0 0.0
    %2516 = vmatpush1.msra.mxu0 0.0
    %2517 = vmatprep.subr.mxu0 0.0
    %2518 = vmatpush1.msra.mxu0 0.0
    %2519 = vmatprep.subr.mxu0 0.0
    %2520 = vmatpush1.msra.mxu0 0.0
    %2521 = vmatprep.subr.mxu0 0.0
    %2522 = vmatpush1.msra.mxu0 0.0
    %2523 = vmatprep.subr.mxu0 0.0
    %2524 = vmatpush1.msra.mxu0 0.0
    %2525 = vmatprep.subr.mxu0 0.0
    %2526 = vmatpush1.msra.mxu0 0.0
    %2527 = vmatprep.subr.mxu0 0.0
    %2528 = vmatpush1.msra.mxu0 0.0
    %2529 = vmatprep.subr.mxu0 0.0
    %2530 = vmatpush1.msra.mxu0 0.0
    %2531 = vmatprep.subr.mxu0 0.0
    %2532 = vmatpush1.msra.mxu0 0.0
    %2533 = vmatprep.subr.mxu0 0.0
    %2534 = vmatpush1.msra.mxu0 0.0
    %2535 = vmatprep.subr.mxu0 0.0
    %2536 = vmatpush1.msra.mxu0 0.0
    %2537 = vmatprep.subr.mxu0 0.0
    %2538 = vmatpush1.msra.mxu0 0.0
    %2539 = vmatprep.subr.mxu0 0.0
    %2540 = vmatpush1.msra.mxu0 0.0
    %2541 = vmatprep.mubr.f32.mxu0 0.0
    %2542 = vmatmul.mubr.f32.gmra.mrb[0].mxu0 %v2475
    %v2543 = vpop.f32.mrb[0].mxu0
    %v2544 = vadd.f32 0.0, %v2543
    %v2545 = vpop.f32.mrb[0].mxu0
    %2546 = vdwg.mxu0
    %v2547 = vadd.f32 %v2471, %v2544
    %v2548 = vtanh.pop %v2547
    %v2549 = vxor.u32 %v2547, 2147483648
    %v2550 = vmul.f32 %v2549, 1.442695
    %v2551 = vpow.pop %v2550
    %v2552 = vadd.f32 %v2551, 1.0
    %v2553 = vrcp.pop %v2552
    %v2554 = vmul.f32 1.0, %v2553
    %v2555 = vsel %vm59, %v2548, %v2554
    %v2556 = vmul.f32 %v2555, %v2464
    %2558 = vrot.lane.b32.xlu0 %v2555, 64
    %v2559 = vpop.permute.xlu0 %2558
    %v2561 = vmul.f32 %v2555, %v2559
    %2563 = vrot.lane.b32.xlu0 %v2561, 32
    %v2564 = vpop.permute.xlu0 %2563
    %v2566 = vadd.f32 %v2556, %v2564
    %v2567 = vtanh.pop %v2566
    %2569 = vrot.lane.b32.xlu0 %v2567, 64
    %v2570 = vpop.permute.xlu0 %2569
    %v2572 = vmul.f32 %v2555, %v2570
    %v2573 = vld [vmem:[#allocation3 + $0xc] sm:$0x3]
    %2575 = vrot.lane.b32.xlu0 %v2572, 32
    %v2576 = vpop.permute.xlu0 %2575
    %v2577 = vsel %vm180, %v2576, 0
    %2579 = vmatprep.subr.mxu0 0.0
    %2580 = vmatpush1.msra.mxu0 %v1850
    %2581 = vmatprep.subr.mxu0 0.0
    %2582 = vmatpush1.msra.mxu0 %v1851
    %2583 = vmatprep.subr.mxu0 0.0
    %2584 = vmatpush1.msra.mxu0 %v1852
    %2585 = vmatprep.subr.mxu0 0.0
    %2586 = vmatpush1.msra.mxu0 %v1853
    %2587 = vmatprep.subr.mxu0 0.0
    %2588 = vmatpush1.msra.mxu0 0.0
    %2589 = vmatprep.subr.mxu0 0.0
    %2590 = vmatpush1.msra.mxu0 0.0
    %2591 = vmatprep.subr.mxu0 0.0
    %2592 = vmatpush1.msra.mxu0 0.0
    %2593 = vmatprep.subr.mxu0 0.0
    %2594 = vmatpush1.msra.mxu0 0.0
    %2595 = vmatprep.subr.mxu0 0.0
    %2596 = vmatpush1.msra.mxu0 0.0
    %2597 = vmatprep.subr.mxu0 0.0
    %2598 = vmatpush1.msra.mxu0 0.0
    %2599 = vmatprep.subr.mxu0 0.0
    %2600 = vmatpush1.msra.mxu0 0.0
    %2601 = vmatprep.subr.mxu0 0.0
    %2602 = vmatpush1.msra.mxu0 0.0
    %2603 = vmatprep.subr.mxu0 0.0
    %2604 = vmatpush1.msra.mxu0 0.0
    %2605 = vmatprep.subr.mxu0 0.0
    %2606 = vmatpush1.msra.mxu0 0.0
    %2607 = vmatprep.subr.mxu0 0.0
    %2608 = vmatpush1.msra.mxu0 0.0
    %2609 = vmatprep.subr.mxu0 0.0
    %2610 = vmatpush1.msra.mxu0 0.0
    %2611 = vmatprep.subr.mxu0 0.0
    %2612 = vmatpush1.msra.mxu0 0.0
    %2613 = vmatprep.subr.mxu0 0.0
    %2614 = vmatpush1.msra.mxu0 0.0
    %2615 = vmatprep.subr.mxu0 0.0
    %2616 = vmatpush1.msra.mxu0 0.0
    %2617 = vmatprep.subr.mxu0 0.0
    %2618 = vmatpush1.msra.mxu0 0.0
    %2619 = vmatprep.subr.mxu0 0.0
    %2620 = vmatpush1.msra.mxu0 0.0
    %2621 = vmatprep.subr.mxu0 0.0
    %2622 = vmatpush1.msra.mxu0 0.0
    %2623 = vmatprep.subr.mxu0 0.0
    %2624 = vmatpush1.msra.mxu0 0.0
    %2625 = vmatprep.subr.mxu0 0.0
    %2626 = vmatpush1.msra.mxu0 0.0
    %2627 = vmatprep.subr.mxu0 0.0
    %2628 = vmatpush1.msra.mxu0 0.0
    %2629 = vmatprep.subr.mxu0 0.0
    %2630 = vmatpush1.msra.mxu0 0.0
    %2631 = vmatprep.subr.mxu0 0.0
    %2632 = vmatpush1.msra.mxu0 0.0
    %2633 = vmatprep.subr.mxu0 0.0
    %2634 = vmatpush1.msra.mxu0 0.0
    %2635 = vmatprep.subr.mxu0 0.0
    %2636 = vmatpush1.msra.mxu0 0.0
    %2637 = vmatprep.subr.mxu0 0.0
    %2638 = vmatpush1.msra.mxu0 0.0
    %2639 = vmatprep.subr.mxu0 0.0
    %2640 = vmatpush1.msra.mxu0 0.0
    %2641 = vmatprep.subr.mxu0 0.0
    %2642 = vmatpush1.msra.mxu0 0.0
    %2643 = vmatprep.mubr.f32.mxu0 0.0
    %2644 = vmatmul.mubr.f32.gmra.mrb[0].mxu0 %v2577
    %v2645 = vpop.f32.mrb[0].mxu0
    %v2646 = vadd.f32 0.0, %v2645
    %v2647 = vpop.f32.mrb[0].mxu0
    %2648 = vdwg.mxu0
    %v2649 = vadd.f32 %v2573, %v2646
    %v2650 = vtanh.pop %v2649
    %v2651 = vxor.u32 %v2649, 2147483648
    %v2652 = vmul.f32 %v2651, 1.442695
    %v2653 = vpow.pop %v2652
    %v2654 = vadd.f32 %v2653, 1.0
    %v2655 = vrcp.pop %v2654
    %v2656 = vmul.f32 1.0, %v2655
    %v2657 = vsel %vm59, %v2650, %v2656
    %v2658 = vmul.f32 %v2657, %v2566
    %2660 = vrot.lane.b32.xlu0 %v2657, 64
    %v2661 = vpop.permute.xlu0 %2660
    %v2663 = vmul.f32 %v2657, %v2661
    %2665 = vrot.lane.b32.xlu0 %v2663, 32
    %v2666 = vpop.permute.xlu0 %2665
    %v2668 = vadd.f32 %v2658, %v2666
    %v2669 = vtanh.pop %v2668
    %2671 = vrot.lane.b32.xlu0 %v2669, 64
    %v2672 = vpop.permute.xlu0 %2671
    %v2674 = vmul.f32 %v2657, %v2672
    %v2675 = vld [vmem:[#allocation3 + $0xe] sm:$0x3]
    %2677 = vrot.lane.b32.xlu0 %v2674, 32
    %v2678 = vpop.permute.xlu0 %2677
    %v2679 = vsel %vm180, %v2678, 0
    %2681 = vmatprep.subr.mxu0 0.0
    %2682 = vmatpush1.msra.mxu0 %v1850
    %2683 = vmatprep.subr.mxu0 0.0
    %2684 = vmatpush1.msra.mxu0 %v1851
    %2685 = vmatprep.subr.mxu0 0.0
    %2686 = vmatpush1.msra.mxu0 %v1852
    %2687 = vmatprep.subr.mxu0 0.0
    %2688 = vmatpush1.msra.mxu0 %v1853
    %2689 = vmatprep.subr.mxu0 0.0
    %2690 = vmatpush1.msra.mxu0 0.0
    %2691 = vmatprep.subr.mxu0 0.0
    %2692 = vmatpush1.msra.mxu0 0.0
    %2693 = vmatprep.subr.mxu0 0.0
    %2694 = vmatpush1.msra.mxu0 0.0
    %2695 = vmatprep.subr.mxu0 0.0
    %2696 = vmatpush1.msra.mxu0 0.0
    %2697 = vmatprep.subr.mxu0 0.0
    %2698 = vmatpush1.msra.mxu0 0.0
    %2699 = vmatprep.subr.mxu0 0.0
    %2700 = vmatpush1.msra.mxu0 0.0
    %2701 = vmatprep.subr.mxu0 0.0
    %2702 = vmatpush1.msra.mxu0 0.0
    %2703 = vmatprep.subr.mxu0 0.0
    %2704 = vmatpush1.msra.mxu0 0.0
    %2705 = vmatprep.subr.mxu0 0.0
    %2706 = vmatpush1.msra.mxu0 0.0
    %2707 = vmatprep.subr.mxu0 0.0
    %2708 = vmatpush1.msra.mxu0 0.0
    %2709 = vmatprep.subr.mxu0 0.0
    %2710 = vmatpush1.msra.mxu0 0.0
    %2711 = vmatprep.subr.mxu0 0.0
    %2712 = vmatpush1.msra.mxu0 0.0
    %2713 = vmatprep.subr.mxu0 0.0
    %2714 = vmatpush1.msra.mxu0 0.0
    %2715 = vmatprep.subr.mxu0 0.0
    %2716 = vmatpush1.msra.mxu0 0.0
    %2717 = vmatprep.subr.mxu0 0.0
    %2718 = vmatpush1.msra.mxu0 0.0
    %2719 = vmatprep.subr.mxu0 0.0
    %2720 = vmatpush1.msra.mxu0 0.0
    %2721 = vmatprep.subr.mxu0 0.0
    %2722 = vmatpush1.msra.mxu0 0.0
    %2723 = vmatprep.subr.mxu0 0.0
    %2724 = vmatpush1.msra.mxu0 0.0
    %2725 = vmatprep.subr.mxu0 0.0
    %2726 = vmatpush1.msra.mxu0 0.0
    %2727 = vmatprep.subr.mxu0 0.0
    %2728 = vmatpush1.msra.mxu0 0.0
    %2729 = vmatprep.subr.mxu0 0.0
    %2730 = vmatpush1.msra.mxu0 0.0
    %2731 = vmatprep.subr.mxu0 0.0
    %2732 = vmatpush1.msra.mxu0 0.0
    %2733 = vmatprep.subr.mxu0 0.0
    %2734 = vmatpush1.msra.mxu0 0.0
    %2735 = vmatprep.subr.mxu0 0.0
    %2736 = vmatpush1.msra.mxu0 0.0
    %2737 = vmatprep.subr.mxu0 0.0
    %2738 = vmatpush1.msra.mxu0 0.0
    %2739 = vmatprep.subr.mxu0 0.0
    %2740 = vmatpush1.msra.mxu0 0.0
    %2741 = vmatprep.subr.mxu0 0.0
    %2742 = vmatpush1.msra.mxu0 0.0
    %2743 = vmatprep.subr.mxu0 0.0
    %2744 = vmatpush1.msra.mxu0 0.0
    %2745 = vmatprep.mubr.f32.mxu0 0.0
    %2746 = vmatmul.mubr.f32.gmra.mrb[0].mxu0 %v2679
    %v2747 = vpop.f32.mrb[0].mxu0
    %v2748 = vadd.f32 0.0, %v2747
    %v2749 = vpop.f32.mrb[0].mxu0
    %2750 = vdwg.mxu0
    %v2751 = vadd.f32 %v2675, %v2748
    %v2752 = vtanh.pop %v2751
    %v2753 = vxor.u32 %v2751, 2147483648
    %v2754 = vmul.f32 %v2753, 1.442695
    %v2755 = vpow.pop %v2754
    %v2756 = vadd.f32 %v2755, 1.0
    %v2757 = vrcp.pop %v2756
    %v2758 = vmul.f32 1.0, %v2757
    %v2759 = vsel %vm59, %v2752, %v2758
    %v2760 = vmul.f32 %v2759, %v2668
    %2762 = vrot.lane.b32.xlu0 %v2759, 64
    %v2763 = vpop.permute.xlu0 %2762
    %v2765 = vmul.f32 %v2759, %v2763
    %2767 = vrot.lane.b32.xlu0 %v2765, 32
    %v2768 = vpop.permute.xlu0 %2767
    %v2770 = vadd.f32 %v2760, %v2768
    %v2771 = vtanh.pop %v2770
    %2773 = vrot.lane.b32.xlu0 %v2771, 64
    %v2774 = vpop.permute.xlu0 %2773
    %v2776 = vmul.f32 %v2759, %v2774
    %v2777 = vld [vmem:[#allocation3 + $0x10] sm:$0x3]
    %2779 = vrot.lane.b32.xlu0 %v2776, 32
    %v2780 = vpop.permute.xlu0 %2779
    %v2781 = vsel %vm180, %v2780, 0
    %2783 = vmatprep.subr.mxu0 0.0
    %2784 = vmatpush1.msra.mxu0 %v1850
    %2785 = vmatprep.subr.mxu0 0.0
    %2786 = vmatpush1.msra.mxu0 %v1851
    %2787 = vmatprep.subr.mxu0 0.0
    %2788 = vmatpush1.msra.mxu0 %v1852
    %2789 = vmatprep.subr.mxu0 0.0
    %2790 = vmatpush1.msra.mxu0 %v1853
    %2791 = vmatprep.subr.mxu0 0.0
    %2792 = vmatpush1.msra.mxu0 0.0
    %2793 = vmatprep.subr.mxu0 0.0
    %2794 = vmatpush1.msra.mxu0 0.0
    %2795 = vmatprep.subr.mxu0 0.0
    %2796 = vmatpush1.msra.mxu0 0.0
    %2797 = vmatprep.subr.mxu0 0.0
    %2798 = vmatpush1.msra.mxu0 0.0
    %2799 = vmatprep.subr.mxu0 0.0
    %2800 = vmatpush1.msra.mxu0 0.0
    %2801 = vmatprep.subr.mxu0 0.0
    %2802 = vmatpush1.msra.mxu0 0.0
    %2803 = vmatprep.subr.mxu0 0.0
    %2804 = vmatpush1.msra.mxu0 0.0
    %2805 = vmatprep.subr.mxu0 0.0
    %2806 = vmatpush1.msra.mxu0 0.0
    %2807 = vmatprep.subr.mxu0 0.0
    %2808 = vmatpush1.msra.mxu0 0.0
    %2809 = vmatprep.subr.mxu0 0.0
    %2810 = vmatpush1.msra.mxu0 0.0
    %2811 = vmatprep.subr.mxu0 0.0
    %2812 = vmatpush1.msra.mxu0 0.0
    %2813 = vmatprep.subr.mxu0 0.0
    %2814 = vmatpush1.msra.mxu0 0.0
    %2815 = vmatprep.subr.mxu0 0.0
    %2816 = vmatpush1.msra.mxu0 0.0
    %2817 = vmatprep.subr.mxu0 0.0
    %2818 = vmatpush1.msra.mxu0 0.0
    %2819 = vmatprep.subr.mxu0 0.0
    %2820 = vmatpush1.msra.mxu0 0.0
    %2821 = vmatprep.subr.mxu0 0.0
    %2822 = vmatpush1.msra.mxu0 0.0
    %2823 = vmatprep.subr.mxu0 0.0
    %2824 = vmatpush1.msra.mxu0 0.0
    %2825 = vmatprep.subr.mxu0 0.0
    %2826 = vmatpush1.msra.mxu0 0.0
    %2827 = vmatprep.subr.mxu0 0.0
    %2828 = vmatpush1.msra.mxu0 0.0
    %2829 = vmatprep.subr.mxu0 0.0
    %2830 = vmatpush1.msra.mxu0 0.0
    %2831 = vmatprep.subr.mxu0 0.0
    %2832 = vmatpush1.msra.mxu0 0.0
    %2833 = vmatprep.subr.mxu0 0.0
    %2834 = vmatpush1.msra.mxu0 0.0
    %2835 = vmatprep.subr.mxu0 0.0
    %2836 = vmatpush1.msra.mxu0 0.0
    %2837 = vmatprep.subr.mxu0 0.0
    %2838 = vmatpush1.msra.mxu0 0.0
    %2839 = vmatprep.subr.mxu0 0.0
    %2840 = vmatpush1.msra.mxu0 0.0
    %2841 = vmatprep.subr.mxu0 0.0
    %2842 = vmatpush1.msra.mxu0 0.0
    %2843 = vmatprep.subr.mxu0 0.0
    %2844 = vmatpush1.msra.mxu0 0.0
    %2845 = vmatprep.subr.mxu0 0.0
    %2846 = vmatpush1.msra.mxu0 0.0
    %2847 = vmatprep.mubr.f32.mxu0 0.0
    %2848 = vmatmul.mubr.f32.gmra.mrb[0].mxu0 %v2781
    %v2849 = vpop.f32.mrb[0].mxu0
    %v2850 = vadd.f32 0.0, %v2849
    %v2851 = vpop.f32.mrb[0].mxu0
    %2852 = vdwg.mxu0
    %v2853 = vadd.f32 %v2777, %v2850
    %v2854 = vtanh.pop %v2853
    %v2855 = vxor.u32 %v2853, 2147483648
    %v2856 = vmul.f32 %v2855, 1.442695
    %v2857 = vpow.pop %v2856
    %v2858 = vadd.f32 %v2857, 1.0
    %v2859 = vrcp.pop %v2858
    %v2860 = vmul.f32 1.0, %v2859
    %v2861 = vsel %vm59, %v2854, %v2860
    %v2862 = vmul.f32 %v2861, %v2770
    %2864 = vrot.lane.b32.xlu0 %v2861, 64
    %v2865 = vpop.permute.xlu0 %2864
    %v2867 = vmul.f32 %v2861, %v2865
    %2869 = vrot.lane.b32.xlu0 %v2867, 32
    %v2870 = vpop.permute.xlu0 %2869
    %v2872 = vadd.f32 %v2862, %v2870
    %v2873 = vtanh.pop %v2872
    %2875 = vrot.lane.b32.xlu0 %v2873, 64
    %v2876 = vpop.permute.xlu0 %2875
    %v2878 = vmul.f32 %v2861, %v2876
    %v2879 = vld [vmem:[#allocation3 + $0x12] sm:$0x3]
    %2881 = vrot.lane.b32.xlu0 %v2878, 32
    %v2882 = vpop.permute.xlu0 %2881
    %v2883 = vsel %vm180, %v2882, 0
    %2885 = vmatprep.subr.mxu0 0.0
    %2886 = vmatpush1.msra.mxu0 %v1850
    %2887 = vmatprep.subr.mxu0 0.0
    %2888 = vmatpush1.msra.mxu0 %v1851
    %2889 = vmatprep.subr.mxu0 0.0
    %2890 = vmatpush1.msra.mxu0 %v1852
    %2891 = vmatprep.subr.mxu0 0.0
    %2892 = vmatpush1.msra.mxu0 %v1853
    %2893 = vmatprep.subr.mxu0 0.0
    %2894 = vmatpush1.msra.mxu0 0.0
    %2895 = vmatprep.subr.mxu0 0.0
    %2896 = vmatpush1.msra.mxu0 0.0
    %2897 = vmatprep.subr.mxu0 0.0
    %2898 = vmatpush1.msra.mxu0 0.0
    %2899 = vmatprep.subr.mxu0 0.0
    %2900 = vmatpush1.msra.mxu0 0.0
    %2901 = vmatprep.subr.mxu0 0.0
    %2902 = vmatpush1.msra.mxu0 0.0
    %2903 = vmatprep.subr.mxu0 0.0
    %2904 = vmatpush1.msra.mxu0 0.0
    %2905 = vmatprep.subr.mxu0 0.0
    %2906 = vmatpush1.msra.mxu0 0.0
    %2907 = vmatprep.subr.mxu0 0.0
    %2908 = vmatpush1.msra.mxu0 0.0
    %2909 = vmatprep.subr.mxu0 0.0
    %2910 = vmatpush1.msra.mxu0 0.0
    %2911 = vmatprep.subr.mxu0 0.0
    %2912 = vmatpush1.msra.mxu0 0.0
    %2913 = vmatprep.subr.mxu0 0.0
    %2914 = vmatpush1.msra.mxu0 0.0
    %2915 = vmatprep.subr.mxu0 0.0
    %2916 = vmatpush1.msra.mxu0 0.0
    %2917 = vmatprep.subr.mxu0 0.0
    %2918 = vmatpush1.msra.mxu0 0.0
    %2919 = vmatprep.subr.mxu0 0.0
    %2920 = vmatpush1.msra.mxu0 0.0
    %2921 = vmatprep.subr.mxu0 0.0
    %2922 = vmatpush1.msra.mxu0 0.0
    %2923 = vmatprep.subr.mxu0 0.0
    %2924 = vmatpush1.msra.mxu0 0.0
    %2925 = vmatprep.subr.mxu0 0.0
    %2926 = vmatpush1.msra.mxu0 0.0
    %2927 = vmatprep.subr.mxu0 0.0
    %2928 = vmatpush1.msra.mxu0 0.0
    %2929 = vmatprep.subr.mxu0 0.0
    %2930 = vmatpush1.msra.mxu0 0.0
    %2931 = vmatprep.subr.mxu0 0.0
    %2932 = vmatpush1.msra.mxu0 0.0
    %2933 = vmatprep.subr.mxu0 0.0
    %2934 = vmatpush1.msra.mxu0 0.0
    %2935 = vmatprep.subr.mxu0 0.0
    %2936 = vmatpush1.msra.mxu0 0.0
    %2937 = vmatprep.subr.mxu0 0.0
    %2938 = vmatpush1.msra.mxu0 0.0
    %2939 = vmatprep.subr.mxu0 0.0
    %2940 = vmatpush1.msra.mxu0 0.0
    %2941 = vmatprep.subr.mxu0 0.0
    %2942 = vmatpush1.msra.mxu0 0.0
    %2943 = vmatprep.subr.mxu0 0.0
    %2944 = vmatpush1.msra.mxu0 0.0
    %2945 = vmatprep.subr.mxu0 0.0
    %2946 = vmatpush1.msra.mxu0 0.0
    %2947 = vmatprep.subr.mxu0 0.0
    %2948 = vmatpush1.msra.mxu0 0.0
    %2949 = vmatprep.mubr.f32.mxu0 0.0
    %2950 = vmatmul.mubr.f32.gmra.mrb[0].mxu0 %v2883
    %v2951 = vpop.f32.mrb[0].mxu0
    %v2952 = vadd.f32 0.0, %v2951
    %v2953 = vpop.f32.mrb[0].mxu0
    %2954 = vdwg.mxu0
    %v2955 = vadd.f32 %v2879, %v2952
    %v2956 = vtanh.pop %v2955
    %v2957 = vxor.u32 %v2955, 2147483648
    %v2958 = vmul.f32 %v2957, 1.442695
    %v2959 = vpow.pop %v2958
    %v2960 = vadd.f32 %v2959, 1.0
    %v2961 = vrcp.pop %v2960
    %v2962 = vmul.f32 1.0, %v2961
    %v2963 = vsel %vm59, %v2956, %v2962
    %v2964 = vmul.f32 %v2963, %v2872
    %2966 = vrot.lane.b32.xlu0 %v2963, 64
    %v2967 = vpop.permute.xlu0 %2966
    %v2969 = vmul.f32 %v2963, %v2967
    %2971 = vrot.lane.b32.xlu0 %v2969, 32
    %v2972 = vpop.permute.xlu0 %2971
    %v2974 = vadd.f32 %v2964, %v2972
    %v2975 = vtanh.pop %v2974
    %2977 = vrot.lane.b32.xlu0 %v2975, 64
    %v2978 = vpop.permute.xlu0 %2977
    %v2980 = vmul.f32 %v2963, %v2978
    %v2981 = vld [vmem:[#allocation3 + $0x14] sm:$0x3]
    %2983 = vrot.lane.b32.xlu0 %v2980, 32
    %v2984 = vpop.permute.xlu0 %2983
    %v2985 = vsel %vm180, %v2984, 0
    %2987 = vmatprep.subr.mxu0 0.0
    %2988 = vmatpush1.msra.mxu0 %v1850
    %2989 = vmatprep.subr.mxu0 0.0
    %2990 = vmatpush1.msra.mxu0 %v1851
    %2991 = vmatprep.subr.mxu0 0.0
    %2992 = vmatpush1.msra.mxu0 %v1852
    %2993 = vmatprep.subr.mxu0 0.0
    %2994 = vmatpush1.msra.mxu0 %v1853
    %2995 = vmatprep.subr.mxu0 0.0
    %2996 = vmatpush1.msra.mxu0 0.0
    %2997 = vmatprep.subr.mxu0 0.0
    %2998 = vmatpush1.msra.mxu0 0.0
    %2999 = vmatprep.subr.mxu0 0.0
    %3000 = vmatpush1.msra.mxu0 0.0
    %3001 = vmatprep.subr.mxu0 0.0
    %3002 = vmatpush1.msra.mxu0 0.0
    %3003 = vmatprep.subr.mxu0 0.0
    %3004 = vmatpush1.msra.mxu0 0.0
    %3005 = vmatprep.subr.mxu0 0.0
    %3006 = vmatpush1.msra.mxu0 0.0
    %3007 = vmatprep.subr.mxu0 0.0
    %3008 = vmatpush1.msra.mxu0 0.0
    %3009 = vmatprep.subr.mxu0 0.0
    %3010 = vmatpush1.msra.mxu0 0.0
    %3011 = vmatprep.subr.mxu0 0.0
    %3012 = vmatpush1.msra.mxu0 0.0
    %3013 = vmatprep.subr.mxu0 0.0
    %3014 = vmatpush1.msra.mxu0 0.0
    %3015 = vmatprep.subr.mxu0 0.0
    %3016 = vmatpush1.msra.mxu0 0.0
    %3017 = vmatprep.subr.mxu0 0.0
    %3018 = vmatpush1.msra.mxu0 0.0
    %3019 = vmatprep.subr.mxu0 0.0
    %3020 = vmatpush1.msra.mxu0 0.0
    %3021 = vmatprep.subr.mxu0 0.0
    %3022 = vmatpush1.msra.mxu0 0.0
    %3023 = vmatprep.subr.mxu0 0.0
    %3024 = vmatpush1.msra.mxu0 0.0
    %3025 = vmatprep.subr.mxu0 0.0
    %3026 = vmatpush1.msra.mxu0 0.0
    %3027 = vmatprep.subr.mxu0 0.0
    %3028 = vmatpush1.msra.mxu0 0.0
    %3029 = vmatprep.subr.mxu0 0.0
    %3030 = vmatpush1.msra.mxu0 0.0
    %3031 = vmatprep.subr.mxu0 0.0
    %3032 = vmatpush1.msra.mxu0 0.0
    %3033 = vmatprep.subr.mxu0 0.0
    %3034 = vmatpush1.msra.mxu0 0.0
    %3035 = vmatprep.subr.mxu0 0.0
    %3036 = vmatpush1.msra.mxu0 0.0
    %3037 = vmatprep.subr.mxu0 0.0
    %3038 = vmatpush1.msra.mxu0 0.0
    %3039 = vmatprep.subr.mxu0 0.0
    %3040 = vmatpush1.msra.mxu0 0.0
    %3041 = vmatprep.subr.mxu0 0.0
    %3042 = vmatpush1.msra.mxu0 0.0
    %3043 = vmatprep.subr.mxu0 0.0
    %3044 = vmatpush1.msra.mxu0 0.0
    %3045 = vmatprep.subr.mxu0 0.0
    %3046 = vmatpush1.msra.mxu0 0.0
    %3047 = vmatprep.subr.mxu0 0.0
    %3048 = vmatpush1.msra.mxu0 0.0
    %3049 = vmatprep.subr.mxu0 0.0
    %3050 = vmatpush1.msra.mxu0 0.0
    %3051 = vmatprep.mubr.f32.mxu0 0.0
    %3052 = vmatmul.mubr.f32.gmra.mrb[0].mxu0 %v2985
    %v3053 = vpop.f32.mrb[0].mxu0
    %v3054 = vadd.f32 0.0, %v3053
    %v3055 = vpop.f32.mrb[0].mxu0
    %3056 = vdwg.mxu0
    %v3057 = vadd.f32 %v2981, %v3054
    %v3058 = vtanh.pop %v3057
    %v3059 = vxor.u32 %v3057, 2147483648
    %v3060 = vmul.f32 %v3059, 1.442695
    %v3061 = vpow.pop %v3060
    %v3062 = vadd.f32 %v3061, 1.0
    %v3063 = vrcp.pop %v3062
    %v3064 = vmul.f32 1.0, %v3063
    %v3065 = vsel %vm59, %v3058, %v3064
    %v3066 = vmul.f32 %v3065, %v2974
    %3068 = vrot.lane.b32.xlu0 %v3065, 64
    %v3069 = vpop.permute.xlu0 %3068
    %v3071 = vmul.f32 %v3065, %v3069
    %3073 = vrot.lane.b32.xlu0 %v3071, 32
    %v3074 = vpop.permute.xlu0 %3073
    %v3076 = vadd.f32 %v3066, %v3074
    %v3077 = vtanh.pop %v3076
    %3079 = vrot.lane.b32.xlu0 %v3077, 64
    %v3080 = vpop.permute.xlu0 %3079
    %v3082 = vmul.f32 %v3065, %v3080
    %v3083 = vld [vmem:[#allocation3 + $0x16] sm:$0x3]
    %3085 = vrot.lane.b32.xlu0 %v3082, 32
    %v3086 = vpop.permute.xlu0 %3085
    %v3087 = vsel %vm180, %v3086, 0
    %3089 = vmatprep.subr.mxu0 0.0
    %3090 = vmatpush1.msra.mxu0 %v1850
    %3091 = vmatprep.subr.mxu0 0.0
    %3092 = vmatpush1.msra.mxu0 %v1851
    %3093 = vmatprep.subr.mxu0 0.0
    %3094 = vmatpush1.msra.mxu0 %v1852
    %3095 = vmatprep.subr.mxu0 0.0
    %3096 = vmatpush1.msra.mxu0 %v1853
    %3097 = vmatprep.subr.mxu0 0.0
    %3098 = vmatpush1.msra.mxu0 0.0
    %3099 = vmatprep.subr.mxu0 0.0
    %3100 = vmatpush1.msra.mxu0 0.0
    %3101 = vmatprep.subr.mxu0 0.0
    %3102 = vmatpush1.msra.mxu0 0.0
    %3103 = vmatprep.subr.mxu0 0.0
    %3104 = vmatpush1.msra.mxu0 0.0
    %3105 = vmatprep.subr.mxu0 0.0
    %3106 = vmatpush1.msra.mxu0 0.0
    %3107 = vmatprep.subr.mxu0 0.0
    %3108 = vmatpush1.msra.mxu0 0.0
    %3109 = vmatprep.subr.mxu0 0.0
    %3110 = vmatpush1.msra.mxu0 0.0
    %3111 = vmatprep.subr.mxu0 0.0
    %3112 = vmatpush1.msra.mxu0 0.0
    %3113 = vmatprep.subr.mxu0 0.0
    %3114 = vmatpush1.msra.mxu0 0.0
    %3115 = vmatprep.subr.mxu0 0.0
    %3116 = vmatpush1.msra.mxu0 0.0
    %3117 = vmatprep.subr.mxu0 0.0
    %3118 = vmatpush1.msra.mxu0 0.0
    %3119 = vmatprep.subr.mxu0 0.0
    %3120 = vmatpush1.msra.mxu0 0.0
    %3121 = vmatprep.subr.mxu0 0.0
    %3122 = vmatpush1.msra.mxu0 0.0
    %3123 = vmatprep.subr.mxu0 0.0
    %3124 = vmatpush1.msra.mxu0 0.0
    %3125 = vmatprep.subr.mxu0 0.0
    %3126 = vmatpush1.msra.mxu0 0.0
    %3127 = vmatprep.subr.mxu0 0.0
    %3128 = vmatpush1.msra.mxu0 0.0
    %3129 = vmatprep.subr.mxu0 0.0
    %3130 = vmatpush1.msra.mxu0 0.0
    %3131 = vmatprep.subr.mxu0 0.0
    %3132 = vmatpush1.msra.mxu0 0.0
    %3133 = vmatprep.subr.mxu0 0.0
    %3134 = vmatpush1.msra.mxu0 0.0
    %3135 = vmatprep.subr.mxu0 0.0
    %3136 = vmatpush1.msra.mxu0 0.0
    %3137 = vmatprep.subr.mxu0 0.0
    %3138 = vmatpush1.msra.mxu0 0.0
    %3139 = vmatprep.subr.mxu0 0.0
    %3140 = vmatpush1.msra.mxu0 0.0
    %3141 = vmatprep.subr.mxu0 0.0
    %3142 = vmatpush1.msra.mxu0 0.0
    %3143 = vmatprep.subr.mxu0 0.0
    %3144 = vmatpush1.msra.mxu0 0.0
    %3145 = vmatprep.subr.mxu0 0.0
    %3146 = vmatpush1.msra.mxu0 0.0
    %3147 = vmatprep.subr.mxu0 0.0
    %3148 = vmatpush1.msra.mxu0 0.0
    %3149 = vmatprep.subr.mxu0 0.0
    %3150 = vmatpush1.msra.mxu0 0.0
    %3151 = vmatprep.subr.mxu0 0.0
    %3152 = vmatpush1.msra.mxu0 0.0
    %3153 = vmatprep.mubr.f32.mxu0 0.0
    %3154 = vmatmul.mubr.f32.gmra.mrb[0].mxu0 %v3087
    %v3155 = vpop.f32.mrb[0].mxu0
    %v3156 = vadd.f32 0.0, %v3155
    %v3157 = vpop.f32.mrb[0].mxu0
    %3158 = vdwg.mxu0
    %v3159 = vadd.f32 %v3083, %v3156
    %v3160 = vtanh.pop %v3159
    %v3161 = vxor.u32 %v3159, 2147483648
    %v3162 = vmul.f32 %v3161, 1.442695
    %v3163 = vpow.pop %v3162
    %v3164 = vadd.f32 %v3163, 1.0
    %v3165 = vrcp.pop %v3164
    %v3166 = vmul.f32 1.0, %v3165
    %v3167 = vsel %vm59, %v3160, %v3166
    %v3168 = vmul.f32 %v3167, %v3076
    %3170 = vrot.lane.b32.xlu0 %v3167, 64
    %v3171 = vpop.permute.xlu0 %3170
    %v3173 = vmul.f32 %v3167, %v3171
    %3175 = vrot.lane.b32.xlu0 %v3173, 32
    %v3176 = vpop.permute.xlu0 %3175
    %v3178 = vadd.f32 %v3168, %v3176
    %v3179 = vtanh.pop %v3178
    %3181 = vrot.lane.b32.xlu0 %v3179, 64
    %v3182 = vpop.permute.xlu0 %3181
    %v3184 = vmul.f32 %v3167, %v3182
    %v3185 = vld [vmem:[#allocation3 + $0x18] sm:$0x3]
    %3187 = vrot.lane.b32.xlu0 %v3184, 32
    %v3188 = vpop.permute.xlu0 %3187
    %v3189 = vsel %vm180, %v3188, 0
    %3191 = vmatprep.subr.mxu0 0.0
    %3192 = vmatpush1.msra.mxu0 %v1850
    %3193 = vmatprep.subr.mxu0 0.0
    %3194 = vmatpush1.msra.mxu0 %v1851
    %3195 = vmatprep.subr.mxu0 0.0
    %3196 = vmatpush1.msra.mxu0 %v1852
    %3197 = vmatprep.subr.mxu0 0.0
    %3198 = vmatpush1.msra.mxu0 %v1853
    %3199 = vmatprep.subr.mxu0 0.0
    %3200 = vmatpush1.msra.mxu0 0.0
    %3201 = vmatprep.subr.mxu0 0.0
    %3202 = vmatpush1.msra.mxu0 0.0
    %3203 = vmatprep.subr.mxu0 0.0
    %3204 = vmatpush1.msra.mxu0 0.0
    %3205 = vmatprep.subr.mxu0 0.0
    %3206 = vmatpush1.msra.mxu0 0.0
    %3207 = vmatprep.subr.mxu0 0.0
    %3208 = vmatpush1.msra.mxu0 0.0
    %3209 = vmatprep.subr.mxu0 0.0
    %3210 = vmatpush1.msra.mxu0 0.0
    %3211 = vmatprep.subr.mxu0 0.0
    %3212 = vmatpush1.msra.mxu0 0.0
    %3213 = vmatprep.subr.mxu0 0.0
    %3214 = vmatpush1.msra.mxu0 0.0
    %3215 = vmatprep.subr.mxu0 0.0
    %3216 = vmatpush1.msra.mxu0 0.0
    %3217 = vmatprep.subr.mxu0 0.0
    %3218 = vmatpush1.msra.mxu0 0.0
    %3219 = vmatprep.subr.mxu0 0.0
    %3220 = vmatpush1.msra.mxu0 0.0
    %3221 = vmatprep.subr.mxu0 0.0
    %3222 = vmatpush1.msra.mxu0 0.0
    %3223 = vmatprep.subr.mxu0 0.0
    %3224 = vmatpush1.msra.mxu0 0.0
    %3225 = vmatprep.subr.mxu0 0.0
    %3226 = vmatpush1.msra.mxu0 0.0
    %3227 = vmatprep.subr.mxu0 0.0
    %3228 = vmatpush1.msra.mxu0 0.0
    %3229 = vmatprep.subr.mxu0 0.0
    %3230 = vmatpush1.msra.mxu0 0.0
    %3231 = vmatprep.subr.mxu0 0.0
    %3232 = vmatpush1.msra.mxu0 0.0
    %3233 = vmatprep.subr.mxu0 0.0
    %3234 = vmatpush1.msra.mxu0 0.0
    %3235 = vmatprep.subr.mxu0 0.0
    %3236 = vmatpush1.msra.mxu0 0.0
    %3237 = vmatprep.subr.mxu0 0.0
    %3238 = vmatpush1.msra.mxu0 0.0
    %3239 = vmatprep.subr.mxu0 0.0
    %3240 = vmatpush1.msra.mxu0 0.0
    %3241 = vmatprep.subr.mxu0 0.0
    %3242 = vmatpush1.msra.mxu0 0.0
    %3243 = vmatprep.subr.mxu0 0.0
    %3244 = vmatpush1.msra.mxu0 0.0
    %3245 = vmatprep.subr.mxu0 0.0
    %3246 = vmatpush1.msra.mxu0 0.0
    %3247 = vmatprep.subr.mxu0 0.0
    %3248 = vmatpush1.msra.mxu0 0.0
    %3249 = vmatprep.subr.mxu0 0.0
    %3250 = vmatpush1.msra.mxu0 0.0
    %3251 = vmatprep.subr.mxu0 0.0
    %3252 = vmatpush1.msra.mxu0 0.0
    %3253 = vmatprep.subr.mxu0 0.0
    %3254 = vmatpush1.msra.mxu0 0.0
    %3255 = vmatprep.mubr.f32.mxu0 0.0
    %3256 = vmatmul.mubr.f32.gmra.mrb[0].mxu0 %v3189
    %v3257 = vpop.f32.mrb[0].mxu0
    %v3258 = vadd.f32 0.0, %v3257
    %v3259 = vpop.f32.mrb[0].mxu0
    %3260 = vdwg.mxu0
    %v3261 = vadd.f32 %v3185, %v3258
    %v3262 = vtanh.pop %v3261
    %v3263 = vxor.u32 %v3261, 2147483648
    %v3264 = vmul.f32 %v3263, 1.442695
    %v3265 = vpow.pop %v3264
    %v3266 = vadd.f32 %v3265, 1.0
    %v3267 = vrcp.pop %v3266
    %v3268 = vmul.f32 1.0, %v3267
    %v3269 = vsel %vm59, %v3262, %v3268
    %v3270 = vmul.f32 %v3269, %v3178
    %3272 = vrot.lane.b32.xlu0 %v3269, 64
    %v3273 = vpop.permute.xlu0 %3272
    %v3275 = vmul.f32 %v3269, %v3273
    %3277 = vrot.lane.b32.xlu0 %v3275, 32
    %v3278 = vpop.permute.xlu0 %3277
    %v3280 = vadd.f32 %v3270, %v3278
    %v3281 = vtanh.pop %v3280
    %3283 = vrot.lane.b32.xlu0 %v3281, 64
    %v3284 = vpop.permute.xlu0 %3283
    %v3286 = vmul.f32 %v3269, %v3284
    %v3287 = vld [vmem:[#allocation3 + $0x1a] sm:$0x3]
    %3289 = vrot.lane.b32.xlu0 %v3286, 32
    %v3290 = vpop.permute.xlu0 %3289
    %v3291 = vsel %vm180, %v3290, 0
    %3293 = vmatprep.subr.mxu0 0.0
    %3294 = vmatpush1.msra.mxu0 %v1850
    %3295 = vmatprep.subr.mxu0 0.0
    %3296 = vmatpush1.msra.mxu0 %v1851
    %3297 = vmatprep.subr.mxu0 0.0
    %3298 = vmatpush1.msra.mxu0 %v1852
    %3299 = vmatprep.subr.mxu0 0.0
    %3300 = vmatpush1.msra.mxu0 %v1853
    %3301 = vmatprep.subr.mxu0 0.0
    %3302 = vmatpush1.msra.mxu0 0.0
    %3303 = vmatprep.subr.mxu0 0.0
    %3304 = vmatpush1.msra.mxu0 0.0
    %3305 = vmatprep.subr.mxu0 0.0
    %3306 = vmatpush1.msra.mxu0 0.0
    %3307 = vmatprep.subr.mxu0 0.0
    %3308 = vmatpush1.msra.mxu0 0.0
    %3309 = vmatprep.subr.mxu0 0.0
    %3310 = vmatpush1.msra.mxu0 0.0
    %3311 = vmatprep.subr.mxu0 0.0
    %3312 = vmatpush1.msra.mxu0 0.0
    %3313 = vmatprep.subr.mxu0 0.0
    %3314 = vmatpush1.msra.mxu0 0.0
    %3315 = vmatprep.subr.mxu0 0.0
    %3316 = vmatpush1.msra.mxu0 0.0
    %3317 = vmatprep.subr.mxu0 0.0
    %3318 = vmatpush1.msra.mxu0 0.0
    %3319 = vmatprep.subr.mxu0 0.0
    %3320 = vmatpush1.msra.mxu0 0.0
    %3321 = vmatprep.subr.mxu0 0.0
    %3322 = vmatpush1.msra.mxu0 0.0
    %3323 = vmatprep.subr.mxu0 0.0
    %3324 = vmatpush1.msra.mxu0 0.0
    %3325 = vmatprep.subr.mxu0 0.0
    %3326 = vmatpush1.msra.mxu0 0.0
    %3327 = vmatprep.subr.mxu0 0.0
    %3328 = vmatpush1.msra.mxu0 0.0
    %3329 = vmatprep.subr.mxu0 0.0
    %3330 = vmatpush1.msra.mxu0 0.0
    %3331 = vmatprep.subr.mxu0 0.0
    %3332 = vmatpush1.msra.mxu0 0.0
    %3333 = vmatprep.subr.mxu0 0.0
    %3334 = vmatpush1.msra.mxu0 0.0
    %3335 = vmatprep.subr.mxu0 0.0
    %3336 = vmatpush1.msra.mxu0 0.0
    %3337 = vmatprep.subr.mxu0 0.0
    %3338 = vmatpush1.msra.mxu0 0.0
    %3339 = vmatprep.subr.mxu0 0.0
    %3340 = vmatpush1.msra.mxu0 0.0
    %3341 = vmatprep.subr.mxu0 0.0
    %3342 = vmatpush1.msra.mxu0 0.0
    %3343 = vmatprep.subr.mxu0 0.0
    %3344 = vmatpush1.msra.mxu0 0.0
    %3345 = vmatprep.subr.mxu0 0.0
    %3346 = vmatpush1.msra.mxu0 0.0
    %3347 = vmatprep.subr.mxu0 0.0
    %3348 = vmatpush1.msra.mxu0 0.0
    %3349 = vmatprep.subr.mxu0 0.0
    %3350 = vmatpush1.msra.mxu0 0.0
    %3351 = vmatprep.subr.mxu0 0.0
    %3352 = vmatpush1.msra.mxu0 0.0
    %3353 = vmatprep.subr.mxu0 0.0
    %3354 = vmatpush1.msra.mxu0 0.0
    %3355 = vmatprep.subr.mxu0 0.0
    %3356 = vmatpush1.msra.mxu0 0.0
    %3357 = vmatprep.mubr.f32.mxu0 0.0
    %3358 = vmatmul.mubr.f32.gmra.mrb[0].mxu0 %v3291
    %v3359 = vpop.f32.mrb[0].mxu0
    %v3360 = vadd.f32 0.0, %v3359
    %v3361 = vpop.f32.mrb[0].mxu0
    %3362 = vdwg.mxu0
    %v3363 = vadd.f32 %v3287, %v3360
    %v3364 = vtanh.pop %v3363
    %v3365 = vxor.u32 %v3363, 2147483648
    %v3366 = vmul.f32 %v3365, 1.442695
    %v3367 = vpow.pop %v3366
    %v3368 = vadd.f32 %v3367, 1.0
    %v3369 = vrcp.pop %v3368
    %v3370 = vmul.f32 1.0, %v3369
    %v3371 = vsel %vm59, %v3364, %v3370
    %v3372 = vmul.f32 %v3371, %v3280
    %3374 = vrot.lane.b32.xlu0 %v3371, 64
    %v3375 = vpop.permute.xlu0 %3374
    %v3377 = vmul.f32 %v3371, %v3375
    %3379 = vrot.lane.b32.xlu0 %v3377, 32
    %v3380 = vpop.permute.xlu0 %3379
    %v3382 = vadd.f32 %v3372, %v3380
    %v3383 = vtanh.pop %v3382
    %3385 = vrot.lane.b32.xlu0 %v3383, 64
    %v3386 = vpop.permute.xlu0 %3385
    %v3388 = vmul.f32 %v3371, %v3386
    %v3389 = vld [vmem:[#allocation3 + $0x1c] sm:$0x3]
    %3391 = vrot.lane.b32.xlu0 %v3388, 32
    %v3392 = vpop.permute.xlu0 %3391
    %v3393 = vsel %vm180, %v3392, 0
    %3395 = vmatprep.subr.mxu0 0.0
    %3396 = vmatpush1.msra.mxu0 %v1850
    %3397 = vmatprep.subr.mxu0 0.0
    %3398 = vmatpush1.msra.mxu0 %v1851
    %3399 = vmatprep.subr.mxu0 0.0
    %3400 = vmatpush1.msra.mxu0 %v1852
    %3401 = vmatprep.subr.mxu0 0.0
    %3402 = vmatpush1.msra.mxu0 %v1853
    %3403 = vmatprep.subr.mxu0 0.0
    %3404 = vmatpush1.msra.mxu0 0.0
    %3405 = vmatprep.subr.mxu0 0.0
    %3406 = vmatpush1.msra.mxu0 0.0
    %3407 = vmatprep.subr.mxu0 0.0
    %3408 = vmatpush1.msra.mxu0 0.0
    %3409 = vmatprep.subr.mxu0 0.0
    %3410 = vmatpush1.msra.mxu0 0.0
    %3411 = vmatprep.subr.mxu0 0.0
    %3412 = vmatpush1.msra.mxu0 0.0
    %3413 = vmatprep.subr.mxu0 0.0
    %3414 = vmatpush1.msra.mxu0 0.0
    %3415 = vmatprep.subr.mxu0 0.0
    %3416 = vmatpush1.msra.mxu0 0.0
    %3417 = vmatprep.subr.mxu0 0.0
    %3418 = vmatpush1.msra.mxu0 0.0
    %3419 = vmatprep.subr.mxu0 0.0
    %3420 = vmatpush1.msra.mxu0 0.0
    %3421 = vmatprep.subr.mxu0 0.0
    %3422 = vmatpush1.msra.mxu0 0.0
    %3423 = vmatprep.subr.mxu0 0.0
    %3424 = vmatpush1.msra.mxu0 0.0
    %3425 = vmatprep.subr.mxu0 0.0
    %3426 = vmatpush1.msra.mxu0 0.0
    %3427 = vmatprep.subr.mxu0 0.0
    %3428 = vmatpush1.msra.mxu0 0.0
    %3429 = vmatprep.subr.mxu0 0.0
    %3430 = vmatpush1.msra.mxu0 0.0
    %3431 = vmatprep.subr.mxu0 0.0
    %3432 = vmatpush1.msra.mxu0 0.0
    %3433 = vmatprep.subr.mxu0 0.0
    %3434 = vmatpush1.msra.mxu0 0.0
    %3435 = vmatprep.subr.mxu0 0.0
    %3436 = vmatpush1.msra.mxu0 0.0
    %3437 = vmatprep.subr.mxu0 0.0
    %3438 = vmatpush1.msra.mxu0 0.0
    %3439 = vmatprep.subr.mxu0 0.0
    %3440 = vmatpush1.msra.mxu0 0.0
    %3441 = vmatprep.subr.mxu0 0.0
    %3442 = vmatpush1.msra.mxu0 0.0
    %3443 = vmatprep.subr.mxu0 0.0
    %3444 = vmatpush1.msra.mxu0 0.0
    %3445 = vmatprep.subr.mxu0 0.0
    %3446 = vmatpush1.msra.mxu0 0.0
    %3447 = vmatprep.subr.mxu0 0.0
    %3448 = vmatpush1.msra.mxu0 0.0
    %3449 = vmatprep.subr.mxu0 0.0
    %3450 = vmatpush1.msra.mxu0 0.0
    %3451 = vmatprep.subr.mxu0 0.0
    %3452 = vmatpush1.msra.mxu0 0.0
    %3453 = vmatprep.subr.mxu0 0.0
    %3454 = vmatpush1.msra.mxu0 0.0
    %3455 = vmatprep.subr.mxu0 0.0
    %3456 = vmatpush1.msra.mxu0 0.0
    %3457 = vmatprep.subr.mxu0 0.0
    %3458 = vmatpush1.msra.mxu0 0.0
    %3459 = vmatprep.mubr.f32.mxu0 0.0
    %3460 = vmatmul.mubr.f32.gmra.mrb[0].mxu0 %v3393
    %v3461 = vpop.f32.mrb[0].mxu0
    %v3462 = vadd.f32 0.0, %v3461
    %v3463 = vpop.f32.mrb[0].mxu0
    %3464 = vdwg.mxu0
    %v3465 = vadd.f32 %v3389, %v3462
    %v3466 = vtanh.pop %v3465
    %v3467 = vxor.u32 %v3465, 2147483648
    %v3468 = vmul.f32 %v3467, 1.442695
    %v3469 = vpow.pop %v3468
    %v3470 = vadd.f32 %v3469, 1.0
    %v3471 = vrcp.pop %v3470
    %v3472 = vmul.f32 1.0, %v3471
    %v3473 = vsel %vm59, %v3466, %v3472
    %v3474 = vmul.f32 %v3473, %v3382
    %3476 = vrot.lane.b32.xlu0 %v3473, 64
    %v3477 = vpop.permute.xlu0 %3476
    %v3479 = vmul.f32 %v3473, %v3477
    %3481 = vrot.lane.b32.xlu0 %v3479, 32
    %v3482 = vpop.permute.xlu0 %3481
    %v3484 = vadd.f32 %v3474, %v3482
    %v3485 = vtanh.pop %v3484
    %3487 = vrot.lane.b32.xlu0 %v3485, 64
    %v3488 = vpop.permute.xlu0 %3487
    %v3490 = vmul.f32 %v3473, %v3488
    %v3491 = vld [vmem:[#allocation3 + $0x1e] sm:$0x3]
    %3493 = vrot.lane.b32.xlu0 %v3490, 32
    %v3494 = vpop.permute.xlu0 %3493
    %v3495 = vsel %vm180, %v3494, 0
    %3497 = vmatprep.subr.mxu0 0.0
    %3498 = vmatpush1.msra.mxu0 %v1850
    %3499 = vmatprep.subr.mxu0 0.0
    %3500 = vmatpush1.msra.mxu0 %v1851
    %3501 = vmatprep.subr.mxu0 0.0
    %3502 = vmatpush1.msra.mxu0 %v1852
    %3503 = vmatprep.subr.mxu0 0.0
    %3504 = vmatpush1.msra.mxu0 %v1853
    %3505 = vmatprep.subr.mxu0 0.0
    %3506 = vmatpush1.msra.mxu0 0.0
    %3507 = vmatprep.subr.mxu0 0.0
    %3508 = vmatpush1.msra.mxu0 0.0
    %3509 = vmatprep.subr.mxu0 0.0
    %3510 = vmatpush1.msra.mxu0 0.0
    %3511 = vmatprep.subr.mxu0 0.0
    %3512 = vmatpush1.msra.mxu0 0.0
    %3513 = vmatprep.subr.mxu0 0.0
    %3514 = vmatpush1.msra.mxu0 0.0
    %3515 = vmatprep.subr.mxu0 0.0
    %3516 = vmatpush1.msra.mxu0 0.0
    %3517 = vmatprep.subr.mxu0 0.0
    %3518 = vmatpush1.msra.mxu0 0.0
    %3519 = vmatprep.subr.mxu0 0.0
    %3520 = vmatpush1.msra.mxu0 0.0
    %3521 = vmatprep.subr.mxu0 0.0
    %3522 = vmatpush1.msra.mxu0 0.0
    %3523 = vmatprep.subr.mxu0 0.0
    %3524 = vmatpush1.msra.mxu0 0.0
    %3525 = vmatprep.subr.mxu0 0.0
    %3526 = vmatpush1.msra.mxu0 0.0
    %3527 = vmatprep.subr.mxu0 0.0
    %3528 = vmatpush1.msra.mxu0 0.0
    %3529 = vmatprep.subr.mxu0 0.0
    %3530 = vmatpush1.msra.mxu0 0.0
    %3531 = vmatprep.subr.mxu0 0.0
    %3532 = vmatpush1.msra.mxu0 0.0
    %3533 = vmatprep.subr.mxu0 0.0
    %3534 = vmatpush1.msra.mxu0 0.0
    %3535 = vmatprep.subr.mxu0 0.0
    %3536 = vmatpush1.msra.mxu0 0.0
    %3537 = vmatprep.subr.mxu0 0.0
    %3538 = vmatpush1.msra.mxu0 0.0
    %3539 = vmatprep.subr.mxu0 0.0
    %3540 = vmatpush1.msra.mxu0 0.0
    %3541 = vmatprep.subr.mxu0 0.0
    %3542 = vmatpush1.msra.mxu0 0.0
    %3543 = vmatprep.subr.mxu0 0.0
    %3544 = vmatpush1.msra.mxu0 0.0
    %3545 = vmatprep.subr.mxu0 0.0
    %3546 = vmatpush1.msra.mxu0 0.0
    %3547 = vmatprep.subr.mxu0 0.0
    %3548 = vmatpush1.msra.mxu0 0.0
    %3549 = vmatprep.subr.mxu0 0.0
    %3550 = vmatpush1.msra.mxu0 0.0
    %3551 = vmatprep.subr.mxu0 0.0
    %3552 = vmatpush1.msra.mxu0 0.0
    %3553 = vmatprep.subr.mxu0 0.0
    %3554 = vmatpush1.msra.mxu0 0.0
    %3555 = vmatprep.subr.mxu0 0.0
    %3556 = vmatpush1.msra.mxu0 0.0
    %3557 = vmatprep.subr.mxu0 0.0
    %3558 = vmatpush1.msra.mxu0 0.0
    %3559 = vmatprep.subr.mxu0 0.0
    %3560 = vmatpush1.msra.mxu0 0.0
    %3561 = vmatprep.mubr.f32.mxu0 0.0
    %3562 = vmatmul.mubr.f32.gmra.mrb[0].mxu0 %v3495
    %v3563 = vpop.f32.mrb[0].mxu0
    %v3564 = vadd.f32 0.0, %v3563
    %v3565 = vpop.f32.mrb[0].mxu0
    %3566 = vdwg.mxu0
    %v3567 = vadd.f32 %v3491, %v3564
    %v3568 = vtanh.pop %v3567
    %v3569 = vxor.u32 %v3567, 2147483648
    %v3570 = vmul.f32 %v3569, 1.442695
    %v3571 = vpow.pop %v3570
    %v3572 = vadd.f32 %v3571, 1.0
    %v3573 = vrcp.pop %v3572
    %v3574 = vmul.f32 1.0, %v3573
    %v3575 = vsel %vm59, %v3568, %v3574
    %v3576 = vmul.f32 %v3575, %v3484
    %3578 = vrot.lane.b32.xlu0 %v3575, 64
    %v3579 = vpop.permute.xlu0 %3578
    %v3581 = vmul.f32 %v3575, %v3579
    %3583 = vrot.lane.b32.xlu0 %v3581, 32
    %v3584 = vpop.permute.xlu0 %3583
    %v3586 = vadd.f32 %v3576, %v3584
    %v3587 = vtanh.pop %v3586
    %3589 = vrot.lane.b32.xlu0 %v3587, 64
    %v3590 = vpop.permute.xlu0 %3589
    %v3592 = vmul.f32 %v3575, %v3590
    %3594 = vrot.lane.b32.xlu0 %v3592, 32
    %v3595 = vpop.permute.xlu0 %3594
    %3597 = vst.msk [vmem:[#allocation9] sm:$0x3] %vm284, %v3595
    // Predicated region
    $region38: #{tpu_custom_call.1} parent=1 // pred_check
      _
    $region39: #{tpu_custom_call.1} parent=1 // pred_check_branch
      %3599 = sbr.rel (0) target = $region41
    $region40: #{tpu_custom_call.1} parent=1 // pred_region
      %s3601 = ssub.s32 32, 32
      %3602 = vsyncadd [#allocation6], %s3601
      %s3604 = sshll.u32 [#allocation9], 4
      %s3605 = int_to_ptr.vmem [resolvable:$true] %s3604
      %3607 = dma.vmem_to_hbm [thread:$0]  %s3605, 32, %s7, [#allocation6]
    $region41: #{tpu_custom_call.1} parent=1 // pred_fallthru
      _
    // Predicated region
    $region42: #{tpu_custom_call.1} parent=1 // pred_check
      _
    $region43: #{tpu_custom_call.1} parent=1 // pred_check_branch
      %3609 = sbr.rel (0) target = $region45
    $region44: #{tpu_custom_call.1} parent=1 // pred_region
      %3610 = dma.done [#allocation6], 32
    $region45: #{tpu_custom_call.1} parent=1 // pred_fallthru
      _
    %3611 = vsyncpa [#allocation5], 1
    %3612 = vsyncpa [#allocation8], 1
    %3613 = vsyncpa [#allocation6], 1

</llo_original>
